<compile_context>
chip_gen: v6e
topology: v6e:2x2x1
jax: 0.10.0
libtpu: 0.0.40
codegen_flags: <defaults>
</compile_context>

<pallas_src>
import functools

import jax
import jax.numpy as jnp
from jax.experimental import pallas as pl
from jax.experimental.pallas import tpu as pltpu

F32 = jnp.float32

# --------------------------- model configs (small, synthetic) ---------------------------

ENC_CFG = dict(vocab_size=50, hidden_size=32, num_hidden_layers=2,
               num_attention_heads=2, intermediate_size=64,
               max_position_embeddings=32, type_vocab_size=2,
               num_labels=3, layer_norm_eps=1e-12)

DEC_CFG = dict(vocab_size=20, d_model=32, decoder_layers=2,           # vocab forced to 20 in Decoder_exp4
               decoder_attention_heads=2, decoder_ffn_dim=64,
               max_position_embeddings=32, layer_norm_eps=1e-5)

_VMEM = pl.BlockSpec(memory_space=pltpu.MemorySpace.VMEM)

# --------------------------------- in-kernel helpers --------------------------------------

def _gelu(y):
    # TODO(synk): HF uses erf-exact GELU; tanh approximation used for guaranteed Mosaic lowering.
    return 0.5 * y * (1.0 + jnp.tanh(0.7978845608028654 * (y + 0.044715 * y * y * y)))


def _layernorm_f32(x, g, b, eps):
    mu = jnp.mean(x, axis=-1, keepdims=True)
    xc = x - mu
    var = jnp.mean(xc * xc, axis=-1, keepdims=True)
    return xc * jax.lax.rsqrt(var + eps) * g + b


def _mha(qkv, bias, B, T, nH, H, Dh, scale):
    """Multi-head attention over a fused [B*T, 3H] qkv slab; bias is [B, T, T] or [B, 1, T]."""
    ctx_heads = []
    for hh in range(nH):                                          # static unroll (nH tiny)
        qh = qkv[:, hh * Dh:(hh + 1) * Dh].reshape(B, T, Dh)
        kh = qkv[:, H + hh * Dh:H + (hh + 1) * Dh].reshape(B, T, Dh)
        vh = qkv[:, 2 * H + hh * Dh:2 * H + (hh + 1) * Dh].reshape(B, T, Dh)
        s = jnp.einsum("bqd,bkd->bqk", qh, kh, preferred_element_type=F32) * scale + bias
        m = jnp.max(s, axis=-1, keepdims=True)
        p = jnp.exp(s - m)
        denom = jnp.sum(p, axis=-1, keepdims=True)
        o = jnp.einsum("bqk,bkd->bqd", p * pl.reciprocal(denom, approx=True), vh,
                       preferred_element_type=F32)
        ctx_heads.append(o.reshape(B * T, Dh))
    return jnp.concatenate(ctx_heads, axis=-1)                    # [B*T, H]

# --------------------------------- Pallas kernels ----------------------------------------

def _layernorm_kernel(x_ref, g_ref, b_ref, o_ref, *, eps):
    x = x_ref[...].astype(F32)
    o_ref[...] = _layernorm_f32(x, g_ref[...].astype(F32), b_ref[...].astype(F32),
                                eps).astype(o_ref.dtype)


def _linear_kernel(x_ref, w_ref, b_ref, o_ref):
    y = jnp.dot(x_ref[...].astype(F32), w_ref[...].astype(F32),
                preferred_element_type=F32) + b_ref[...].astype(F32)
    o_ref[...] = y.astype(o_ref.dtype)


def _encoder_layer_kernel(h_ref, mask_ref,
                          qkv_w_ref, qkv_b_ref, o_w_ref, o_b_ref,
                          ln1_g_ref, ln1_b_ref,
                          fc1_w_ref, fc1_b_ref, fc2_w_ref, fc2_b_ref,
                          ln2_g_ref, ln2_b_ref,
                          out_ref, *, B, S, nH, eps):
    H = h_ref.shape[-1]
    Dh = H // nH
    scale = 1.0 / float(Dh) ** 0.5

    x = h_ref[...].astype(F32)                                    # [B*S, H]
    # fused QKV projection: one matmul, 3H-wide output
    qkv = jnp.dot(x, qkv_w_ref[...], preferred_element_type=F32) + qkv_b_ref[...]
    # padding bias built in-kernel from the [B, S] mask
    bias = ((1.0 - mask_ref[...]) * -1e9)[:, None, :]             # [B, 1, S]

    ctx = _mha(qkv, bias, B, S, nH, H, Dh, scale)                 # [B*S, H]
    attn_out = jnp.dot(ctx, o_w_ref[...], preferred_element_type=F32) + o_b_ref[...]
    h1 = _layernorm_f32(x + attn_out, ln1_g_ref[...], ln1_b_ref[...], eps)

    inter = _gelu(jnp.dot(h1, fc1_w_ref[...], preferred_element_type=F32) + fc1_b_ref[...])
    ffn_out = jnp.dot(inter, fc2_w_ref[...], preferred_element_type=F32) + fc2_b_ref[...]
    out_ref[...] = _layernorm_f32(h1 + ffn_out, ln2_g_ref[...], ln2_b_ref[...],
                                  eps).astype(out_ref.dtype)


def _decoder_layer_kernel(h_ref, cls_ref, mask_ref,
                          sqkv_w_ref, sqkv_b_ref, so_w_ref, so_b_ref,
                          ln1_g_ref, ln1_b_ref,
                          cv_w_ref, cv_b_ref, co_w_ref, co_b_ref,
                          ln2_g_ref, ln2_b_ref,
                          fc1_w_ref, fc1_b_ref, fc2_w_ref, fc2_b_ref,
                          ln3_g_ref, ln3_b_ref,
                          out_ref, *, B, T, nH, eps):
    D = h_ref.shape[-1]
    Dh = D // nH
    scale = 1.0 / float(Dh) ** 0.5

    x = h_ref[...].astype(F32)                                    # [B*T, D]

    # causal + padding bias built in-kernel
    rows = jax.lax.broadcasted_iota(jnp.int32, (T, T), 0)
    cols = jax.lax.broadcasted_iota(jnp.int32, (T, T), 1)
    causal = jnp.where(rows >= cols, 0.0, -1e9)                   # [T, T]
    pad = (1.0 - mask_ref[...]) * -1e9                            # [B, T]
    bias = causal[None, :, :] + pad[:, None, :]                   # [B, T, T]

    # --- causal self-attention ---
    qkv = jnp.dot(x, sqkv_w_ref[...], preferred_element_type=F32) + sqkv_b_ref[...]
    ctx = _mha(qkv, bias, B, T, nH, D, Dh, scale)
    attn_out = jnp.dot(ctx, so_w_ref[...], preferred_element_type=F32) + so_b_ref[...]
    h1 = _layernorm_f32(x + attn_out, ln1_g_ref[...], ln1_b_ref[...], eps)

    # --- cross-attention over the single CLS "token" ---
    # softmax over a length-1 key axis is identically 1 -> output == V projection of CLS,
    # broadcast over all T query positions (q/k projections mathematically drop out).
    cls_v = jnp.dot(cls_ref[...].astype(F32), cv_w_ref[...],
                    preferred_element_type=F32) + cv_b_ref[...]   # [B, D]
    cross_b = jnp.dot(cls_v, co_w_ref[...], preferred_element_type=F32) + co_b_ref[...]  # [B, D]
    cross_out = jnp.broadcast_to(cross_b[:, None, :], (B, T, D)).reshape(B * T, D)
    h2 = _layernorm_f32(h1 + cross_out, ln2_g_ref[...], ln2_b_ref[...], eps)

    # --- FFN ---
    inter = _gelu(jnp.dot(h2, fc1_w_ref[...], preferred_element_type=F32) + fc1_b_ref[...])
    ffn_out = jnp.dot(inter, fc2_w_ref[...], preferred_element_type=F32) + fc2_b_ref[...]
    out_ref[...] = _layernorm_f32(h2 + ffn_out, ln3_g_ref[...], ln3_b_ref[...],
                                  eps).astype(out_ref.dtype)

# --------------------------------- kernel wrappers ----------------------------------------

def layernorm(x, g, b, eps):
    M, H = x.shape
    return pl.pallas_call(
        functools.partial(_layernorm_kernel, eps=eps),
        out_shape=jax.ShapeDtypeStruct((M, H), F32),
        in_specs=[_VMEM, _VMEM, _VMEM],
        out_specs=_VMEM,
    )(x, g.reshape(1, H), b.reshape(1, H))


def linear(x, w, b):
    M, N = x.shape[0], w.shape[1]
    return pl.pallas_call(
        _linear_kernel,
        out_shape=jax.ShapeDtypeStruct((M, N), F32),
        in_specs=[_VMEM, _VMEM, _VMEM],
        out_specs=_VMEM,
    )(x, w, b.reshape(1, N))


def encoder_layer(h, mask_f32, lyr, *, B, S, nH, eps):
    BS, H = h.shape
    return pl.pallas_call(
        functools.partial(_encoder_layer_kernel, B=B, S=S, nH=nH, eps=eps),
        out_shape=jax.ShapeDtypeStruct((BS, H), F32),
        in_specs=[_VMEM] * 14,
        out_specs=_VMEM,
    )(h, mask_f32,
      lyr["qkv"]["w"], lyr["qkv"]["b"].reshape(1, -1),
      lyr["o"]["w"], lyr["o"]["b"].reshape(1, -1),
      lyr["attn_ln"]["g"].reshape(1, -1), lyr["attn_ln"]["b"].reshape(1, -1),
      lyr["inter"]["w"], lyr["inter"]["b"].reshape(1, -1),
      lyr["out"]["w"], lyr["out"]["b"].reshape(1, -1),
      lyr["ffn_ln"]["g"].reshape(1, -1), lyr["ffn_ln"]["b"].reshape(1, -1))


def decoder_layer(h, cls_vec, mask_f32, lyr, *, B, T, nH, eps):
    BT, D = h.shape
    return pl.pallas_call(
        functools.partial(_decoder_layer_kernel, B=B, T=T, nH=nH, eps=eps),
        out_shape=jax.ShapeDtypeStruct((BT, D), F32),
        in_specs=[_VMEM] * 21,
        out_specs=_VMEM,
    )(h, cls_vec, mask_f32,
      lyr["sqkv"]["w"], lyr["sqkv"]["b"].reshape(1, -1),
      lyr["so"]["w"], lyr["so"]["b"].reshape(1, -1),
      lyr["self_ln"]["g"].reshape(1, -1), lyr["self_ln"]["b"].reshape(1, -1),
      lyr["cv"]["w"], lyr["cv"]["b"].reshape(1, -1),
      lyr["co"]["w"], lyr["co"]["b"].reshape(1, -1),
      lyr["cross_ln"]["g"].reshape(1, -1), lyr["cross_ln"]["b"].reshape(1, -1),
      lyr["fc1"]["w"], lyr["fc1"]["b"].reshape(1, -1),
      lyr["fc2"]["w"], lyr["fc2"]["b"].reshape(1, -1),
      lyr["final_ln"]["g"].reshape(1, -1), lyr["final_ln"]["b"].reshape(1, -1))

# --------------------------------- parameters --------------------------------------------

def _dense(key, din, dout):
    return {"w": 0.02 * jax.random.normal(key, (din, dout), F32),
            "b": jnp.zeros((dout,), F32)}


def _ln_params(h):
    return {"g": jnp.ones((h,), F32), "b": jnp.zeros((h,), F32)}


def init_params(key):
    keys = iter(jax.random.split(key, 256))
    H, I = ENC_CFG["hidden_size"], ENC_CFG["intermediate_size"]
    D, FF = DEC_CFG["d_model"], DEC_CFG["decoder_ffn_dim"]
    p = {}
    # Electra embeddings
    p["enc_word_emb"] = 0.02 * jax.random.normal(next(keys), (ENC_CFG["vocab_size"], H), F32)
    p["enc_pos_emb"] = 0.02 * jax.random.normal(next(keys), (ENC_CFG["max_position_embeddings"], H), F32)
    p["enc_type_emb"] = 0.02 * jax.random.normal(next(keys), (ENC_CFG["type_vocab_size"], H), F32)
    p["enc_emb_ln"] = _ln_params(H)
    p["enc_layers"] = []
    for _ in range(ENC_CFG["num_hidden_layers"]):
        p["enc_layers"].append({
            "qkv": _dense(next(keys), H, 3 * H),        # fused Q/K/V projection
            "o": _dense(next(keys), H, H),
            "attn_ln": _ln_params(H),
            "inter": _dense(next(keys), H, I), "out": _dense(next(keys), I, H),
            "ffn_ln": _ln_params(H),
        })
    # BART decoder
    p["dec_word_emb"] = 0.02 * jax.random.normal(next(keys), (DEC_CFG["vocab_size"], D), F32)
    p["dec_pos_emb"] = 0.02 * jax.random.normal(next(keys), (DEC_CFG["max_position_embeddings"] + 2, D), F32)
    p["dec_emb_ln"] = _ln_params(D)
    p["dec_layers"] = []
    for _ in range(DEC_CFG["decoder_layers"]):
        p["dec_layers"].append({
            "sqkv": _dense(next(keys), D, 3 * D),       # fused self-attn Q/K/V
            "so": _dense(next(keys), D, D),
            "self_ln": _ln_params(D),
            # cross-attn q/k projections are omitted: with a length-1 encoder sequence the
            # softmax is identically 1, so the output does not depend on them.
            "cv": _dense(next(keys), D, D), "co": _dense(next(keys), D, D),
            "cross_ln": _ln_params(D),
            "fc1": _dense(next(keys), D, FF), "fc2": _dense(next(keys), FF, D),
            "final_ln": _ln_params(D),
        })
    # classifier head (config.hidden_size -> config.num_labels)
    p["out_layers"] = _dense(next(keys), H, ENC_CFG["num_labels"])
    return p

# --------------------------------- forward (glue in plain JAX) ---------------------------

def electra_encode(p, input_ids, attention_mask, token_type_ids):
    B, S = input_ids.shape
    H, nH = ENC_CFG["hidden_size"], ENC_CFG["num_attention_heads"]
    eps = ENC_CFG["layer_norm_eps"]
    pos = jnp.arange(S)
    emb = (jnp.take(p["enc_word_emb"], input_ids, axis=0)
           + p["enc_pos_emb"][pos][None, :, :]
           + jnp.take(p["enc_type_emb"], token_type_ids, axis=0))
    h = layernorm(emb.reshape(B * S, H), p["enc_emb_ln"]["g"], p["enc_emb_ln"]["b"], eps)
    mask_f32 = attention_mask.astype(F32)                          # [B, S]; bias built in-kernel
    for lyr in p["enc_layers"]:
        h = encoder_layer(h, mask_f32, lyr, B=B, S=S, nH=nH, eps=eps)
    return h.reshape(B, S, H)


def bart_decode(p, decoder_input_ids, decoder_attention_mask, enc_cls):
    # enc_cls: [B, D] (the CLS hidden state); acts as a length-1 encoder sequence for cross-attn.
    B, T = decoder_input_ids.shape
    D, nH = DEC_CFG["d_model"], DEC_CFG["decoder_attention_heads"]
    eps = DEC_CFG["layer_norm_eps"]
    pos = jnp.arange(T) + 2                                        # BartLearnedPositionalEmbedding offset
    emb = jnp.take(p["dec_word_emb"], decoder_input_ids, axis=0) + p["dec_pos_emb"][pos][None, :, :]
    h = layernorm(emb.reshape(B * T, D), p["dec_emb_ln"]["g"], p["dec_emb_ln"]["b"], eps)
    mask_f32 = decoder_attention_mask.astype(F32)                  # [B, T]; causal+pad bias built in-kernel
    for lyr in p["dec_layers"]:
        h = decoder_layer(h, enc_cls, mask_f32, lyr, B=B, T=T, nH=nH, eps=eps)
    return h.reshape(B, T, D)


def classifier_forward(p, encoder_input_ids, encoder_attention_mask, token_type_ids,
                       decoder_input_ids, decoder_attention_mask, labels=None):
    enc_out = electra_encode(p, encoder_input_ids, encoder_attention_mask, token_type_ids)
    cls = enc_out[:, 0, :]                                         # encoder_outputs[0][:, 0, :]
    dec_out = bart_decode(p, decoder_input_ids, decoder_attention_mask, cls)
    B, T, D = dec_out.shape
    # TODO(synk): N=3 output is lane-sparse (masked stores); negligible at this size.
    logits = linear(dec_out.reshape(B * T, D), p["out_layers"]["w"], p["out_layers"]["b"])
    logits = logits.reshape(B, T, ENC_CFG["num_labels"])
    loss = None
    if labels is not None:                                         # CrossEntropyLoss w/ ignore_index=-100
        flat_logits = logits.reshape(-1, ENC_CFG["num_labels"])
        flat_labels = labels.reshape(-1)
        valid = flat_labels != -100
        safe = jnp.where(valid, flat_labels, 0)
        logp = jax.nn.log_softmax(flat_logits, axis=-1)
        nll = -jnp.take_along_axis(logp, safe[:, None], axis=-1)[:, 0]
        loss = jnp.sum(jnp.where(valid, nll, 0.0)) / jnp.maximum(jnp.sum(valid), 1)
    return {"loss": loss, "logits": logits}


# ------------------------------------- main -----------------------------------------------

if __name__ == "__main__":
    key = jax.random.PRNGKey(0)
    pkey, k1, k2 = jax.random.split(key, 3)
    params = init_params(pkey)

    B, S, T = 2, 8, 8
    encoder_input_ids = jax.random.randint(k1, (B, S), 0, ENC_CFG["vocab_size"], dtype=jnp.int32)
    decoder_input_ids = jax.random.randint(k2, (B, T), 0, DEC_CFG["vocab_size"], dtype=jnp.int32)
    encoder_attention_mask = jnp.ones((B, S), jnp.int32)
    token_type_ids = jnp.zeros((B, S), jnp.int32)
    decoder_attention_mask = jnp.ones((B, T), jnp.int32)

    out = jax.jit(classifier_forward)(params, encoder_input_ids, encoder_attention_mask,
                                      token_type_ids, decoder_input_ids, decoder_attention_mask)
    logits = jax.block_until_ready(out["logits"])
    assert logits.shape == (B, T, ENC_CFG["num_labels"])
    assert out["loss"] is None
    print("KERNEL_OK")
</pallas_src>

<mosaic_0001>
module attributes {stable_mosaic.version = 11 : i64} {
  func.func @_layernorm_kernel(%arg0: memref<16x32xf32, #tpu.memory_space<vmem>>, %arg1: memref<1x32xf32, #tpu.memory_space<vmem>>, %arg2: memref<1x32xf32, #tpu.memory_space<vmem>>, %arg3: memref<16x32xf32, #tpu.memory_space<vmem>>) attributes {dimension_semantics = [], scalar_prefetch = 0 : i64, scratch_operands = 0 : i64, tpu.core_type = #tpu.core_type<tc>} {
    %c0 = arith.constant 0 : index
    %c0_0 = arith.constant 0 : index
    %0 = vector.load %arg0[%c0, %c0_0] : memref<16x32xf32, #tpu.memory_space<vmem>>, vector<16x32xf32>
    %c0_1 = arith.constant 0 : index
    %c0_2 = arith.constant 0 : index
    %1 = vector.load %arg1[%c0_1, %c0_2] : memref<1x32xf32, #tpu.memory_space<vmem>>, vector<1x32xf32>
    %c0_3 = arith.constant 0 : index
    %c0_4 = arith.constant 0 : index
    %2 = vector.load %arg2[%c0_3, %c0_4] : memref<1x32xf32, #tpu.memory_space<vmem>>, vector<1x32xf32>
    %cst = arith.constant dense<0.000000e+00> : vector<16xf32>
    %3 = vector.multi_reduction <add>, %0, %cst [1] : vector<16x32xf32> to vector<16xf32>
    %4 = vector.shape_cast %3 : vector<16xf32> to vector<16x1xf32>
    %cst_5 = arith.constant 3.200000e+01 : f32
    %5 = vector.broadcast %cst_5 : f32 to vector<16x1xf32>
    %6 = arith.divf %4, %5 : vector<16x1xf32>
    %7 = vector.broadcast %6 : vector<16x1xf32> to vector<16x32xf32>
    %8 = arith.subf %0, %7 : vector<16x32xf32>
    %9 = arith.mulf %8, %8 : vector<16x32xf32>
    %cst_6 = arith.constant dense<0.000000e+00> : vector<16xf32>
    %10 = vector.multi_reduction <add>, %9, %cst_6 [1] : vector<16x32xf32> to vector<16xf32>
    %11 = vector.shape_cast %10 : vector<16xf32> to vector<16x1xf32>
    %cst_7 = arith.constant 3.200000e+01 : f32
    %12 = vector.broadcast %cst_7 : f32 to vector<16x1xf32>
    %13 = arith.divf %11, %12 : vector<16x1xf32>
    %cst_8 = arith.constant 9.99999996E-13 : f32
    %14 = vector.broadcast %cst_8 : f32 to vector<16x1xf32>
    %15 = arith.addf %13, %14 : vector<16x1xf32>
    %16 = math.rsqrt %15 : vector<16x1xf32>
    %17 = vector.broadcast %16 : vector<16x1xf32> to vector<16x32xf32>
    %18 = arith.mulf %8, %17 : vector<16x32xf32>
    %19 = vector.broadcast %1 : vector<1x32xf32> to vector<16x32xf32>
    %20 = arith.mulf %18, %19 : vector<16x32xf32>
    %21 = vector.broadcast %2 : vector<1x32xf32> to vector<16x32xf32>
    %22 = arith.addf %20, %21 : vector<16x32xf32>
    %c0_9 = arith.constant 0 : index
    %c0_10 = arith.constant 0 : index
    %23 = vector.load %arg3[%c0_9, %c0_10] : memref<16x32xf32, #tpu.memory_space<vmem>>, vector<16x32xf32>
    tpu.vector_store %arg3[%c0_9, %c0_10], %22 {strides = array<i32>} : memref<16x32xf32, #tpu.memory_space<vmem>>, vector<16x32xf32>,
    return
  }
}

module attributes {stable_mosaic.version = 11 : i64} {
  func.func @_encoder_layer_kernel(%arg0: memref<16x32xf32, #tpu.memory_space<vmem>>, %arg1: memref<2x8xf32, #tpu.memory_space<vmem>>, %arg2: memref<32x96xf32, #tpu.memory_space<vmem>>, %arg3: memref<1x96xf32, #tpu.memory_space<vmem>>, %arg4: memref<32x32xf32, #tpu.memory_space<vmem>>, %arg5: memref<1x32xf32, #tpu.memory_space<vmem>>, %arg6: memref<1x32xf32, #tpu.memory_space<vmem>>, %arg7: memref<1x32xf32, #tpu.memory_space<vmem>>, %arg8: memref<32x64xf32, #tpu.memory_space<vmem>>, %arg9: memref<1x64xf32, #tpu.memory_space<vmem>>, %arg10: memref<64x32xf32, #tpu.memory_space<vmem>>, %arg11: memref<1x32xf32, #tpu.memory_space<vmem>>, %arg12: memref<1x32xf32, #tpu.memory_space<vmem>>, %arg13: memref<1x32xf32, #tpu.memory_space<vmem>>, %arg14: memref<16x32xf32, #tpu.memory_space<vmem>>) attributes {dimension_semantics = [], scalar_prefetch = 0 : i64, scratch_operands = 0 : i64, tpu.core_type = #tpu.core_type<tc>} {
    %c0 = arith.constant 0 : index
    %c0_0 = arith.constant 0 : index
    %0 = vector.load %arg0[%c0, %c0_0] : memref<16x32xf32, #tpu.memory_space<vmem>>, vector<16x32xf32>
    %c0_1 = arith.constant 0 : index
    %c0_2 = arith.constant 0 : index
    %1 = vector.load %arg2[%c0_1, %c0_2] : memref<32x96xf32, #tpu.memory_space<vmem>>, vector<32x96xf32>
    %cst = arith.constant dense<0.000000e+00> : vector<16x96xf32>
    %2 = tpu.matmul %0, %1, %cst {dimension_numbers = #tpu.dot_dimension_numbers<[1], [0], [0], [1], [0, 0, 1, 1], [], []>} : vector<16x32xf32>, vector<32x96xf32>, vector<16x96xf32> -> vector<16x96xf32>
    %c0_3 = arith.constant 0 : index
    %c0_4 = arith.constant 0 : index
    %3 = vector.load %arg3[%c0_3, %c0_4] : memref<1x96xf32, #tpu.memory_space<vmem>>, vector<1x96xf32>
    %4 = vector.broadcast %3 : vector<1x96xf32> to vector<16x96xf32>
    %5 = arith.addf %2, %4 : vector<16x96xf32>
    %c0_5 = arith.constant 0 : index
    %c0_6 = arith.constant 0 : index
    %6 = vector.load %arg1[%c0_5, %c0_6] : memref<2x8xf32, #tpu.memory_space<vmem>>, vector<2x8xf32>
    %cst_7 = arith.constant 1.000000e+00 : f32
    %7 = vector.broadcast %cst_7 : f32 to vector<2x8xf32>
    %8 = arith.subf %7, %6 : vector<2x8xf32>
    %cst_8 = arith.constant -1.000000e+09 : f32
    %9 = vector.broadcast %cst_8 : f32 to vector<2x8xf32>
    %10 = arith.mulf %8, %9 : vector<2x8xf32>
    %11 = vector.shape_cast %10 : vector<2x8xf32> to vector<2x1x8xf32>
    %12 = vector.extract_strided_slice %5 {offsets = [0, 0], sizes = [16, 16], strides = [1, 1]} : vector<16x96xf32> to vector<16x16xf32>
    %13 = vector.shape_cast %12 : vector<16x16xf32> to vector<2x8x16xf32>
    %14 = vector.extract_strided_slice %5 {offsets = [0, 32], sizes = [16, 16], strides = [1, 1]} : vector<16x96xf32> to vector<16x16xf32>
    %15 = vector.shape_cast %14 : vector<16x16xf32> to vector<2x8x16xf32>
    %16 = vector.extract_strided_slice %5 {offsets = [0, 64], sizes = [16, 16], strides = [1, 1]} : vector<16x96xf32> to vector<16x16xf32>
    %17 = vector.shape_cast %16 : vector<16x16xf32> to vector<2x8x16xf32>
    "tpu.trace_start"() <{level = 10 : i32, message = "bqd,bkd->bqk"}> : () -> ()
    %cst_9 = arith.constant dense<0.000000e+00> : vector<2x8x8xf32>
    %18 = tpu.matmul %13, %15, %cst_9 {dimension_numbers = #tpu.dot_dimension_numbers<[2], [2], [1], [1], [0, 0, 0, 1, 1, 1], [0], [0]>} : vector<2x8x16xf32>, vector<2x8x16xf32>, vector<2x8x8xf32> -> vector<2x8x8xf32>
    "tpu.trace_stop"() : () -> ()
    %cst_10 = arith.constant 2.500000e-01 : f32
    %19 = vector.broadcast %cst_10 : f32 to vector<2x8x8xf32>
    %20 = arith.mulf %18, %19 : vector<2x8x8xf32>
    %21 = vector.broadcast %11 : vector<2x1x8xf32> to vector<2x8x8xf32>
    %22 = arith.addf %20, %21 : vector<2x8x8xf32>
    %cst_11 = arith.constant dense<0xFF800000> : vector<2x8xf32>
    %23 = vector.multi_reduction <maximumf>, %22, %cst_11 [2] : vector<2x8x8xf32> to vector<2x8xf32>
    %24 = vector.shape_cast %23 : vector<2x8xf32> to vector<2x8x1xf32>
    %25 = vector.broadcast %24 : vector<2x8x1xf32> to vector<2x8x8xf32>
    %26 = arith.subf %22, %25 : vector<2x8x8xf32>
    %27 = math.exp %26 : vector<2x8x8xf32>
    %cst_12 = arith.constant dense<0.000000e+00> : vector<2x8xf32>
    %28 = vector.multi_reduction <add>, %27, %cst_12 [2] : vector<2x8x8xf32> to vector<2x8xf32>
    %29 = vector.shape_cast %28 : vector<2x8xf32> to vector<2x8x1xf32>
    %30 = tpu.reciprocal %29 {approx = true} : vector<2x8x1xf32> -> vector<2x8x1xf32>
    %31 = vector.broadcast %30 : vector<2x8x1xf32> to vector<2x8x8xf32>
    %32 = arith.mulf %27, %31 : vector<2x8x8xf32>
    "tpu.trace_start"() <{level = 10 : i32, message = "bqk,bkd->bqd"}> : () -> ()
    %cst_13 = arith.constant dense<0.000000e+00> : vector<2x8x16xf32>
    %33 = tpu.matmul %32, %17, %cst_13 {dimension_numbers = #tpu.dot_dimension_numbers<[2], [1], [1], [2], [0, 0, 0, 1, 1, 2], [0], [0]>} : vector<2x8x8xf32>, vector<2x8x16xf32>, vector<2x8x16xf32> -> vector<2x8x16xf32>
    "tpu.trace_stop"() : () -> ()
    %34 = vector.shape_cast %33 : vector<2x8x16xf32> to vector<16x16xf32>
    %35 = vector.extract_strided_slice %5 {offsets = [0, 16], sizes = [16, 16], strides = [1, 1]} : vector<16x96xf32> to vector<16x16xf32>
    %36 = vector.shape_cast %35 : vector<16x16xf32> to vector<2x8x16xf32>
    %37 = vector.extract_strided_slice %5 {offsets = [0, 48], sizes = [16, 16], strides = [1, 1]} : vector<16x96xf32> to vector<16x16xf32>
    %38 = vector.shape_cast %37 : vector<16x16xf32> to vector<2x8x16xf32>
    %39 = vector.extract_strided_slice %5 {offsets = [0, 80], sizes = [16, 16], strides = [1, 1]} : vector<16x96xf32> to vector<16x16xf32>
    %40 = vector.shape_cast %39 : vector<16x16xf32> to vector<2x8x16xf32>
    "tpu.trace_start"() <{level = 10 : i32, message = "bqd,bkd->bqk"}> : () -> ()
    %cst_14 = arith.constant dense<0.000000e+00> : vector<2x8x8xf32>
    %41 = tpu.matmul %36, %38, %cst_14 {dimension_numbers = #tpu.dot_dimension_numbers<[2], [2], [1], [1], [0, 0, 0, 1, 1, 1], [0], [0]>} : vector<2x8x16xf32>, vector<2x8x16xf32>, vector<2x8x8xf32> -> vector<2x8x8xf32>
    "tpu.trace_stop"() : () -> ()
    %cst_15 = arith.constant 2.500000e-01 : f32
    %42 = vector.broadcast %cst_15 : f32 to vector<2x8x8xf32>
    %43 = arith.mulf %41, %42 : vector<2x8x8xf32>
    %44 = vector.broadcast %11 : vector<2x1x8xf32> to vector<2x8x8xf32>
    %45 = arith.addf %43, %44 : vector<2x8x8xf32>
    %cst_16 = arith.constant dense<0xFF800000> : vector<2x8xf32>
    %46 = vector.multi_reduction <maximumf>, %45, %cst_16 [2] : vector<2x8x8xf32> to vector<2x8xf32>
    %47 = vector.shape_cast %46 : vector<2x8xf32> to vector<2x8x1xf32>
    %48 = vector.broadcast %47 : vector<2x8x1xf32> to vector<2x8x8xf32>
    %49 = arith.subf %45, %48 : vector<2x8x8xf32>
    %50 = math.exp %49 : vector<2x8x8xf32>
    %cst_17 = arith.constant dense<0.000000e+00> : vector<2x8xf32>
    %51 = vector.multi_reduction <add>, %50, %cst_17 [2] : vector<2x8x8xf32> to vector<2x8xf32>
    %52 = vector.shape_cast %51 : vector<2x8xf32> to vector<2x8x1xf32>
    %53 = tpu.reciprocal %52 {approx = true} : vector<2x8x1xf32> -> vector<2x8x1xf32>
    %54 = vector.broadcast %53 : vector<2x8x1xf32> to vector<2x8x8xf32>
    %55 = arith.mulf %50, %54 : vector<2x8x8xf32>
    "tpu.trace_start"() <{level = 10 : i32, message = "bqk,bkd->bqd"}> : () -> ()
    %cst_18 = arith.constant dense<0.000000e+00> : vector<2x8x16xf32>
    %56 = tpu.matmul %55, %40, %cst_18 {dimension_numbers = #tpu.dot_dimension_numbers<[2], [1], [1], [2], [0, 0, 0, 1, 1, 2], [0], [0]>} : vector<2x8x8xf32>, vector<2x8x16xf32>, vector<2x8x16xf32> -> vector<2x8x16xf32>
    "tpu.trace_stop"() : () -> ()
    %57 = vector.shape_cast %56 : vector<2x8x16xf32> to vector<16x16xf32>
    %58 = tpu.concatenate %34, %57 in 1 : vector<16x16xf32>, vector<16x16xf32> -> vector<16x32xf32>
    %c0_19 = arith.constant 0 : index
    %c0_20 = arith.constant 0 : index
    %59 = vector.load %arg4[%c0_19, %c0_20] : memref<32x32xf32, #tpu.memory_space<vmem>>, vector<32x32xf32>
    %cst_21 = arith.constant dense<0.000000e+00> : vector<16x32xf32>
    %60 = tpu.matmul %58, %59, %cst_21 {dimension_numbers = #tpu.dot_dimension_numbers<[1], [0], [0], [1], [0, 0, 1, 1], [], []>} : vector<16x32xf32>, vector<32x32xf32>, vector<16x32xf32> -> vector<16x32xf32>
    %c0_22 = arith.constant 0 : index
    %c0_23 = arith.constant 0 : index
    %61 = vector.load %arg5[%c0_22, %c0_23] : memref<1x32xf32, #tpu.memory_space<vmem>>, vector<1x32xf32>
    %62 = vector.broadcast %61 : vector<1x32xf32> to vector<16x32xf32>
    %63 = arith.addf %60, %62 : vector<16x32xf32>
    %64 = arith.addf %0, %63 : vector<16x32xf32>
    %c0_24 = arith.constant 0 : index
    %c0_25 = arith.constant 0 : index
    %65 = vector.load %arg6[%c0_24, %c0_25] : memref<1x32xf32, #tpu.memory_space<vmem>>, vector<1x32xf32>
    %c0_26 = arith.constant 0 : index
    %c0_27 = arith.constant 0 : index
    %66 = vector.load %arg7[%c0_26, %c0_27] : memref<1x32xf32, #tpu.memory_space<vmem>>, vector<1x32xf32>
    %cst_28 = arith.constant dense<0.000000e+00> : vector<16xf32>
    %67 = vector.multi_reduction <add>, %64, %cst_28 [1] : vector<16x32xf32> to vector<16xf32>
    %68 = vector.shape_cast %67 : vector<16xf32> to vector<16x1xf32>
    %cst_29 = arith.constant 3.200000e+01 : f32
    %69 = vector.broadcast %cst_29 : f32 to vector<16x1xf32>
    %70 = arith.divf %68, %69 : vector<16x1xf32>
    %71 = vector.broadcast %70 : vector<16x1xf32> to vector<16x32xf32>
    %72 = arith.subf %64, %71 : vector<16x32xf32>
    %73 = arith.mulf %72, %72 : vector<16x32xf32>
    %cst_30 = arith.constant dense<0.000000e+00> : vector<16xf32>
    %74 = vector.multi_reduction <add>, %73, %cst_30 [1] : vector<16x32xf32> to vector<16xf32>
    %75 = vector.shape_cast %74 : vector<16xf32> to vector<16x1xf32>
    %cst_31 = arith.constant 3.200000e+01 : f32
    %76 = vector.broadcast %cst_31 : f32 to vector<16x1xf32>
    %77 = arith.divf %75, %76 : vector<16x1xf32>
    %cst_32 = arith.constant 9.99999996E-13 : f32
    %78 = vector.broadcast %cst_32 : f32 to vector<16x1xf32>
    %79 = arith.addf %77, %78 : vector<16x1xf32>
    %80 = math.rsqrt %79 : vector<16x1xf32>
    %81 = vector.broadcast %80 : vector<16x1xf32> to vector<16x32xf32>
    %82 = arith.mulf %72, %81 : vector<16x32xf32>
    %83 = vector.broadcast %65 : vector<1x32xf32> to vector<16x32xf32>
    %84 = arith.mulf %82, %83 : vector<16x32xf32>
    %85 = vector.broadcast %66 : vector<1x32xf32> to vector<16x32xf32>
    %86 = arith.addf %84, %85 : vector<16x32xf32>
    %c0_33 = arith.constant 0 : index
    %c0_34 = arith.constant 0 : index
    %87 = vector.load %arg8[%c0_33, %c0_34] : memref<32x64xf32, #tpu.memory_space<vmem>>, vector<32x64xf32>
    %cst_35 = arith.constant dense<0.000000e+00> : vector<16x64xf32>
    %88 = tpu.matmul %86, %87, %cst_35 {dimension_numbers = #tpu.dot_dimension_numbers<[1], [0], [0], [1], [0, 0, 1, 1], [], []>} : vector<16x32xf32>, vector<32x64xf32>, vector<16x64xf32> -> vector<16x64xf32>
    %c0_36 = arith.constant 0 : index
    %c0_37 = arith.constant 0 : index
    %89 = vector.load %arg9[%c0_36, %c0_37] : memref<1x64xf32, #tpu.memory_space<vmem>>, vector<1x64xf32>
    %90 = vector.broadcast %89 : vector<1x64xf32> to vector<16x64xf32>
    %91 = arith.addf %88, %90 : vector<16x64xf32>
    %cst_38 = arith.constant 5.000000e-01 : f32
    %92 = vector.broadcast %cst_38 : f32 to vector<16x64xf32>
    %93 = arith.mulf %92, %91 : vector<16x64xf32>
    %cst_39 = arith.constant 4.471500e-02 : f32
    %94 = vector.broadcast %cst_39 : f32 to vector<16x64xf32>
    %95 = arith.mulf %94, %91 : vector<16x64xf32>
    %96 = arith.mulf %95, %91 : vector<16x64xf32>
    %97 = arith.mulf %96, %91 : vector<16x64xf32>
    %98 = arith.addf %91, %97 : vector<16x64xf32>
    %cst_40 = arith.constant 0.797884583 : f32
    %99 = vector.broadcast %cst_40 : f32 to vector<16x64xf32>
    %100 = arith.mulf %99, %98 : vector<16x64xf32>
    %101 = math.tanh %100 : vector<16x64xf32>
    %cst_41 = arith.constant 1.000000e+00 : f32
    %102 = vector.broadcast %cst_41 : f32 to vector<16x64xf32>
    %103 = arith.addf %102, %101 : vector<16x64xf32>
    %104 = arith.mulf %93, %103 : vector<16x64xf32>
    %c0_42 = arith.constant 0 : index
    %c0_43 = arith.constant 0 : index
    %105 = vector.load %arg10[%c0_42, %c0_43] : memref<64x32xf32, #tpu.memory_space<vmem>>, vector<64x32xf32>
    %cst_44 = arith.constant dense<0.000000e+00> : vector<16x32xf32>
    %106 = tpu.matmul %104, %105, %cst_44 {dimension_numbers = #tpu.dot_dimension_numbers<[1], [0], [0], [1], [0, 0, 1, 1], [], []>} : vector<16x64xf32>, vector<64x32xf32>, vector<16x32xf32> -> vector<16x32xf32>
    %c0_45 = arith.constant 0 : index
    %c0_46 = arith.constant 0 : index
    %107 = vector.load %arg11[%c0_45, %c0_46] : memref<1x32xf32, #tpu.memory_space<vmem>>, vector<1x32xf32>
    %108 = vector.broadcast %107 : vector<1x32xf32> to vector<16x32xf32>
    %109 = arith.addf %106, %108 : vector<16x32xf32>
    %110 = arith.addf %86, %109 : vector<16x32xf32>
    %c0_47 = arith.constant 0 : index
    %c0_48 = arith.constant 0 : index
    %111 = vector.load %arg12[%c0_47, %c0_48] : memref<1x32xf32, #tpu.memory_space<vmem>>, vector<1x32xf32>
    %c0_49 = arith.constant 0 : index
    %c0_50 = arith.constant 0 : index
    %112 = vector.load %arg13[%c0_49, %c0_50] : memref<1x32xf32, #tpu.memory_space<vmem>>, vector<1x32xf32>
    %cst_51 = arith.constant dense<0.000000e+00> : vector<16xf32>
    %113 = vector.multi_reduction <add>, %110, %cst_51 [1] : vector<16x32xf32> to vector<16xf32>
    %114 = vector.shape_cast %113 : vector<16xf32> to vector<16x1xf32>
    %cst_52 = arith.constant 3.200000e+01 : f32
    %115 = vector.broadcast %cst_52 : f32 to vector<16x1xf32>
    %116 = arith.divf %114, %115 : vector<16x1xf32>
    %117 = vector.broadcast %116 : vector<16x1xf32> to vector<16x32xf32>
    %118 = arith.subf %110, %117 : vector<16x32xf32>
    %119 = arith.mulf %118, %118 : vector<16x32xf32>
    %cst_53 = arith.constant dense<0.000000e+00> : vector<16xf32>
    %120 = vector.multi_reduction <add>, %119, %cst_53 [1] : vector<16x32xf32> to vector<16xf32>
    %121 = vector.shape_cast %120 : vector<16xf32> to vector<16x1xf32>
    %cst_54 = arith.constant 3.200000e+01 : f32
    %122 = vector.broadcast %cst_54 : f32 to vector<16x1xf32>
    %123 = arith.divf %121, %122 : vector<16x1xf32>
    %cst_55 = arith.constant 9.99999996E-13 : f32
    %124 = vector.broadcast %cst_55 : f32 to vector<16x1xf32>
    %125 = arith.addf %123, %124 : vector<16x1xf32>
    %126 = math.rsqrt %125 : vector<16x1xf32>
    %127 = vector.broadcast %126 : vector<16x1xf32> to vector<16x32xf32>
    %128 = arith.mulf %118, %127 : vector<16x32xf32>
    %129 = vector.broadcast %111 : vector<1x32xf32> to vector<16x32xf32>
    %130 = arith.mulf %128, %129 : vector<16x32xf32>
    %131 = vector.broadcast %112 : vector<1x32xf32> to vector<16x32xf32>
    %132 = arith.addf %130, %131 : vector<16x32xf32>
    %c0_56 = arith.constant 0 : index
    %c0_57 = arith.constant 0 : index
    %133 = vector.load %arg14[%c0_56, %c0_57] : memref<16x32xf32, #tpu.memory_space<vmem>>, vector<16x32xf32>
    tpu.vector_store %arg14[%c0_56, %c0_57], %132 {strides = array<i32>} : memref<16x32xf32, #tpu.memory_space<vmem>>, vector<16x32xf32>,
    return
  }
}

module attributes {stable_mosaic.version = 11 : i64} {
  func.func @_layernorm_kernel(%arg0: memref<16x32xf32, #tpu.memory_space<vmem>>, %arg1: memref<1x32xf32, #tpu.memory_space<vmem>>, %arg2: memref<1x32xf32, #tpu.memory_space<vmem>>, %arg3: memref<16x32xf32, #tpu.memory_space<vmem>>) attributes {dimension_semantics = [], scalar_prefetch = 0 : i64, scratch_operands = 0 : i64, tpu.core_type = #tpu.core_type<tc>} {
    %c0 = arith.constant 0 : index
    %c0_0 = arith.constant 0 : index
    %0 = vector.load %arg0[%c0, %c0_0] : memref<16x32xf32, #tpu.memory_space<vmem>>, vector<16x32xf32>
    %c0_1 = arith.constant 0 : index
    %c0_2 = arith.constant 0 : index
    %1 = vector.load %arg1[%c0_1, %c0_2] : memref<1x32xf32, #tpu.memory_space<vmem>>, vector<1x32xf32>
    %c0_3 = arith.constant 0 : index
    %c0_4 = arith.constant 0 : index
    %2 = vector.load %arg2[%c0_3, %c0_4] : memref<1x32xf32, #tpu.memory_space<vmem>>, vector<1x32xf32>
    %cst = arith.constant dense<0.000000e+00> : vector<16xf32>
    %3 = vector.multi_reduction <add>, %0, %cst [1] : vector<16x32xf32> to vector<16xf32>
    %4 = vector.shape_cast %3 : vector<16xf32> to vector<16x1xf32>
    %cst_5 = arith.constant 3.200000e+01 : f32
    %5 = vector.broadcast %cst_5 : f32 to vector<16x1xf32>
    %6 = arith.divf %4, %5 : vector<16x1xf32>
    %7 = vector.broadcast %6 : vector<16x1xf32> to vector<16x32xf32>
    %8 = arith.subf %0, %7 : vector<16x32xf32>
    %9 = arith.mulf %8, %8 : vector<16x32xf32>
    %cst_6 = arith.constant dense<0.000000e+00> : vector<16xf32>
    %10 = vector.multi_reduction <add>, %9, %cst_6 [1] : vector<16x32xf32> to vector<16xf32>
    %11 = vector.shape_cast %10 : vector<16xf32> to vector<16x1xf32>
    %cst_7 = arith.constant 3.200000e+01 : f32
    %12 = vector.broadcast %cst_7 : f32 to vector<16x1xf32>
    %13 = arith.divf %11, %12 : vector<16x1xf32>
    %cst_8 = arith.constant 9.99999974E-6 : f32
    %14 = vector.broadcast %cst_8 : f32 to vector<16x1xf32>
    %15 = arith.addf %13, %14 : vector<16x1xf32>
    %16 = math.rsqrt %15 : vector<16x1xf32>
    %17 = vector.broadcast %16 : vector<16x1xf32> to vector<16x32xf32>
    %18 = arith.mulf %8, %17 : vector<16x32xf32>
    %19 = vector.broadcast %1 : vector<1x32xf32> to vector<16x32xf32>
    %20 = arith.mulf %18, %19 : vector<16x32xf32>
    %21 = vector.broadcast %2 : vector<1x32xf32> to vector<16x32xf32>
    %22 = arith.addf %20, %21 : vector<16x32xf32>
    %c0_9 = arith.constant 0 : index
    %c0_10 = arith.constant 0 : index
    %23 = vector.load %arg3[%c0_9, %c0_10] : memref<16x32xf32, #tpu.memory_space<vmem>>, vector<16x32xf32>
    tpu.vector_store %arg3[%c0_9, %c0_10], %22 {strides = array<i32>} : memref<16x32xf32, #tpu.memory_space<vmem>>, vector<16x32xf32>,
    return
  }
}

module attributes {stable_mosaic.version = 11 : i64} {
  func.func @_decoder_layer_kernel(%arg0: memref<16x32xf32, #tpu.memory_space<vmem>>, %arg1: memref<2x32xf32, #tpu.memory_space<vmem>>, %arg2: memref<2x8xf32, #tpu.memory_space<vmem>>, %arg3: memref<32x96xf32, #tpu.memory_space<vmem>>, %arg4: memref<1x96xf32, #tpu.memory_space<vmem>>, %arg5: memref<32x32xf32, #tpu.memory_space<vmem>>, %arg6: memref<1x32xf32, #tpu.memory_space<vmem>>, %arg7: memref<1x32xf32, #tpu.memory_space<vmem>>, %arg8: memref<1x32xf32, #tpu.memory_space<vmem>>, %arg9: memref<32x32xf32, #tpu.memory_space<vmem>>, %arg10: memref<1x32xf32, #tpu.memory_space<vmem>>, %arg11: memref<32x32xf32, #tpu.memory_space<vmem>>, %arg12: memref<1x32xf32, #tpu.memory_space<vmem>>, %arg13: memref<1x32xf32, #tpu.memory_space<vmem>>, %arg14: memref<1x32xf32, #tpu.memory_space<vmem>>, %arg15: memref<32x64xf32, #tpu.memory_space<vmem>>, %arg16: memref<1x64xf32, #tpu.memory_space<vmem>>, %arg17: memref<64x32xf32, #tpu.memory_space<vmem>>, %arg18: memref<1x32xf32, #tpu.memory_space<vmem>>, %arg19: memref<1x32xf32, #tpu.memory_space<vmem>>, %arg20: memref<1x32xf32, #tpu.memory_space<vmem>>, %arg21: memref<16x32xf32, #tpu.memory_space<vmem>>) attributes {dimension_semantics = [], scalar_prefetch = 0 : i64, scratch_operands = 0 : i64, tpu.core_type = #tpu.core_type<tc>} {
    %c0 = arith.constant 0 : index
    %c0_0 = arith.constant 0 : index
    %0 = vector.load %arg0[%c0, %c0_0] : memref<16x32xf32, #tpu.memory_space<vmem>>, vector<16x32xf32>
    %1 = tpu.iota {dimensions = array<i32: 0>} : vector<8x8xi32>
    %2 = tpu.iota {dimensions = array<i32: 1>} : vector<8x8xi32>
    %3 = arith.cmpi sge, %1, %2 : vector<8x8xi32>
    %cst = arith.constant 0.000000e+00 : f32
    %cst_1 = arith.constant -1.000000e+09 : f32
    %4 = vector.broadcast %cst : f32 to vector<8x8xf32>
    %5 = vector.broadcast %cst_1 : f32 to vector<8x8xf32>
    %6 = arith.select %3, %4, %5 : vector<8x8xi1>, vector<8x8xf32>
    %c0_2 = arith.constant 0 : index
    %c0_3 = arith.constant 0 : index
    %7 = vector.load %arg2[%c0_2, %c0_3] : memref<2x8xf32, #tpu.memory_space<vmem>>, vector<2x8xf32>
    %cst_4 = arith.constant 1.000000e+00 : f32
    %8 = vector.broadcast %cst_4 : f32 to vector<2x8xf32>
    %9 = arith.subf %8, %7 : vector<2x8xf32>
    %cst_5 = arith.constant -1.000000e+09 : f32
    %10 = vector.broadcast %cst_5 : f32 to vector<2x8xf32>
    %11 = arith.mulf %9, %10 : vector<2x8xf32>
    %12 = vector.shape_cast %6 : vector<8x8xf32> to vector<1x8x8xf32>
    %13 = vector.shape_cast %11 : vector<2x8xf32> to vector<2x1x8xf32>
    %14 = vector.broadcast %12 : vector<1x8x8xf32> to vector<2x8x8xf32>
    %15 = vector.broadcast %13 : vector<2x1x8xf32> to vector<2x8x8xf32>
    %16 = arith.addf %14, %15 : vector<2x8x8xf32>
    %c0_6 = arith.constant 0 : index
    %c0_7 = arith.constant 0 : index
    %17 = vector.load %arg3[%c0_6, %c0_7] : memref<32x96xf32, #tpu.memory_space<vmem>>, vector<32x96xf32>
    %cst_8 = arith.constant dense<0.000000e+00> : vector<16x96xf32>
    %18 = tpu.matmul %0, %17, %cst_8 {dimension_numbers = #tpu.dot_dimension_numbers<[1], [0], [0], [1], [0, 0, 1, 1], [], []>} : vector<16x32xf32>, vector<32x96xf32>, vector<16x96xf32> -> vector<16x96xf32>
    %c0_9 = arith.constant 0 : index
    %c0_10 = arith.constant 0 : index
    %19 = vector.load %arg4[%c0_9, %c0_10] : memref<1x96xf32, #tpu.memory_space<vmem>>, vector<1x96xf32>
    %20 = vector.broadcast %19 : vector<1x96xf32> to vector<16x96xf32>
    %21 = arith.addf %18, %20 : vector<16x96xf32>
    %22 = vector.extract_strided_slice %21 {offsets = [0, 0], sizes = [16, 16], strides = [1, 1]} : vector<16x96xf32> to vector<16x16xf32>
    %23 = vector.shape_cast %22 : vector<16x16xf32> to vector<2x8x16xf32>
    %24 = vector.extract_strided_slice %21 {offsets = [0, 32], sizes = [16, 16], strides = [1, 1]} : vector<16x96xf32> to vector<16x16xf32>
    %25 = vector.shape_cast %24 : vector<16x16xf32> to vector<2x8x16xf32>
    %26 = vector.extract_strided_slice %21 {offsets = [0, 64], sizes = [16, 16], strides = [1, 1]} : vector<16x96xf32> to vector<16x16xf32>
    %27 = vector.shape_cast %26 : vector<16x16xf32> to vector<2x8x16xf32>
    "tpu.trace_start"() <{level = 10 : i32, message = "bqd,bkd->bqk"}> : () -> ()
    %cst_11 = arith.constant dense<0.000000e+00> : vector<2x8x8xf32>
    %28 = tpu.matmul %23, %25, %cst_11 {dimension_numbers = #tpu.dot_dimension_numbers<[2], [2], [1], [1], [0, 0, 0, 1, 1, 1], [0], [0]>} : vector<2x8x16xf32>, vector<2x8x16xf32>, vector<2x8x8xf32> -> vector<2x8x8xf32>
    "tpu.trace_stop"() : () -> ()
    %cst_12 = arith.constant 2.500000e-01 : f32
    %29 = vector.broadcast %cst_12 : f32 to vector<2x8x8xf32>
    %30 = arith.mulf %28, %29 : vector<2x8x8xf32>
    %31 = arith.addf %30, %16 : vector<2x8x8xf32>
    %cst_13 = arith.constant dense<0xFF800000> : vector<2x8xf32>
    %32 = vector.multi_reduction <maximumf>, %31, %cst_13 [2] : vector<2x8x8xf32> to vector<2x8xf32>
    %33 = vector.shape_cast %32 : vector<2x8xf32> to vector<2x8x1xf32>
    %34 = vector.broadcast %33 : vector<2x8x1xf32> to vector<2x8x8xf32>
    %35 = arith.subf %31, %34 : vector<2x8x8xf32>
    %36 = math.exp %35 : vector<2x8x8xf32>
    %cst_14 = arith.constant dense<0.000000e+00> : vector<2x8xf32>
    %37 = vector.multi_reduction <add>, %36, %cst_14 [2] : vector<2x8x8xf32> to vector<2x8xf32>
    %38 = vector.shape_cast %37 : vector<2x8xf32> to vector<2x8x1xf32>
    %39 = tpu.reciprocal %38 {approx = true} : vector<2x8x1xf32> -> vector<2x8x1xf32>
    %40 = vector.broadcast %39 : vector<2x8x1xf32> to vector<2x8x8xf32>
    %41 = arith.mulf %36, %40 : vector<2x8x8xf32>
    "tpu.trace_start"() <{level = 10 : i32, message = "bqk,bkd->bqd"}> : () -> ()
    %cst_15 = arith.constant dense<0.000000e+00> : vector<2x8x16xf32>
    %42 = tpu.matmul %41, %27, %cst_15 {dimension_numbers = #tpu.dot_dimension_numbers<[2], [1], [1], [2], [0, 0, 0, 1, 1, 2], [0], [0]>} : vector<2x8x8xf32>, vector<2x8x16xf32>, vector<2x8x16xf32> -> vector<2x8x16xf32>
    "tpu.trace_stop"() : () -> ()
    %43 = vector.shape_cast %42 : vector<2x8x16xf32> to vector<16x16xf32>
    %44 = vector.extract_strided_slice %21 {offsets = [0, 16], sizes = [16, 16], strides = [1, 1]} : vector<16x96xf32> to vector<16x16xf32>
    %45 = vector.shape_cast %44 : vector<16x16xf32> to vector<2x8x16xf32>
    %46 = vector.extract_strided_slice %21 {offsets = [0, 48], sizes = [16, 16], strides = [1, 1]} : vector<16x96xf32> to vector<16x16xf32>
    %47 = vector.shape_cast %46 : vector<16x16xf32> to vector<2x8x16xf32>
    %48 = vector.extract_strided_slice %21 {offsets = [0, 80], sizes = [16, 16], strides = [1, 1]} : vector<16x96xf32> to vector<16x16xf32>
    %49 = vector.shape_cast %48 : vector<16x16xf32> to vector<2x8x16xf32>
    "tpu.trace_start"() <{level = 10 : i32, message = "bqd,bkd->bqk"}> : () -> ()
    %cst_16 = arith.constant dense<0.000000e+00> : vector<2x8x8xf32>
    %50 = tpu.matmul %45, %47, %cst_16 {dimension_numbers = #tpu.dot_dimension_numbers<[2], [2], [1], [1], [0, 0, 0, 1, 1, 1], [0], [0]>} : vector<2x8x16xf32>, vector<2x8x16xf32>, vector<2x8x8xf32> -> vector<2x8x8xf32>
    "tpu.trace_stop"() : () -> ()
    %cst_17 = arith.constant 2.500000e-01 : f32
    %51 = vector.broadcast %cst_17 : f32 to vector<2x8x8xf32>
    %52 = arith.mulf %50, %51 : vector<2x8x8xf32>
    %53 = arith.addf %52, %16 : vector<2x8x8xf32>
    %cst_18 = arith.constant dense<0xFF800000> : vector<2x8xf32>
    %54 = vector.multi_reduction <maximumf>, %53, %cst_18 [2] : vector<2x8x8xf32> to vector<2x8xf32>
    %55 = vector.shape_cast %54 : vector<2x8xf32> to vector<2x8x1xf32>
    %56 = vector.broadcast %55 : vector<2x8x1xf32> to vector<2x8x8xf32>
    %57 = arith.subf %53, %56 : vector<2x8x8xf32>
    %58 = math.exp %57 : vector<2x8x8xf32>
    %cst_19 = arith.constant dense<0.000000e+00> : vector<2x8xf32>
    %59 = vector.multi_reduction <add>, %58, %cst_19 [2] : vector<2x8x8xf32> to vector<2x8xf32>
    %60 = vector.shape_cast %59 : vector<2x8xf32> to vector<2x8x1xf32>
    %61 = tpu.reciprocal %60 {approx = true} : vector<2x8x1xf32> -> vector<2x8x1xf32>
    %62 = vector.broadcast %61 : vector<2x8x1xf32> to vector<2x8x8xf32>
    %63 = arith.mulf %58, %62 : vector<2x8x8xf32>
    "tpu.trace_start"() <{level = 10 : i32, message = "bqk,bkd->bqd"}> : () -> ()
    %cst_20 = arith.constant dense<0.000000e+00> : vector<2x8x16xf32>
    %64 = tpu.matmul %63, %49, %cst_20 {dimension_numbers = #tpu.dot_dimension_numbers<[2], [1], [1], [2], [0, 0, 0, 1, 1, 2], [0], [0]>} : vector<2x8x8xf32>, vector<2x8x16xf32>, vector<2x8x16xf32> -> vector<2x8x16xf32>
    "tpu.trace_stop"() : () -> ()
    %65 = vector.shape_cast %64 : vector<2x8x16xf32> to vector<16x16xf32>
    %66 = tpu.concatenate %43, %65 in 1 : vector<16x16xf32>, vector<16x16xf32> -> vector<16x32xf32>
    %c0_21 = arith.constant 0 : index
    %c0_22 = arith.constant 0 : index
    %67 = vector.load %arg5[%c0_21, %c0_22] : memref<32x32xf32, #tpu.memory_space<vmem>>, vector<32x32xf32>
    %cst_23 = arith.constant dense<0.000000e+00> : vector<16x32xf32>
    %68 = tpu.matmul %66, %67, %cst_23 {dimension_numbers = #tpu.dot_dimension_numbers<[1], [0], [0], [1], [0, 0, 1, 1], [], []>} : vector<16x32xf32>, vector<32x32xf32>, vector<16x32xf32> -> vector<16x32xf32>
    %c0_24 = arith.constant 0 : index
    %c0_25 = arith.constant 0 : index
    %69 = vector.load %arg6[%c0_24, %c0_25] : memref<1x32xf32, #tpu.memory_space<vmem>>, vector<1x32xf32>
    %70 = vector.broadcast %69 : vector<1x32xf32> to vector<16x32xf32>
    %71 = arith.addf %68, %70 : vector<16x32xf32>
    %72 = arith.addf %0, %71 : vector<16x32xf32>
    %c0_26 = arith.constant 0 : index
    %c0_27 = arith.constant 0 : index
    %73 = vector.load %arg7[%c0_26, %c0_27] : memref<1x32xf32, #tpu.memory_space<vmem>>, vector<1x32xf32>
    %c0_28 = arith.constant 0 : index
    %c0_29 = arith.constant 0 : index
    %74 = vector.load %arg8[%c0_28, %c0_29] : memref<1x32xf32, #tpu.memory_space<vmem>>, vector<1x32xf32>
    %cst_30 = arith.constant dense<0.000000e+00> : vector<16xf32>
    %75 = vector.multi_reduction <add>, %72, %cst_30 [1] : vector<16x32xf32> to vector<16xf32>
    %76 = vector.shape_cast %75 : vector<16xf32> to vector<16x1xf32>
    %cst_31 = arith.constant 3.200000e+01 : f32
    %77 = vector.broadcast %cst_31 : f32 to vector<16x1xf32>
    %78 = arith.divf %76, %77 : vector<16x1xf32>
    %79 = vector.broadcast %78 : vector<16x1xf32> to vector<16x32xf32>
    %80 = arith.subf %72, %79 : vector<16x32xf32>
    %81 = arith.mulf %80, %80 : vector<16x32xf32>
    %cst_32 = arith.constant dense<0.000000e+00> : vector<16xf32>
    %82 = vector.multi_reduction <add>, %81, %cst_32 [1] : vector<16x32xf32> to vector<16xf32>
    %83 = vector.shape_cast %82 : vector<16xf32> to vector<16x1xf32>
    %cst_33 = arith.constant 3.200000e+01 : f32
    %84 = vector.broadcast %cst_33 : f32 to vector<16x1xf32>
    %85 = arith.divf %83, %84 : vector<16x1xf32>
    %cst_34 = arith.constant 9.99999974E-6 : f32
    %86 = vector.broadcast %cst_34 : f32 to vector<16x1xf32>
    %87 = arith.addf %85, %86 : vector<16x1xf32>
    %88 = math.rsqrt %87 : vector<16x1xf32>
    %89 = vector.broadcast %88 : vector<16x1xf32> to vector<16x32xf32>
    %90 = arith.mulf %80, %89 : vector<16x32xf32>
    %91 = vector.broadcast %73 : vector<1x32xf32> to vector<16x32xf32>
    %92 = arith.mulf %90, %91 : vector<16x32xf32>
    %93 = vector.broadcast %74 : vector<1x32xf32> to vector<16x32xf32>
    %94 = arith.addf %92, %93 : vector<16x32xf32>
    %c0_35 = arith.constant 0 : index
    %c0_36 = arith.constant 0 : index
    %95 = vector.load %arg1[%c0_35, %c0_36] : memref<2x32xf32, #tpu.memory_space<vmem>>, vector<2x32xf32>
    %c0_37 = arith.constant 0 : index
    %c0_38 = arith.constant 0 : index
    %96 = vector.load %arg9[%c0_37, %c0_38] : memref<32x32xf32, #tpu.memory_space<vmem>>, vector<32x32xf32>
    %cst_39 = arith.constant dense<0.000000e+00> : vector<2x32xf32>
    %97 = tpu.matmul %95, %96, %cst_39 {dimension_numbers = #tpu.dot_dimension_numbers<[1], [0], [0], [1], [0, 0, 1, 1], [], []>} : vector<2x32xf32>, vector<32x32xf32>, vector<2x32xf32> -> vector<2x32xf32>
    %c0_40 = arith.constant 0 : index
    %c0_41 = arith.constant 0 : index
    %98 = vector.load %arg10[%c0_40, %c0_41] : memref<1x32xf32, #tpu.memory_space<vmem>>, vector<1x32xf32>
    %99 = vector.broadcast %98 : vector<1x32xf32> to vector<2x32xf32>
    %100 = arith.addf %97, %99 : vector<2x32xf32>
    %c0_42 = arith.constant 0 : index
    %c0_43 = arith.constant 0 : index
    %101 = vector.load %arg11[%c0_42, %c0_43] : memref<32x32xf32, #tpu.memory_space<vmem>>, vector<32x32xf32>
    %cst_44 = arith.constant dense<0.000000e+00> : vector<2x32xf32>
    %102 = tpu.matmul %100, %101, %cst_44 {dimension_numbers = #tpu.dot_dimension_numbers<[1], [0], [0], [1], [0, 0, 1, 1], [], []>} : vector<2x32xf32>, vector<32x32xf32>, vector<2x32xf32> -> vector<2x32xf32>
    %c0_45 = arith.constant 0 : index
    %c0_46 = arith.constant 0 : index
    %103 = vector.load %arg12[%c0_45, %c0_46] : memref<1x32xf32, #tpu.memory_space<vmem>>, vector<1x32xf32>
    %104 = vector.broadcast %103 : vector<1x32xf32> to vector<2x32xf32>
    %105 = arith.addf %102, %104 : vector<2x32xf32>
    %106 = vector.shape_cast %105 : vector<2x32xf32> to vector<2x1x32xf32>
    %107 = vector.shape_cast %106 : vector<2x1x32xf32> to vector<2x1x32xf32>
    %108 = vector.broadcast %107 : vector<2x1x32xf32> to vector<2x8x32xf32>
    %109 = vector.shape_cast %108 : vector<2x8x32xf32> to vector<16x32xf32>
    %110 = arith.addf %94, %109 : vector<16x32xf32>
    %c0_47 = arith.constant 0 : index
    %c0_48 = arith.constant 0 : index
    %111 = vector.load %arg13[%c0_47, %c0_48] : memref<1x32xf32, #tpu.memory_space<vmem>>, vector<1x32xf32>
    %c0_49 = arith.constant 0 : index
    %c0_50 = arith.constant 0 : index
    %112 = vector.load %arg14[%c0_49, %c0_50] : memref<1x32xf32, #tpu.memory_space<vmem>>, vector<1x32xf32>
    %cst_51 = arith.constant dense<0.000000e+00> : vector<16xf32>
    %113 = vector.multi_reduction <add>, %110, %cst_51 [1] : vector<16x32xf32> to vector<16xf32>
    %114 = vector.shape_cast %113 : vector<16xf32> to vector<16x1xf32>
    %cst_52 = arith.constant 3.200000e+01 : f32
    %115 = vector.broadcast %cst_52 : f32 to vector<16x1xf32>
    %116 = arith.divf %114, %115 : vector<16x1xf32>
    %117 = vector.broadcast %116 : vector<16x1xf32> to vector<16x32xf32>
    %118 = arith.subf %110, %117 : vector<16x32xf32>
    %119 = arith.mulf %118, %118 : vector<16x32xf32>
    %cst_53 = arith.constant dense<0.000000e+00> : vector<16xf32>
    %120 = vector.multi_reduction <add>, %119, %cst_53 [1] : vector<16x32xf32> to vector<16xf32>
    %121 = vector.shape_cast %120 : vector<16xf32> to vector<16x1xf32>
    %cst_54 = arith.constant 3.200000e+01 : f32
    %122 = vector.broadcast %cst_54 : f32 to vector<16x1xf32>
    %123 = arith.divf %121, %122 : vector<16x1xf32>
    %cst_55 = arith.constant 9.99999974E-6 : f32
    %124 = vector.broadcast %cst_55 : f32 to vector<16x1xf32>
    %125 = arith.addf %123, %124 : vector<16x1xf32>
    %126 = math.rsqrt %125 : vector<16x1xf32>
    %127 = vector.broadcast %126 : vector<16x1xf32> to vector<16x32xf32>
    %128 = arith.mulf %118, %127 : vector<16x32xf32>
    %129 = vector.broadcast %111 : vector<1x32xf32> to vector<16x32xf32>
    %130 = arith.mulf %128, %129 : vector<16x32xf32>
    %131 = vector.broadcast %112 : vector<1x32xf32> to vector<16x32xf32>
    %132 = arith.addf %130, %131 : vector<16x32xf32>
    %c0_56 = arith.constant 0 : index
    %c0_57 = arith.constant 0 : index
    %133 = vector.load %arg15[%c0_56, %c0_57] : memref<32x64xf32, #tpu.memory_space<vmem>>, vector<32x64xf32>
    %cst_58 = arith.constant dense<0.000000e+00> : vector<16x64xf32>
    %134 = tpu.matmul %132, %133, %cst_58 {dimension_numbers = #tpu.dot_dimension_numbers<[1], [0], [0], [1], [0, 0, 1, 1], [], []>} : vector<16x32xf32>, vector<32x64xf32>, vector<16x64xf32> -> vector<16x64xf32>
    %c0_59 = arith.constant 0 : index
    %c0_60 = arith.constant 0 : index
    %135 = vector.load %arg16[%c0_59, %c0_60] : memref<1x64xf32, #tpu.memory_space<vmem>>, vector<1x64xf32>
    %136 = vector.broadcast %135 : vector<1x64xf32> to vector<16x64xf32>
    %137 = arith.addf %134, %136 : vector<16x64xf32>
    %cst_61 = arith.constant 5.000000e-01 : f32
    %138 = vector.broadcast %cst_61 : f32 to vector<16x64xf32>
    %139 = arith.mulf %138, %137 : vector<16x64xf32>
    %cst_62 = arith.constant 4.471500e-02 : f32
    %140 = vector.broadcast %cst_62 : f32 to vector<16x64xf32>
    %141 = arith.mulf %140, %137 : vector<16x64xf32>
    %142 = arith.mulf %141, %137 : vector<16x64xf32>
    %143 = arith.mulf %142, %137 : vector<16x64xf32>
    %144 = arith.addf %137, %143 : vector<16x64xf32>
    %cst_63 = arith.constant 0.797884583 : f32
    %145 = vector.broadcast %cst_63 : f32 to vector<16x64xf32>
    %146 = arith.mulf %145, %144 : vector<16x64xf32>
    %147 = math.tanh %146 : vector<16x64xf32>
    %cst_64 = arith.constant 1.000000e+00 : f32
    %148 = vector.broadcast %cst_64 : f32 to vector<16x64xf32>
    %149 = arith.addf %148, %147 : vector<16x64xf32>
    %150 = arith.mulf %139, %149 : vector<16x64xf32>
    %c0_65 = arith.constant 0 : index
    %c0_66 = arith.constant 0 : index
    %151 = vector.load %arg17[%c0_65, %c0_66] : memref<64x32xf32, #tpu.memory_space<vmem>>, vector<64x32xf32>
    %cst_67 = arith.constant dense<0.000000e+00> : vector<16x32xf32>
    %152 = tpu.matmul %150, %151, %cst_67 {dimension_numbers = #tpu.dot_dimension_numbers<[1], [0], [0], [1], [0, 0, 1, 1], [], []>} : vector<16x64xf32>, vector<64x32xf32>, vector<16x32xf32> -> vector<16x32xf32>
    %c0_68 = arith.constant 0 : index
    %c0_69 = arith.constant 0 : index
    %153 = vector.load %arg18[%c0_68, %c0_69] : memref<1x32xf32, #tpu.memory_space<vmem>>, vector<1x32xf32>
    %154 = vector.broadcast %153 : vector<1x32xf32> to vector<16x32xf32>
    %155 = arith.addf %152, %154 : vector<16x32xf32>
    %156 = arith.addf %132, %155 : vector<16x32xf32>
    %c0_70 = arith.constant 0 : index
    %c0_71 = arith.constant 0 : index
    %157 = vector.load %arg19[%c0_70, %c0_71] : memref<1x32xf32, #tpu.memory_space<vmem>>, vector<1x32xf32>
    %c0_72 = arith.constant 0 : index
    %c0_73 = arith.constant 0 : index
    %158 = vector.load %arg20[%c0_72, %c0_73] : memref<1x32xf32, #tpu.memory_space<vmem>>, vector<1x32xf32>
    %cst_74 = arith.constant dense<0.000000e+00> : vector<16xf32>
    %159 = vector.multi_reduction <add>, %156, %cst_74 [1] : vector<16x32xf32> to vector<16xf32>
    %160 = vector.shape_cast %159 : vector<16xf32> to vector<16x1xf32>
    %cst_75 = arith.constant 3.200000e+01 : f32
    %161 = vector.broadcast %cst_75 : f32 to vector<16x1xf32>
    %162 = arith.divf %160, %161 : vector<16x1xf32>
    %163 = vector.broadcast %162 : vector<16x1xf32> to vector<16x32xf32>
    %164 = arith.subf %156, %163 : vector<16x32xf32>
    %165 = arith.mulf %164, %164 : vector<16x32xf32>
    %cst_76 = arith.constant dense<0.000000e+00> : vector<16xf32>
    %166 = vector.multi_reduction <add>, %165, %cst_76 [1] : vector<16x32xf32> to vector<16xf32>
    %167 = vector.shape_cast %166 : vector<16xf32> to vector<16x1xf32>
    %cst_77 = arith.constant 3.200000e+01 : f32
    %168 = vector.broadcast %cst_77 : f32 to vector<16x1xf32>
    %169 = arith.divf %167, %168 : vector<16x1xf32>
    %cst_78 = arith.constant 9.99999974E-6 : f32
    %170 = vector.broadcast %cst_78 : f32 to vector<16x1xf32>
    %171 = arith.addf %169, %170 : vector<16x1xf32>
    %172 = math.rsqrt %171 : vector<16x1xf32>
    %173 = vector.broadcast %172 : vector<16x1xf32> to vector<16x32xf32>
    %174 = arith.mulf %164, %173 : vector<16x32xf32>
    %175 = vector.broadcast %157 : vector<1x32xf32> to vector<16x32xf32>
    %176 = arith.mulf %174, %175 : vector<16x32xf32>
    %177 = vector.broadcast %158 : vector<1x32xf32> to vector<16x32xf32>
    %178 = arith.addf %176, %177 : vector<16x32xf32>
    %c0_79 = arith.constant 0 : index
    %c0_80 = arith.constant 0 : index
    %179 = vector.load %arg21[%c0_79, %c0_80] : memref<16x32xf32, #tpu.memory_space<vmem>>, vector<16x32xf32>
    tpu.vector_store %arg21[%c0_79, %c0_80], %178 {strides = array<i32>} : memref<16x32xf32, #tpu.memory_space<vmem>>, vector<16x32xf32>,
    return
  }
}

module attributes {stable_mosaic.version = 11 : i64} {
  func.func @_linear_kernel(%arg0: memref<16x32xf32, #tpu.memory_space<vmem>>, %arg1: memref<32x3xf32, #tpu.memory_space<vmem>>, %arg2: memref<1x3xf32, #tpu.memory_space<vmem>>, %arg3: memref<16x3xf32, #tpu.memory_space<vmem>>) attributes {dimension_semantics = [], scalar_prefetch = 0 : i64, scratch_operands = 0 : i64, tpu.core_type = #tpu.core_type<tc>} {
    %c0 = arith.constant 0 : index
    %c0_0 = arith.constant 0 : index
    %0 = vector.load %arg0[%c0, %c0_0] : memref<16x32xf32, #tpu.memory_space<vmem>>, vector<16x32xf32>
    %c0_1 = arith.constant 0 : index
    %c0_2 = arith.constant 0 : index
    %1 = vector.load %arg1[%c0_1, %c0_2] : memref<32x3xf32, #tpu.memory_space<vmem>>, vector<32x3xf32>
    %cst = arith.constant dense<0.000000e+00> : vector<16x3xf32>
    %2 = tpu.matmul %0, %1, %cst {dimension_numbers = #tpu.dot_dimension_numbers<[1], [0], [0], [1], [0, 0, 1, 1], [], []>} : vector<16x32xf32>, vector<32x3xf32>, vector<16x3xf32> -> vector<16x3xf32>
    %c0_3 = arith.constant 0 : index
    %c0_4 = arith.constant 0 : index
    %3 = vector.load %arg2[%c0_3, %c0_4] : memref<1x3xf32, #tpu.memory_space<vmem>>, vector<1x3xf32>
    %4 = vector.broadcast %3 : vector<1x3xf32> to vector<16x3xf32>
    %5 = arith.addf %2, %4 : vector<16x3xf32>
    %c0_5 = arith.constant 0 : index
    %c0_6 = arith.constant 0 : index
    %6 = vector.load %arg3[%c0_5, %c0_6] : memref<16x3xf32, #tpu.memory_space<vmem>>, vector<16x3xf32>
    tpu.vector_store %arg3[%c0_5, %c0_6], %5 {strides = array<i32>} : memref<16x3xf32, #tpu.memory_space<vmem>>, vector<16x3xf32>,
    return
  }
}

</mosaic_0001>

<llo_original>
// kernel: classifier_forward.10
$region0: #{classifier_forward.10}
  #allocation0 [shape = 'u32[]', space=smem, size = 0x4, offset = 0x4, fixed_abs, tag = 'smem constant byte address 0x4 - core index']
  #allocation1 [shape = 'u32[144,128]{1,0:T(1,128)}', space=vmem, size = 0x12000, scoped, tag = 'internal scratch']
  %s0 = inlined_call_operand.vmem [shape: f32[16,32], index: 0, kind: input, shape index: {}]
  %s1 = inlined_call_operand.vmem [shape: f32[1,32], index: 1, kind: input, shape index: {}]
  %s2 = inlined_call_operand.vmem [shape: f32[1,32], index: 2, kind: input, shape index: {}]
  %s3 = inlined_call_operand.vmem [shape: f32[16,32], index: 3, kind: output, shape index: {}]
  %s4 = sld [smem:[#allocation0]]
  $region22: #{classifier_forward.10} parent=0
    _
  %s6 = ssub.s32 1, %s4
  %s7 = scalar_select 0, %s6, %s4
  // Predicated region
  $region2: #{classifier_forward.10} parent=0 // pred_check
    _
  $region3: #{classifier_forward.10} parent=0 // pred_check_branch
    %9 = sbr.rel (0) target = $region5
  $region4: #{classifier_forward.10} parent=0 // pred_region
    _
  $region5: #{classifier_forward.10} parent=0 // pred_fallthru
    _
  // Predicated region
  $region6: #{classifier_forward.10} parent=0 // pred_check
    _
  $region7: #{classifier_forward.10} parent=0 // pred_check_branch
    %11 = sbr.rel (0) target = $region9
  $region8: #{classifier_forward.10} parent=0 // pred_region
    _
  $region9: #{classifier_forward.10} parent=0 // pred_fallthru
    _
  // Predicated region
  $region10: #{classifier_forward.10} parent=0 // pred_check
    _
  $region11: #{classifier_forward.10} parent=0 // pred_check_branch
    %13 = sbr.rel (0) target = $region13
  $region12: #{classifier_forward.10} parent=0 // pred_region
    _
  $region13: #{classifier_forward.10} parent=0 // pred_fallthru
    _
  %v14 = vld [vmem:[%s0] sm:$0xff]
  %v15 = vld [vmem:[%s0 + $0x8] sm:$0xff]
  %v16 = vld [vmem:[%s1] sm:$0x1]
  %v17 = vld [vmem:[%s2] sm:$0x1]
  %vm18 = vcmask 261120
  %v19 = vsel %vm18, %v14, 0.0
  %20 = vadd.xlane.f32.xlu0 %v19
  %v21 = vpop.xlane.xlu0 %20
  %v22 = vsel %vm18, %v15, 0.0
  %23 = vadd.xlane.f32.xlu0 %v22
  %v24 = vpop.xlane.xlu0 %23
  %v25 = vrcp.pop 32.0
  %v26 = vmul.f32 %v21, %v25
  %v27 = vmul.f32 %v24, %v25
  %v28 = vsub.f32 %v14, %v26
  %v29 = vsub.f32 %v15, %v27
  %v30 = vmul.f32 %v28, %v28
  %v31 = vmul.f32 %v29, %v29
  %v32 = vsel %vm18, %v30, 0.0
  %33 = vadd.xlane.f32.xlu0 %v32
  %v34 = vpop.xlane.xlu0 %33
  %v35 = vsel %vm18, %v31, 0.0
  %36 = vadd.xlane.f32.xlu0 %v35
  %v37 = vpop.xlane.xlu0 %36
  %v38 = vmul.f32 %v34, %v25
  %v39 = vmul.f32 %v37, %v25
  %v40 = vadd.f32 %v38, 1e-05
  %v41 = vadd.f32 %v39, 1e-05
  %v42 = vrsqrt.pop %v40
  %v43 = vrsqrt.pop %v41
  %v44 = vmul.f32 %v28, %v42
  %v45 = vmul.f32 %v29, %v43
  %v47 = vlaneseq
  %v48 = vshrl.u32 %v47, 7
  %v49 = vsub.s32 0, %v48
  %v50 = vrot.slane %v16, %v49
  %v52 = vmul.f32 %v44, %v50
  %v53 = vmul.f32 %v45, %v50
  %v55 = vlaneseq
  %v56 = vshrl.u32 %v55, 7
  %v57 = vsub.s32 0, %v56
  %v58 = vrot.slane %v17, %v57
  %v60 = vadd.f32 %v52, %v58
  %v61 = vadd.f32 %v53, %v58
  %62 = vst.msk [vmem:[%s3] sm:$0xff] %vm18, %v60
  %63 = vst.msk [vmem:[%s3 + $0x8] sm:$0xff] %vm18, %v61
  // Predicated region
  $region14: #{classifier_forward.10} parent=0 // pred_check
    _
  $region15: #{classifier_forward.10} parent=0 // pred_check_branch
    %65 = sbr.rel (0) target = $region17
  $region16: #{classifier_forward.10} parent=0 // pred_region
    _
  $region17: #{classifier_forward.10} parent=0 // pred_fallthru
    _
  // Predicated region
  $region18: #{classifier_forward.10} parent=0 // pred_check
    _
  $region19: #{classifier_forward.10} parent=0 // pred_check_branch
    %67 = sbr.rel (0) target = $region21
  $region20: #{classifier_forward.10} parent=0 // pred_region
    _
  $region21: #{classifier_forward.10} parent=0 // pred_fallthru
    _

// kernel: classifier_forward.7
$region0: #{classifier_forward.7}
  #allocation0 [shape = 'u32[]', space=smem, size = 0x4, offset = 0x4, fixed_abs, tag = 'smem constant byte address 0x4 - core index']
  #allocation1 [shape = 'u32[144,128]{1,0:T(1,128)}', space=vmem, size = 0x12000, scoped, tag = 'internal scratch']
  %s0 = inlined_call_operand.vmem [shape: f32[16,32], index: 0, kind: input, shape index: {}]
  %s1 = inlined_call_operand.vmem [shape: f32[1,32], index: 1, kind: input, shape index: {}]
  %s2 = inlined_call_operand.vmem [shape: f32[1,32], index: 2, kind: input, shape index: {}]
  %s3 = inlined_call_operand.vmem [shape: f32[16,32], index: 3, kind: output, shape index: {}]
  %s4 = sld [smem:[#allocation0]]
  $region22: #{classifier_forward.7} parent=0
    _
  %s6 = ssub.s32 1, %s4
  %s7 = scalar_select 0, %s6, %s4
  // Predicated region
  $region2: #{classifier_forward.7} parent=0 // pred_check
    _
  $region3: #{classifier_forward.7} parent=0 // pred_check_branch
    %9 = sbr.rel (0) target = $region5
  $region4: #{classifier_forward.7} parent=0 // pred_region
    _
  $region5: #{classifier_forward.7} parent=0 // pred_fallthru
    _
  // Predicated region
  $region6: #{classifier_forward.7} parent=0 // pred_check
    _
  $region7: #{classifier_forward.7} parent=0 // pred_check_branch
    %11 = sbr.rel (0) target = $region9
  $region8: #{classifier_forward.7} parent=0 // pred_region
    _
  $region9: #{classifier_forward.7} parent=0 // pred_fallthru
    _
  // Predicated region
  $region10: #{classifier_forward.7} parent=0 // pred_check
    _
  $region11: #{classifier_forward.7} parent=0 // pred_check_branch
    %13 = sbr.rel (0) target = $region13
  $region12: #{classifier_forward.7} parent=0 // pred_region
    _
  $region13: #{classifier_forward.7} parent=0 // pred_fallthru
    _
  %v14 = vld [vmem:[%s0] sm:$0xff]
  %v15 = vld [vmem:[%s0 + $0x8] sm:$0xff]
  %v16 = vld [vmem:[%s1] sm:$0x1]
  %v17 = vld [vmem:[%s2] sm:$0x1]
  %vm18 = vcmask 261120
  %v19 = vsel %vm18, %v14, 0.0
  %20 = vadd.xlane.f32.xlu0 %v19
  %v21 = vpop.xlane.xlu0 %20
  %v22 = vsel %vm18, %v15, 0.0
  %23 = vadd.xlane.f32.xlu0 %v22
  %v24 = vpop.xlane.xlu0 %23
  %v25 = vrcp.pop 32.0
  %v26 = vmul.f32 %v21, %v25
  %v27 = vmul.f32 %v24, %v25
  %v28 = vsub.f32 %v14, %v26
  %v29 = vsub.f32 %v15, %v27
  %v30 = vmul.f32 %v28, %v28
  %v31 = vmul.f32 %v29, %v29
  %v32 = vsel %vm18, %v30, 0.0
  %33 = vadd.xlane.f32.xlu0 %v32
  %v34 = vpop.xlane.xlu0 %33
  %v35 = vsel %vm18, %v31, 0.0
  %36 = vadd.xlane.f32.xlu0 %v35
  %v37 = vpop.xlane.xlu0 %36
  %v38 = vmul.f32 %v34, %v25
  %v39 = vmul.f32 %v37, %v25
  %v40 = vadd.f32 %v38, 1e-12
  %v41 = vadd.f32 %v39, 1e-12
  %v42 = vrsqrt.pop %v40
  %v43 = vrsqrt.pop %v41
  %v44 = vmul.f32 %v28, %v42
  %v45 = vmul.f32 %v29, %v43
  %v47 = vlaneseq
  %v48 = vshrl.u32 %v47, 7
  %v49 = vsub.s32 0, %v48
  %v50 = vrot.slane %v16, %v49
  %v52 = vmul.f32 %v44, %v50
  %v53 = vmul.f32 %v45, %v50
  %v55 = vlaneseq
  %v56 = vshrl.u32 %v55, 7
  %v57 = vsub.s32 0, %v56
  %v58 = vrot.slane %v17, %v57
  %v60 = vadd.f32 %v52, %v58
  %v61 = vadd.f32 %v53, %v58
  %62 = vst.msk [vmem:[%s3] sm:$0xff] %vm18, %v60
  %63 = vst.msk [vmem:[%s3 + $0x8] sm:$0xff] %vm18, %v61
  // Predicated region
  $region14: #{classifier_forward.7} parent=0 // pred_check
    _
  $region15: #{classifier_forward.7} parent=0 // pred_check_branch
    %65 = sbr.rel (0) target = $region17
  $region16: #{classifier_forward.7} parent=0 // pred_region
    _
  $region17: #{classifier_forward.7} parent=0 // pred_fallthru
    _
  // Predicated region
  $region18: #{classifier_forward.7} parent=0 // pred_check
    _
  $region19: #{classifier_forward.7} parent=0 // pred_check_branch
    %67 = sbr.rel (0) target = $region21
  $region20: #{classifier_forward.7} parent=0 // pred_region
    _
  $region21: #{classifier_forward.7} parent=0 // pred_fallthru
    _

// kernel: classifier_forward.8
$region0: #{classifier_forward.8}
  #allocation0 [shape = 'u32[]', space=smem, size = 0x4, offset = 0x4, fixed_abs, tag = 'smem constant byte address 0x4 - core index']
  #allocation1 [shape = 'u32[144,128]{1,0:T(1,128)}', space=vmem, size = 0x12000, scoped, tag = 'internal scratch']
  %s0 = inlined_call_operand.vmem [shape: f32[16,32], index: 0, kind: input, shape index: {}]
  %s1 = inlined_call_operand.vmem [shape: f32[2,8], index: 1, kind: input, shape index: {}]
  %s2 = inlined_call_operand.vmem [shape: f32[32,96], index: 2, kind: input, shape index: {}]
  %s3 = inlined_call_operand.vmem [shape: f32[1,96], index: 3, kind: input, shape index: {}]
  %s4 = inlined_call_operand.vmem [shape: f32[32,32], index: 4, kind: input, shape index: {}]
  %s5 = inlined_call_operand.vmem [shape: f32[1,32], index: 5, kind: input, shape index: {}]
  %s6 = inlined_call_operand.vmem [shape: f32[1,32], index: 6, kind: input, shape index: {}]
  %s7 = inlined_call_operand.vmem [shape: f32[1,32], index: 7, kind: input, shape index: {}]
  %s8 = inlined_call_operand.vmem [shape: f32[32,64], index: 8, kind: input, shape index: {}]
  %s9 = inlined_call_operand.vmem [shape: f32[1,64], index: 9, kind: input, shape index: {}]
  %s10 = inlined_call_operand.vmem [shape: f32[64,32], index: 10, kind: input, shape index: {}]
  %s11 = inlined_call_operand.vmem [shape: f32[1,32], index: 11, kind: input, shape index: {}]
  %s12 = inlined_call_operand.vmem [shape: f32[1,32], index: 12, kind: input, shape index: {}]
  %s13 = inlined_call_operand.vmem [shape: f32[1,32], index: 13, kind: input, shape index: {}]
  %s14 = inlined_call_operand.vmem [shape: f32[16,32], index: 14, kind: output, shape index: {}]
  %s15 = sld [smem:[#allocation0]]
  $region66: #{classifier_forward.8} parent=0
    _
  %s17 = ssub.s32 1, %s15
  %s18 = scalar_select 0, %s17, %s15
  // Predicated region
  $region2: #{classifier_forward.8} parent=0 // pred_check
    _
  $region3: #{classifier_forward.8} parent=0 // pred_check_branch
    %20 = sbr.rel (0) target = $region5
  $region4: #{classifier_forward.8} parent=0 // pred_region
    _
  $region5: #{classifier_forward.8} parent=0 // pred_fallthru
    _
  // Predicated region
  $region6: #{classifier_forward.8} parent=0 // pred_check
    _
  $region7: #{classifier_forward.8} parent=0 // pred_check_branch
    %22 = sbr.rel (0) target = $region9
  $region8: #{classifier_forward.8} parent=0 // pred_region
    _
  $region9: #{classifier_forward.8} parent=0 // pred_fallthru
    _
  // Predicated region
  $region10: #{classifier_forward.8} parent=0 // pred_check
    _
  $region11: #{classifier_forward.8} parent=0 // pred_check_branch
    %24 = sbr.rel (0) target = $region13
  $region12: #{classifier_forward.8} parent=0 // pred_region
    _
  $region13: #{classifier_forward.8} parent=0 // pred_fallthru
    _
  // Predicated region
  $region14: #{classifier_forward.8} parent=0 // pred_check
    _
  $region15: #{classifier_forward.8} parent=0 // pred_check_branch
    %26 = sbr.rel (0) target = $region17
  $region16: #{classifier_forward.8} parent=0 // pred_region
    _
  $region17: #{classifier_forward.8} parent=0 // pred_fallthru
    _
  // Predicated region
  $region18: #{classifier_forward.8} parent=0 // pred_check
    _
  $region19: #{classifier_forward.8} parent=0 // pred_check_branch
    %28 = sbr.rel (0) target = $region21
  $region20: #{classifier_forward.8} parent=0 // pred_region
    _
  $region21: #{classifier_forward.8} parent=0 // pred_fallthru
    _
  // Predicated region
  $region22: #{classifier_forward.8} parent=0 // pred_check
    _
  $region23: #{classifier_forward.8} parent=0 // pred_check_branch
    %30 = sbr.rel (0) target = $region25
  $region24: #{classifier_forward.8} parent=0 // pred_region
    _
  $region25: #{classifier_forward.8} parent=0 // pred_fallthru
    _
  // Predicated region
  $region26: #{classifier_forward.8} parent=0 // pred_check
    _
  $region27: #{classifier_forward.8} parent=0 // pred_check_branch
    %32 = sbr.rel (0) target = $region29
  $region28: #{classifier_forward.8} parent=0 // pred_region
    _
  $region29: #{classifier_forward.8} parent=0 // pred_fallthru
    _
  // Predicated region
  $region30: #{classifier_forward.8} parent=0 // pred_check
    _
  $region31: #{classifier_forward.8} parent=0 // pred_check_branch
    %34 = sbr.rel (0) target = $region33
  $region32: #{classifier_forward.8} parent=0 // pred_region
    _
  $region33: #{classifier_forward.8} parent=0 // pred_fallthru
    _
  // Predicated region
  $region34: #{classifier_forward.8} parent=0 // pred_check
    _
  $region35: #{classifier_forward.8} parent=0 // pred_check_branch
    %36 = sbr.rel (0) target = $region37
  $region36: #{classifier_forward.8} parent=0 // pred_region
    _
  $region37: #{classifier_forward.8} parent=0 // pred_fallthru
    _
  // Predicated region
  $region38: #{classifier_forward.8} parent=0 // pred_check
    _
  $region39: #{classifier_forward.8} parent=0 // pred_check_branch
    %38 = sbr.rel (0) target = $region41
  $region40: #{classifier_forward.8} parent=0 // pred_region
    _
  $region41: #{classifier_forward.8} parent=0 // pred_fallthru
    _
  // Predicated region
  $region42: #{classifier_forward.8} parent=0 // pred_check
    _
  $region43: #{classifier_forward.8} parent=0 // pred_check_branch
    %40 = sbr.rel (0) target = $region45
  $region44: #{classifier_forward.8} parent=0 // pred_region
    _
  $region45: #{classifier_forward.8} parent=0 // pred_fallthru
    _
  // Predicated region
  $region46: #{classifier_forward.8} parent=0 // pred_check
    _
  $region47: #{classifier_forward.8} parent=0 // pred_check_branch
    %42 = sbr.rel (0) target = $region49
  $region48: #{classifier_forward.8} parent=0 // pred_region
    _
  $region49: #{classifier_forward.8} parent=0 // pred_fallthru
    _
  // Predicated region
  $region50: #{classifier_forward.8} parent=0 // pred_check
    _
  $region51: #{classifier_forward.8} parent=0 // pred_check_branch
    %44 = sbr.rel (0) target = $region53
  $region52: #{classifier_forward.8} parent=0 // pred_region
    _
  $region53: #{classifier_forward.8} parent=0 // pred_fallthru
    _
  // Predicated region
  $region54: #{classifier_forward.8} parent=0 // pred_check
    _
  $region55: #{classifier_forward.8} parent=0 // pred_check_branch
    %46 = sbr.rel (0) target = $region57
  $region56: #{classifier_forward.8} parent=0 // pred_region
    _
  $region57: #{classifier_forward.8} parent=0 // pred_fallthru
    _
  %v47 = vld [vmem:[%s0] sm:$0xff]
  %v48 = vld [vmem:[%s0 + $0x8] sm:$0xff]
  %v49 = vld [vmem:[%s2] sm:$0xff]
  %v50 = vld [vmem:[%s2 + $0x8] sm:$0xff]
  %v51 = vld [vmem:[%s2 + $0x10] sm:$0xff]
  %v52 = vld [vmem:[%s2 + $0x18] sm:$0xff]
  %v53 = vld [vmem:[%s3] sm:$0x1]
  %v55 = vlaneseq
  %v56 = vshrl.u32 %v55, 7
  %v57 = vsub.s32 0, %v56
  %v58 = vrot.slane %v53, %v57
  %vm60 = vcmask 261120
  %v62 = vsel %vm60, %v47, 0
  %v65 = vsel %vm60, %v48, 0
  %67 = vmatprep.subr.mxu0 0.0
  %68 = vmatpush1.msra.mxu0 0.0
  %69 = vmatprep.subr.mxu0 0.0
  %70 = vmatpush1.msra.mxu0 0.0
  %71 = vmatprep.subr.mxu0 0.0
  %72 = vmatpush1.msra.mxu0 0.0
  %73 = vmatprep.subr.mxu0 0.0
  %74 = vmatpush1.msra.mxu0 0.0
  %75 = vmatprep.subr.mxu0 0.0
  %76 = vmatpush1.msra.mxu0 0.0
  %77 = vmatprep.subr.mxu0 0.0
  %78 = vmatpush1.msra.mxu0 0.0
  %79 = vmatprep.subr.mxu0 0.0
  %80 = vmatpush1.msra.mxu0 0.0
  %81 = vmatprep.subr.mxu0 0.0
  %82 = vmatpush1.msra.mxu0 0.0
  %83 = vmatprep.subr.mxu0 0.0
  %84 = vmatpush1.msra.mxu0 0.0
  %85 = vmatprep.subr.mxu0 0.0
  %86 = vmatpush1.msra.mxu0 0.0
  %87 = vmatprep.subr.mxu0 0.0
  %88 = vmatpush1.msra.mxu0 0.0
  %89 = vmatprep.subr.mxu0 0.0
  %90 = vmatpush1.msra.mxu0 0.0
  %91 = vmatprep.subr.mxu0 0.0
  %92 = vmatpush1.msra.mxu0 %v52
  %93 = vmatprep.subr.mxu0 0.0
  %94 = vmatpush1.msra.mxu0 %v51
  %95 = vmatprep.subr.mxu0 0.0
  %96 = vmatpush1.msra.mxu0 %v50
  %97 = vmatprep.subr.mxu0 0.0
  %98 = vmatpush1.msra.mxu0 %v49
  %99 = vmatprep.subr.mxu0 0.0
  %100 = vmatpush2.msra.mxu0 0.0
  %101 = vmatprep.subr.mxu0 0.0
  %102 = vmatpush2.msra.mxu0 0.0
  %103 = vmatprep.subr.mxu0 0.0
  %104 = vmatpush2.msra.mxu0 0.0
  %105 = vmatprep.subr.mxu0 0.0
  %106 = vmatpush2.msra.mxu0 0.0
  %107 = vmatprep.subr.mxu0 0.0
  %108 = vmatpush2.msra.mxu0 0.0
  %109 = vmatprep.subr.mxu0 0.0
  %110 = vmatpush2.msra.mxu0 0.0
  %111 = vmatprep.subr.mxu0 0.0
  %112 = vmatpush2.msra.mxu0 0.0
  %113 = vmatprep.subr.mxu0 0.0
  %114 = vmatpush2.msra.mxu0 0.0
  %115 = vmatprep.subr.mxu0 0.0
  %116 = vmatpush2.msra.mxu0 0.0
  %117 = vmatprep.subr.mxu0 0.0
  %118 = vmatpush2.msra.mxu0 0.0
  %119 = vmatprep.subr.mxu0 0.0
  %120 = vmatpush2.msra.mxu0 0.0
  %121 = vmatprep.subr.mxu0 0.0
  %122 = vmatpush2.msra.mxu0 0.0
  %123 = vmatprep.subr.mxu0 0.0
  %124 = vmatpush2.msra.mxu0 0.0
  %125 = vmatprep.subr.mxu0 0.0
  %126 = vmatpush2.msra.mxu0 0.0
  %127 = vmatprep.subr.mxu0 0.0
  %128 = vmatpush2.msra.mxu0 0.0
  %129 = vmatprep.subr.mxu0 0.0
  %130 = vmatpush2.msra.mxu0 0.0
  %131 = vmatprep.mubr.f32.mxu0 0.0
  %132 = vmatmul.mubr.f32.gmra.mxu0 %v62
  %v133 = vpop.f32.mrf.mxu0
  %v134 = vadd.f32 %v58, %v133
  %v135 = vpop.f32.mrf.mxu0
  %136 = vmatprep.mubr.f32.mxu0 0.0
  %137 = vmatmul.mubr.f32.gmra.mxu0 %v65
  %v138 = vpop.f32.mrf.mxu0
  %v139 = vadd.f32 %v58, %v138
  %v140 = vpop.f32.mrf.mxu0
  %141 = vdwg.mxu0
  %v142 = vld [vmem:[%s1] sm:$0x3]
  %v143 = vsub.f32 1.0, %v142
  %v144 = vmul.f32 %v143, -1e+09
  %v147 = vunpack.c.l.s4 1966171168
  %v148 = vunpack.c.0.s8 %v147
  %v149 = vlaneseq
  %v150 = vshrl.u32 %v149, 7
  %v151 = vsub.s32 %v148, %v150
  %v152 = vrot.slane %v144, %v151
  %v153 = vcombine.high %v152, %v152
  %v155 = vunpack.c.l.s4 1966171168
  %v156 = vunpack.c.0.s8 %v155
  %v157 = vlaneseq
  %v158 = vshrl.u32 %v157, 7
  %v159 = vsub.s32 %v156, %v158
  %v160 = vrot.slane %v152, %v159
  %v162 = vunpack.c.l.s4 1966171168
  %v163 = vunpack.c.0.s8 %v162
  %v164 = vlaneseq
  %v165 = vshrl.u32 %v164, 7
  %v166 = vsub.s32 %v163, %v165
  %v167 = vrot.slane %v153, %v166
  %169 = vrot.lane.b32.xlu0 %v134, 96
  %v170 = vpop.permute.xlu0 %169
  %vm171 = vcmask 130048
  %v172 = vsel %vm171, %v134, 0
  %v174 = vsel %vm171, %v170, 0
  %176 = vmatprep.subr.mxu0 0.0
  %177 = vmatpush1.xpose.msra.mxu0 0.0
  %178 = vmatprep.subr.mxu0 0.0
  %179 = vmatpush1.xpose.msra.mxu0 0.0
  %180 = vmatprep.subr.mxu0 0.0
  %181 = vmatpush1.xpose.msra.mxu0 0.0
  %182 = vmatprep.subr.mxu0 0.0
  %183 = vmatpush1.xpose.msra.mxu0 0.0
  %184 = vmatprep.subr.mxu0 0.0
  %185 = vmatpush1.xpose.msra.mxu0 0.0
  %186 = vmatprep.subr.mxu0 0.0
  %187 = vmatpush1.xpose.msra.mxu0 0.0
  %188 = vmatprep.subr.mxu0 0.0
  %189 = vmatpush1.xpose.msra.mxu0 0.0
  %190 = vmatprep.subr.mxu0 0.0
  %191 = vmatpush1.xpose.msra.mxu0 0.0
  %192 = vmatprep.subr.mxu0 0.0
  %193 = vmatpush1.xpose.msra.mxu0 0.0
  %194 = vmatprep.subr.mxu0 0.0
  %195 = vmatpush1.xpose.msra.mxu0 0.0
  %196 = vmatprep.subr.mxu0 0.0
  %197 = vmatpush1.xpose.msra.mxu0 0.0
  %198 = vmatprep.subr.mxu0 0.0
  %199 = vmatpush1.xpose.msra.mxu0 0.0
  %200 = vmatprep.subr.mxu0 0.0
  %201 = vmatpush1.xpose.msra.mxu0 0.0
  %202 = vmatprep.subr.mxu0 0.0
  %203 = vmatpush1.xpose.msra.mxu0 0.0
  %204 = vmatprep.subr.mxu0 0.0
  %205 = vmatpush1.xpose.msra.mxu0 0.0
  %206 = vmatprep.subr.mxu0 0.0
  %207 = vmatpush1.xpose.msra.mxu0 %v174
  %208 = vmatprep.subr.mxu0 0.0
  %209 = vmatpush2.xpose.msra.mxu0 0.0
  %210 = vmatprep.subr.mxu0 0.0
  %211 = vmatpush2.xpose.msra.mxu0 0.0
  %212 = vmatprep.subr.mxu0 0.0
  %213 = vmatpush2.xpose.msra.mxu0 0.0
  %214 = vmatprep.subr.mxu0 0.0
  %215 = vmatpush2.xpose.msra.mxu0 0.0
  %216 = vmatprep.subr.mxu0 0.0
  %217 = vmatpush2.xpose.msra.mxu0 0.0
  %218 = vmatprep.subr.mxu0 0.0
  %219 = vmatpush2.xpose.msra.mxu0 0.0
  %220 = vmatprep.subr.mxu0 0.0
  %221 = vmatpush2.xpose.msra.mxu0 0.0
  %222 = vmatprep.subr.mxu0 0.0
  %223 = vmatpush2.xpose.msra.mxu0 0.0
  %224 = vmatprep.subr.mxu0 0.0
  %225 = vmatpush2.xpose.msra.mxu0 0.0
  %226 = vmatprep.subr.mxu0 0.0
  %227 = vmatpush2.xpose.msra.mxu0 0.0
  %228 = vmatprep.subr.mxu0 0.0
  %229 = vmatpush2.xpose.msra.mxu0 0.0
  %230 = vmatprep.subr.mxu0 0.0
  %231 = vmatpush2.xpose.msra.mxu0 0.0
  %232 = vmatprep.subr.mxu0 0.0
  %233 = vmatpush2.xpose.msra.mxu0 0.0
  %234 = vmatprep.subr.mxu0 0.0
  %235 = vmatpush2.xpose.msra.mxu0 0.0
  %236 = vmatprep.subr.mxu0 0.0
  %237 = vmatpush2.xpose.msra.mxu0 0.0
  %238 = vmatprep.subr.mxu0 0.0
  %239 = vmatpush2.xpose.msra.mxu0 0.0
  %240 = vmatprep.mubr.f32.mxu0 0.0
  %241 = vmatmul.mubr.f32.gmra.mxu0 %v172
  %v242 = vpop.f32.mrf.mxu0
  %v243 = vadd.f32 0.0, %v242
  %v244 = vpop.f32.mrf.mxu0
  %245 = vdwg.mxu0
  %247 = vrot.lane.b32.xlu0 %v139, 96
  %v248 = vpop.permute.xlu0 %247
  %v249 = vsel %vm171, %v139, 0
  %v251 = vsel %vm171, %v248, 0
  %253 = vmatprep.subr.mxu0 0.0
  %254 = vmatpush1.xpose.msra.mxu0 0.0
  %255 = vmatprep.subr.mxu0 0.0
  %256 = vmatpush1.xpose.msra.mxu0 0.0
  %257 = vmatprep.subr.mxu0 0.0
  %258 = vmatpush1.xpose.msra.mxu0 0.0
  %259 = vmatprep.subr.mxu0 0.0
  %260 = vmatpush1.xpose.msra.mxu0 0.0
  %261 = vmatprep.subr.mxu0 0.0
  %262 = vmatpush1.xpose.msra.mxu0 0.0
  %263 = vmatprep.subr.mxu0 0.0
  %264 = vmatpush1.xpose.msra.mxu0 0.0
  %265 = vmatprep.subr.mxu0 0.0
  %266 = vmatpush1.xpose.msra.mxu0 0.0
  %267 = vmatprep.subr.mxu0 0.0
  %268 = vmatpush1.xpose.msra.mxu0 0.0
  %269 = vmatprep.subr.mxu0 0.0
  %270 = vmatpush1.xpose.msra.mxu0 0.0
  %271 = vmatprep.subr.mxu0 0.0
  %272 = vmatpush1.xpose.msra.mxu0 0.0
  %273 = vmatprep.subr.mxu0 0.0
  %274 = vmatpush1.xpose.msra.mxu0 0.0
  %275 = vmatprep.subr.mxu0 0.0
  %276 = vmatpush1.xpose.msra.mxu0 0.0
  %277 = vmatprep.subr.mxu0 0.0
  %278 = vmatpush1.xpose.msra.mxu0 0.0
  %279 = vmatprep.subr.mxu0 0.0
  %280 = vmatpush1.xpose.msra.mxu0 0.0
  %281 = vmatprep.subr.mxu0 0.0
  %282 = vmatpush1.xpose.msra.mxu0 0.0
  %283 = vmatprep.subr.mxu0 0.0
  %284 = vmatpush1.xpose.msra.mxu0 %v251
  %285 = vmatprep.subr.mxu0 0.0
  %286 = vmatpush2.xpose.msra.mxu0 0.0
  %287 = vmatprep.subr.mxu0 0.0
  %288 = vmatpush2.xpose.msra.mxu0 0.0
  %289 = vmatprep.subr.mxu0 0.0
  %290 = vmatpush2.xpose.msra.mxu0 0.0
  %291 = vmatprep.subr.mxu0 0.0
  %292 = vmatpush2.xpose.msra.mxu0 0.0
  %293 = vmatprep.subr.mxu0 0.0
  %294 = vmatpush2.xpose.msra.mxu0 0.0
  %295 = vmatprep.subr.mxu0 0.0
  %296 = vmatpush2.xpose.msra.mxu0 0.0
  %297 = vmatprep.subr.mxu0 0.0
  %298 = vmatpush2.xpose.msra.mxu0 0.0
  %299 = vmatprep.subr.mxu0 0.0
  %300 = vmatpush2.xpose.msra.mxu0 0.0
  %301 = vmatprep.subr.mxu0 0.0
  %302 = vmatpush2.xpose.msra.mxu0 0.0
  %303 = vmatprep.subr.mxu0 0.0
  %304 = vmatpush2.xpose.msra.mxu0 0.0
  %305 = vmatprep.subr.mxu0 0.0
  %306 = vmatpush2.xpose.msra.mxu0 0.0
  %307 = vmatprep.subr.mxu0 0.0
  %308 = vmatpush2.xpose.msra.mxu0 0.0
  %309 = vmatprep.subr.mxu0 0.0
  %310 = vmatpush2.xpose.msra.mxu0 0.0
  %311 = vmatprep.subr.mxu0 0.0
  %312 = vmatpush2.xpose.msra.mxu0 0.0
  %313 = vmatprep.subr.mxu0 0.0
  %314 = vmatpush2.xpose.msra.mxu0 0.0
  %315 = vmatprep.subr.mxu0 0.0
  %316 = vmatpush2.xpose.msra.mxu0 0.0
  %317 = vmatprep.mubr.f32.mxu0 0.0
  %318 = vmatmul.mubr.f32.gmra.mxu0 %v249
  %v319 = vpop.f32.mrf.mxu0
  %v320 = vadd.f32 0.0, %v319
  %v321 = vpop.f32.mrf.mxu0
  %322 = vdwg.mxu0
  %v323 = vmul.f32 %v243, 0.25
  %v324 = vmul.f32 %v320, 0.25
  %v325 = vlaneseq
  %v326 = vshrl.u32 %v325, 7
  %v327 = vsub.s32 0, %v326
  %v328 = vrot.slane %v160, %v327
  %v329 = vlaneseq
  %v330 = vshrl.u32 %v329, 7
  %v331 = vsub.s32 0, %v330
  %v332 = vrot.slane %v167, %v331
  %v335 = vadd.f32 %v323, %v328
  %v336 = vadd.f32 %v324, %v332
  %vm337 = vcmask 64512
  %v338 = vsel %vm337, %v335, -inf
  %339 = vmax.xlane.f32.xlu0 %v338
  %v340 = vpop.xlane.xlu0 %339
  %v341 = vsel %vm337, %v336, -inf
  %342 = vmax.xlane.f32.xlu0 %v341
  %v343 = vpop.xlane.xlu0 %342
  %v344 = vsub.f32 %v335, %v340
  %v345 = vsub.f32 %v336, %v343
  %v346 = vmul.f32 %v344, 1.442695
  %v347 = vpow.pop %v346
  %v348 = vmul.f32 %v345, 1.442695
  %v349 = vpow.pop %v348
  %v350 = vsel %vm337, %v347, 0.0
  %351 = vadd.xlane.f32.xlu0 %v350
  %v352 = vpop.xlane.xlu0 %351
  %v353 = vsel %vm337, %v349, 0.0
  %354 = vadd.xlane.f32.xlu0 %v353
  %v355 = vpop.xlane.xlu0 %354
  %v356 = vrcp.pop %v352
  %v357 = vrcp.pop %v355
  %v358 = vmul.f32 %v347, %v356
  %v359 = vmul.f32 %v349, %v357
  %360 = vrot.lane.b32.xlu0 %v134, 64
  %v361 = vpop.permute.xlu0 %360
  %v364 = vsel %vm337, %v358, 0
  %366 = vmatprep.subr.mxu0 0.0
  %367 = vmatpush1.msra.mxu0 0.0
  %368 = vmatprep.subr.mxu0 0.0
  %369 = vmatpush1.msra.mxu0 0.0
  %370 = vmatprep.subr.mxu0 0.0
  %371 = vmatpush1.msra.mxu0 0.0
  %372 = vmatprep.subr.mxu0 0.0
  %373 = vmatpush1.msra.mxu0 0.0
  %374 = vmatprep.subr.mxu0 0.0
  %375 = vmatpush1.msra.mxu0 0.0
  %376 = vmatprep.subr.mxu0 0.0
  %377 = vmatpush1.msra.mxu0 0.0
  %378 = vmatprep.subr.mxu0 0.0
  %379 = vmatpush1.msra.mxu0 0.0
  %380 = vmatprep.subr.mxu0 0.0
  %381 = vmatpush1.msra.mxu0 0.0
  %382 = vmatprep.subr.mxu0 0.0
  %383 = vmatpush1.msra.mxu0 0.0
  %384 = vmatprep.subr.mxu0 0.0
  %385 = vmatpush1.msra.mxu0 0.0
  %386 = vmatprep.subr.mxu0 0.0
  %387 = vmatpush1.msra.mxu0 0.0
  %388 = vmatprep.subr.mxu0 0.0
  %389 = vmatpush1.msra.mxu0 0.0
  %390 = vmatprep.subr.mxu0 0.0
  %391 = vmatpush1.msra.mxu0 0.0
  %392 = vmatprep.subr.mxu0 0.0
  %393 = vmatpush1.msra.mxu0 0.0
  %394 = vmatprep.subr.mxu0 0.0
  %395 = vmatpush1.msra.mxu0 0.0
  %396 = vmatprep.subr.mxu0 0.0
  %397 = vmatpush1.msra.mxu0 %v361
  %398 = vmatprep.subr.mxu0 0.0
  %399 = vmatpush2.msra.mxu0 0.0
  %400 = vmatprep.subr.mxu0 0.0
  %401 = vmatpush2.msra.mxu0 0.0
  %402 = vmatprep.subr.mxu0 0.0
  %403 = vmatpush2.msra.mxu0 0.0
  %404 = vmatprep.subr.mxu0 0.0
  %405 = vmatpush2.msra.mxu0 0.0
  %406 = vmatprep.subr.mxu0 0.0
  %407 = vmatpush2.msra.mxu0 0.0
  %408 = vmatprep.subr.mxu0 0.0
  %409 = vmatpush2.msra.mxu0 0.0
  %410 = vmatprep.subr.mxu0 0.0
  %411 = vmatpush2.msra.mxu0 0.0
  %412 = vmatprep.subr.mxu0 0.0
  %413 = vmatpush2.msra.mxu0 0.0
  %414 = vmatprep.subr.mxu0 0.0
  %415 = vmatpush2.msra.mxu0 0.0
  %416 = vmatprep.subr.mxu0 0.0
  %417 = vmatpush2.msra.mxu0 0.0
  %418 = vmatprep.subr.mxu0 0.0
  %419 = vmatpush2.msra.mxu0 0.0
  %420 = vmatprep.subr.mxu0 0.0
  %421 = vmatpush2.msra.mxu0 0.0
  %422 = vmatprep.subr.mxu0 0.0
  %423 = vmatpush2.msra.mxu0 0.0
  %424 = vmatprep.subr.mxu0 0.0
  %425 = vmatpush2.msra.mxu0 0.0
  %426 = vmatprep.subr.mxu0 0.0
  %427 = vmatpush2.msra.mxu0 0.0
  %428 = vmatprep.subr.mxu0 0.0
  %429 = vmatpush2.msra.mxu0 0.0
  %430 = vmatprep.mubr.f32.mxu0 0.0
  %431 = vmatmul.mubr.f32.gmra.mxu0 %v364
  %v432 = vpop.f32.mrf.mxu0
  %v433 = vadd.f32 0.0, %v432
  %v434 = vpop.f32.mrf.mxu0
  %435 = vdwg.mxu0
  %436 = vrot.lane.b32.xlu0 %v139, 64
  %v437 = vpop.permute.xlu0 %436
  %v440 = vsel %vm337, %v359, 0
  %442 = vmatprep.subr.mxu0 0.0
  %443 = vmatpush1.msra.mxu0 0.0
  %444 = vmatprep.subr.mxu0 0.0
  %445 = vmatpush1.msra.mxu0 0.0
  %446 = vmatprep.subr.mxu0 0.0
  %447 = vmatpush1.msra.mxu0 0.0
  %448 = vmatprep.subr.mxu0 0.0
  %449 = vmatpush1.msra.mxu0 0.0
  %450 = vmatprep.subr.mxu0 0.0
  %451 = vmatpush1.msra.mxu0 0.0
  %452 = vmatprep.subr.mxu0 0.0
  %453 = vmatpush1.msra.mxu0 0.0
  %454 = vmatprep.subr.mxu0 0.0
  %455 = vmatpush1.msra.mxu0 0.0
  %456 = vmatprep.subr.mxu0 0.0
  %457 = vmatpush1.msra.mxu0 0.0
  %458 = vmatprep.subr.mxu0 0.0
  %459 = vmatpush1.msra.mxu0 0.0
  %460 = vmatprep.subr.mxu0 0.0
  %461 = vmatpush1.msra.mxu0 0.0
  %462 = vmatprep.subr.mxu0 0.0
  %463 = vmatpush1.msra.mxu0 0.0
  %464 = vmatprep.subr.mxu0 0.0
  %465 = vmatpush1.msra.mxu0 0.0
  %466 = vmatprep.subr.mxu0 0.0
  %467 = vmatpush1.msra.mxu0 0.0
  %468 = vmatprep.subr.mxu0 0.0
  %469 = vmatpush1.msra.mxu0 0.0
  %470 = vmatprep.subr.mxu0 0.0
  %471 = vmatpush1.msra.mxu0 0.0
  %472 = vmatprep.subr.mxu0 0.0
  %473 = vmatpush1.msra.mxu0 %v437
  %474 = vmatprep.subr.mxu0 0.0
  %475 = vmatpush2.msra.mxu0 0.0
  %476 = vmatprep.subr.mxu0 0.0
  %477 = vmatpush2.msra.mxu0 0.0
  %478 = vmatprep.subr.mxu0 0.0
  %479 = vmatpush2.msra.mxu0 0.0
  %480 = vmatprep.subr.mxu0 0.0
  %481 = vmatpush2.msra.mxu0 0.0
  %482 = vmatprep.subr.mxu0 0.0
  %483 = vmatpush2.msra.mxu0 0.0
  %484 = vmatprep.subr.mxu0 0.0
  %485 = vmatpush2.msra.mxu0 0.0
  %486 = vmatprep.subr.mxu0 0.0
  %487 = vmatpush2.msra.mxu0 0.0
  %488 = vmatprep.subr.mxu0 0.0
  %489 = vmatpush2.msra.mxu0 0.0
  %490 = vmatprep.subr.mxu0 0.0
  %491 = vmatpush2.msra.mxu0 0.0
  %492 = vmatprep.subr.mxu0 0.0
  %493 = vmatpush2.msra.mxu0 0.0
  %494 = vmatprep.subr.mxu0 0.0
  %495 = vmatpush2.msra.mxu0 0.0
  %496 = vmatprep.subr.mxu0 0.0
  %497 = vmatpush2.msra.mxu0 0.0
  %498 = vmatprep.subr.mxu0 0.0
  %499 = vmatpush2.msra.mxu0 0.0
  %500 = vmatprep.subr.mxu0 0.0
  %501 = vmatpush2.msra.mxu0 0.0
  %502 = vmatprep.subr.mxu0 0.0
  %503 = vmatpush2.msra.mxu0 0.0
  %504 = vmatprep.subr.mxu0 0.0
  %505 = vmatpush2.msra.mxu0 0.0
  %506 = vmatprep.mubr.f32.mxu0 0.0
  %507 = vmatmul.mubr.f32.gmra.mxu0 %v440
  %v508 = vpop.f32.mrf.mxu0
  %v509 = vadd.f32 0.0, %v508
  %v510 = vpop.f32.mrf.mxu0
  %511 = vdwg.mxu0
  %512 = vrot.lane.b32.xlu0 %v134, 112
  %v513 = vpop.permute.xlu0 %512
  %514 = vrot.lane.b32.xlu0 %v134, 80
  %v515 = vpop.permute.xlu0 %514
  %v516 = vsel %vm171, %v513, 0
  %v518 = vsel %vm171, %v515, 0
  %520 = vmatprep.subr.mxu0 0.0
  %521 = vmatpush1.xpose.msra.mxu0 0.0
  %522 = vmatprep.subr.mxu0 0.0
  %523 = vmatpush1.xpose.msra.mxu0 0.0
  %524 = vmatprep.subr.mxu0 0.0
  %525 = vmatpush1.xpose.msra.mxu0 0.0
  %526 = vmatprep.subr.mxu0 0.0
  %527 = vmatpush1.xpose.msra.mxu0 0.0
  %528 = vmatprep.subr.mxu0 0.0
  %529 = vmatpush1.xpose.msra.mxu0 0.0
  %530 = vmatprep.subr.mxu0 0.0
  %531 = vmatpush1.xpose.msra.mxu0 0.0
  %532 = vmatprep.subr.mxu0 0.0
  %533 = vmatpush1.xpose.msra.mxu0 0.0
  %534 = vmatprep.subr.mxu0 0.0
  %535 = vmatpush1.xpose.msra.mxu0 0.0
  %536 = vmatprep.subr.mxu0 0.0
  %537 = vmatpush1.xpose.msra.mxu0 0.0
  %538 = vmatprep.subr.mxu0 0.0
  %539 = vmatpush1.xpose.msra.mxu0 0.0
  %540 = vmatprep.subr.mxu0 0.0
  %541 = vmatpush1.xpose.msra.mxu0 0.0
  %542 = vmatprep.subr.mxu0 0.0
  %543 = vmatpush1.xpose.msra.mxu0 0.0
  %544 = vmatprep.subr.mxu0 0.0
  %545 = vmatpush1.xpose.msra.mxu0 0.0
  %546 = vmatprep.subr.mxu0 0.0
  %547 = vmatpush1.xpose.msra.mxu0 0.0
  %548 = vmatprep.subr.mxu0 0.0
  %549 = vmatpush1.xpose.msra.mxu0 0.0
  %550 = vmatprep.subr.mxu0 0.0
  %551 = vmatpush1.xpose.msra.mxu0 %v518
  %552 = vmatprep.subr.mxu0 0.0
  %553 = vmatpush2.xpose.msra.mxu0 0.0
  %554 = vmatprep.subr.mxu0 0.0
  %555 = vmatpush2.xpose.msra.mxu0 0.0
  %556 = vmatprep.subr.mxu0 0.0
  %557 = vmatpush2.xpose.msra.mxu0 0.0
  %558 = vmatprep.subr.mxu0 0.0
  %559 = vmatpush2.xpose.msra.mxu0 0.0
  %560 = vmatprep.subr.mxu0 0.0
  %561 = vmatpush2.xpose.msra.mxu0 0.0
  %562 = vmatprep.subr.mxu0 0.0
  %563 = vmatpush2.xpose.msra.mxu0 0.0
  %564 = vmatprep.subr.mxu0 0.0
  %565 = vmatpush2.xpose.msra.mxu0 0.0
  %566 = vmatprep.subr.mxu0 0.0
  %567 = vmatpush2.xpose.msra.mxu0 0.0
  %568 = vmatprep.subr.mxu0 0.0
  %569 = vmatpush2.xpose.msra.mxu0 0.0
  %570 = vmatprep.subr.mxu0 0.0
  %571 = vmatpush2.xpose.msra.mxu0 0.0
  %572 = vmatprep.subr.mxu0 0.0
  %573 = vmatpush2.xpose.msra.mxu0 0.0
  %574 = vmatprep.subr.mxu0 0.0
  %575 = vmatpush2.xpose.msra.mxu0 0.0
  %576 = vmatprep.subr.mxu0 0.0
  %577 = vmatpush2.xpose.msra.mxu0 0.0
  %578 = vmatprep.subr.mxu0 0.0
  %579 = vmatpush2.xpose.msra.mxu0 0.0
  %580 = vmatprep.subr.mxu0 0.0
  %581 = vmatpush2.xpose.msra.mxu0 0.0
  %582 = vmatprep.subr.mxu0 0.0
  %583 = vmatpush2.xpose.msra.mxu0 0.0
  %584 = vmatprep.mubr.f32.mxu0 0.0
  %585 = vmatmul.mubr.f32.gmra.mxu0 %v516
  %v586 = vpop.f32.mrf.mxu0
  %v587 = vadd.f32 0.0, %v586
  %v588 = vpop.f32.mrf.mxu0
  %589 = vdwg.mxu0
  %590 = vrot.lane.b32.xlu0 %v139, 112
  %v591 = vpop.permute.xlu0 %590
  %592 = vrot.lane.b32.xlu0 %v139, 80
  %v593 = vpop.permute.xlu0 %592
  %v594 = vsel %vm171, %v591, 0
  %v596 = vsel %vm171, %v593, 0
  %598 = vmatprep.subr.mxu0 0.0
  %599 = vmatpush1.xpose.msra.mxu0 0.0
  %600 = vmatprep.subr.mxu0 0.0
  %601 = vmatpush1.xpose.msra.mxu0 0.0
  %602 = vmatprep.subr.mxu0 0.0
  %603 = vmatpush1.xpose.msra.mxu0 0.0
  %604 = vmatprep.subr.mxu0 0.0
  %605 = vmatpush1.xpose.msra.mxu0 0.0
  %606 = vmatprep.subr.mxu0 0.0
  %607 = vmatpush1.xpose.msra.mxu0 0.0
  %608 = vmatprep.subr.mxu0 0.0
  %609 = vmatpush1.xpose.msra.mxu0 0.0
  %610 = vmatprep.subr.mxu0 0.0
  %611 = vmatpush1.xpose.msra.mxu0 0.0
  %612 = vmatprep.subr.mxu0 0.0
  %613 = vmatpush1.xpose.msra.mxu0 0.0
  %614 = vmatprep.subr.mxu0 0.0
  %615 = vmatpush1.xpose.msra.mxu0 0.0
  %616 = vmatprep.subr.mxu0 0.0
  %617 = vmatpush1.xpose.msra.mxu0 0.0
  %618 = vmatprep.subr.mxu0 0.0
  %619 = vmatpush1.xpose.msra.mxu0 0.0
  %620 = vmatprep.subr.mxu0 0.0
  %621 = vmatpush1.xpose.msra.mxu0 0.0
  %622 = vmatprep.subr.mxu0 0.0
  %623 = vmatpush1.xpose.msra.mxu0 0.0
  %624 = vmatprep.subr.mxu0 0.0
  %625 = vmatpush1.xpose.msra.mxu0 0.0
  %626 = vmatprep.subr.mxu0 0.0
  %627 = vmatpush1.xpose.msra.mxu0 0.0
  %628 = vmatprep.subr.mxu0 0.0
  %629 = vmatpush1.xpose.msra.mxu0 %v596
  %630 = vmatprep.subr.mxu0 0.0
  %631 = vmatpush2.xpose.msra.mxu0 0.0
  %632 = vmatprep.subr.mxu0 0.0
  %633 = vmatpush2.xpose.msra.mxu0 0.0
  %634 = vmatprep.subr.mxu0 0.0
  %635 = vmatpush2.xpose.msra.mxu0 0.0
  %636 = vmatprep.subr.mxu0 0.0
  %637 = vmatpush2.xpose.msra.mxu0 0.0
  %638 = vmatprep.subr.mxu0 0.0
  %639 = vmatpush2.xpose.msra.mxu0 0.0
  %640 = vmatprep.subr.mxu0 0.0
  %641 = vmatpush2.xpose.msra.mxu0 0.0
  %642 = vmatprep.subr.mxu0 0.0
  %643 = vmatpush2.xpose.msra.mxu0 0.0
  %644 = vmatprep.subr.mxu0 0.0
  %645 = vmatpush2.xpose.msra.mxu0 0.0
  %646 = vmatprep.subr.mxu0 0.0
  %647 = vmatpush2.xpose.msra.mxu0 0.0
  %648 = vmatprep.subr.mxu0 0.0
  %649 = vmatpush2.xpose.msra.mxu0 0.0
  %650 = vmatprep.subr.mxu0 0.0
  %651 = vmatpush2.xpose.msra.mxu0 0.0
  %652 = vmatprep.subr.mxu0 0.0
  %653 = vmatpush2.xpose.msra.mxu0 0.0
  %654 = vmatprep.subr.mxu0 0.0
  %655 = vmatpush2.xpose.msra.mxu0 0.0
  %656 = vmatprep.subr.mxu0 0.0
  %657 = vmatpush2.xpose.msra.mxu0 0.0
  %658 = vmatprep.subr.mxu0 0.0
  %659 = vmatpush2.xpose.msra.mxu0 0.0
  %660 = vmatprep.subr.mxu0 0.0
  %661 = vmatpush2.xpose.msra.mxu0 0.0
  %662 = vmatprep.mubr.f32.mxu0 0.0
  %663 = vmatmul.mubr.f32.gmra.mxu0 %v594
  %v664 = vpop.f32.mrf.mxu0
  %v665 = vadd.f32 0.0, %v664
  %v666 = vpop.f32.mrf.mxu0
  %667 = vdwg.mxu0
  %v668 = vmul.f32 %v587, 0.25
  %v669 = vmul.f32 %v665, 0.25
  %v670 = vadd.f32 %v668, %v328
  %v671 = vadd.f32 %v669, %v332
  %v672 = vsel %vm337, %v670, -inf
  %673 = vmax.xlane.f32.xlu0 %v672
  %v674 = vpop.xlane.xlu0 %673
  %v675 = vsel %vm337, %v671, -inf
  %676 = vmax.xlane.f32.xlu0 %v675
  %v677 = vpop.xlane.xlu0 %676
  %v678 = vsub.f32 %v670, %v674
  %v679 = vsub.f32 %v671, %v677
  %v680 = vmul.f32 %v678, 1.442695
  %v681 = vpow.pop %v680
  %v682 = vmul.f32 %v679, 1.442695
  %v683 = vpow.pop %v682
  %v684 = vsel %vm337, %v681, 0.0
  %685 = vadd.xlane.f32.xlu0 %v684
  %v686 = vpop.xlane.xlu0 %685
  %v687 = vsel %vm337, %v683, 0.0
  %688 = vadd.xlane.f32.xlu0 %v687
  %v689 = vpop.xlane.xlu0 %688
  %v690 = vrcp.pop %v686
  %v691 = vrcp.pop %v689
  %v692 = vmul.f32 %v681, %v690
  %v693 = vmul.f32 %v683, %v691
  %694 = vrot.lane.b32.xlu0 %v134, 48
  %v695 = vpop.permute.xlu0 %694
  %v698 = vsel %vm337, %v692, 0
  %700 = vmatprep.subr.mxu0 0.0
  %701 = vmatpush1.msra.mxu0 0.0
  %702 = vmatprep.subr.mxu0 0.0
  %703 = vmatpush1.msra.mxu0 0.0
  %704 = vmatprep.subr.mxu0 0.0
  %705 = vmatpush1.msra.mxu0 0.0
  %706 = vmatprep.subr.mxu0 0.0
  %707 = vmatpush1.msra.mxu0 0.0
  %708 = vmatprep.subr.mxu0 0.0
  %709 = vmatpush1.msra.mxu0 0.0
  %710 = vmatprep.subr.mxu0 0.0
  %711 = vmatpush1.msra.mxu0 0.0
  %712 = vmatprep.subr.mxu0 0.0
  %713 = vmatpush1.msra.mxu0 0.0
  %714 = vmatprep.subr.mxu0 0.0
  %715 = vmatpush1.msra.mxu0 0.0
  %716 = vmatprep.subr.mxu0 0.0
  %717 = vmatpush1.msra.mxu0 0.0
  %718 = vmatprep.subr.mxu0 0.0
  %719 = vmatpush1.msra.mxu0 0.0
  %720 = vmatprep.subr.mxu0 0.0
  %721 = vmatpush1.msra.mxu0 0.0
  %722 = vmatprep.subr.mxu0 0.0
  %723 = vmatpush1.msra.mxu0 0.0
  %724 = vmatprep.subr.mxu0 0.0
  %725 = vmatpush1.msra.mxu0 0.0
  %726 = vmatprep.subr.mxu0 0.0
  %727 = vmatpush1.msra.mxu0 0.0
  %728 = vmatprep.subr.mxu0 0.0
  %729 = vmatpush1.msra.mxu0 0.0
  %730 = vmatprep.subr.mxu0 0.0
  %731 = vmatpush1.msra.mxu0 %v695
  %732 = vmatprep.subr.mxu0 0.0
  %733 = vmatpush2.msra.mxu0 0.0
  %734 = vmatprep.subr.mxu0 0.0
  %735 = vmatpush2.msra.mxu0 0.0
  %736 = vmatprep.subr.mxu0 0.0
  %737 = vmatpush2.msra.mxu0 0.0
  %738 = vmatprep.subr.mxu0 0.0
  %739 = vmatpush2.msra.mxu0 0.0
  %740 = vmatprep.subr.mxu0 0.0
  %741 = vmatpush2.msra.mxu0 0.0
  %742 = vmatprep.subr.mxu0 0.0
  %743 = vmatpush2.msra.mxu0 0.0
  %744 = vmatprep.subr.mxu0 0.0
  %745 = vmatpush2.msra.mxu0 0.0
  %746 = vmatprep.subr.mxu0 0.0
  %747 = vmatpush2.msra.mxu0 0.0
  %748 = vmatprep.subr.mxu0 0.0
  %749 = vmatpush2.msra.mxu0 0.0
  %750 = vmatprep.subr.mxu0 0.0
  %751 = vmatpush2.msra.mxu0 0.0
  %752 = vmatprep.subr.mxu0 0.0
  %753 = vmatpush2.msra.mxu0 0.0
  %754 = vmatprep.subr.mxu0 0.0
  %755 = vmatpush2.msra.mxu0 0.0
  %756 = vmatprep.subr.mxu0 0.0
  %757 = vmatpush2.msra.mxu0 0.0
  %758 = vmatprep.subr.mxu0 0.0
  %759 = vmatpush2.msra.mxu0 0.0
  %760 = vmatprep.subr.mxu0 0.0
  %761 = vmatpush2.msra.mxu0 0.0
  %762 = vmatprep.subr.mxu0 0.0
  %763 = vmatpush2.msra.mxu0 0.0
  %764 = vmatprep.mubr.f32.mxu0 0.0
  %765 = vmatmul.mubr.f32.gmra.mxu0 %v698
  %v766 = vpop.f32.mrf.mxu0
  %v767 = vadd.f32 0.0, %v766
  %v768 = vpop.f32.mrf.mxu0
  %769 = vdwg.mxu0
  %770 = vrot.lane.b32.xlu0 %v139, 48
  %v771 = vpop.permute.xlu0 %770
  %v774 = vsel %vm337, %v693, 0
  %776 = vmatprep.subr.mxu0 0.0
  %777 = vmatpush1.msra.mxu0 0.0
  %778 = vmatprep.subr.mxu0 0.0
  %779 = vmatpush1.msra.mxu0 0.0
  %780 = vmatprep.subr.mxu0 0.0
  %781 = vmatpush1.msra.mxu0 0.0
  %782 = vmatprep.subr.mxu0 0.0
  %783 = vmatpush1.msra.mxu0 0.0
  %784 = vmatprep.subr.mxu0 0.0
  %785 = vmatpush1.msra.mxu0 0.0
  %786 = vmatprep.subr.mxu0 0.0
  %787 = vmatpush1.msra.mxu0 0.0
  %788 = vmatprep.subr.mxu0 0.0
  %789 = vmatpush1.msra.mxu0 0.0
  %790 = vmatprep.subr.mxu0 0.0
  %791 = vmatpush1.msra.mxu0 0.0
  %792 = vmatprep.subr.mxu0 0.0
  %793 = vmatpush1.msra.mxu0 0.0
  %794 = vmatprep.subr.mxu0 0.0
  %795 = vmatpush1.msra.mxu0 0.0
  %796 = vmatprep.subr.mxu0 0.0
  %797 = vmatpush1.msra.mxu0 0.0
  %798 = vmatprep.subr.mxu0 0.0
  %799 = vmatpush1.msra.mxu0 0.0
  %800 = vmatprep.subr.mxu0 0.0
  %801 = vmatpush1.msra.mxu0 0.0
  %802 = vmatprep.subr.mxu0 0.0
  %803 = vmatpush1.msra.mxu0 0.0
  %804 = vmatprep.subr.mxu0 0.0
  %805 = vmatpush1.msra.mxu0 0.0
  %806 = vmatprep.subr.mxu0 0.0
  %807 = vmatpush1.msra.mxu0 %v771
  %808 = vmatprep.subr.mxu0 0.0
  %809 = vmatpush2.msra.mxu0 0.0
  %810 = vmatprep.subr.mxu0 0.0
  %811 = vmatpush2.msra.mxu0 0.0
  %812 = vmatprep.subr.mxu0 0.0
  %813 = vmatpush2.msra.mxu0 0.0
  %814 = vmatprep.subr.mxu0 0.0
  %815 = vmatpush2.msra.mxu0 0.0
  %816 = vmatprep.subr.mxu0 0.0
  %817 = vmatpush2.msra.mxu0 0.0
  %818 = vmatprep.subr.mxu0 0.0
  %819 = vmatpush2.msra.mxu0 0.0
  %820 = vmatprep.subr.mxu0 0.0
  %821 = vmatpush2.msra.mxu0 0.0
  %822 = vmatprep.subr.mxu0 0.0
  %823 = vmatpush2.msra.mxu0 0.0
  %824 = vmatprep.subr.mxu0 0.0
  %825 = vmatpush2.msra.mxu0 0.0
  %826 = vmatprep.subr.mxu0 0.0
  %827 = vmatpush2.msra.mxu0 0.0
  %828 = vmatprep.subr.mxu0 0.0
  %829 = vmatpush2.msra.mxu0 0.0
  %830 = vmatprep.subr.mxu0 0.0
  %831 = vmatpush2.msra.mxu0 0.0
  %832 = vmatprep.subr.mxu0 0.0
  %833 = vmatpush2.msra.mxu0 0.0
  %834 = vmatprep.subr.mxu0 0.0
  %835 = vmatpush2.msra.mxu0 0.0
  %836 = vmatprep.subr.mxu0 0.0
  %837 = vmatpush2.msra.mxu0 0.0
  %838 = vmatprep.subr.mxu0 0.0
  %839 = vmatpush2.msra.mxu0 0.0
  %840 = vmatprep.mubr.f32.mxu0 0.0
  %841 = vmatmul.mubr.f32.gmra.mxu0 %v774
  %v842 = vpop.f32.mrf.mxu0
  %v843 = vadd.f32 0.0, %v842
  %v844 = vpop.f32.mrf.mxu0
  %845 = vdwg.mxu0
  %848 = vrot.lane.b32.xlu0 %v767, 16
  %v849 = vpop.permute.xlu0 %848
  %850 = vrot.lane.b32.xlu0 %v843, 16
  %v851 = vpop.permute.xlu0 %850
  %v854 = vsel %vm171, %v433, %v849
  %v855 = vsel %vm171, %v509, %v851
  %v856 = vld [vmem:[%s4] sm:$0xff]
  %v857 = vld [vmem:[%s4 + $0x8] sm:$0xff]
  %v858 = vld [vmem:[%s4 + $0x10] sm:$0xff]
  %v859 = vld [vmem:[%s4 + $0x18] sm:$0xff]
  %v860 = vld [vmem:[%s5] sm:$0x1]
  %v862 = vlaneseq
  %v863 = vshrl.u32 %v862, 7
  %v864 = vsub.s32 0, %v863
  %v865 = vrot.slane %v860, %v864
  %v868 = vsel %vm60, %v854, 0
  %v871 = vsel %vm60, %v855, 0
  %873 = vmatprep.subr.mxu0 0.0
  %874 = vmatpush1.msra.mxu0 0.0
  %875 = vmatprep.subr.mxu0 0.0
  %876 = vmatpush1.msra.mxu0 0.0
  %877 = vmatprep.subr.mxu0 0.0
  %878 = vmatpush1.msra.mxu0 0.0
  %879 = vmatprep.subr.mxu0 0.0
  %880 = vmatpush1.msra.mxu0 0.0
  %881 = vmatprep.subr.mxu0 0.0
  %882 = vmatpush1.msra.mxu0 0.0
  %883 = vmatprep.subr.mxu0 0.0
  %884 = vmatpush1.msra.mxu0 0.0
  %885 = vmatprep.subr.mxu0 0.0
  %886 = vmatpush1.msra.mxu0 0.0
  %887 = vmatprep.subr.mxu0 0.0
  %888 = vmatpush1.msra.mxu0 0.0
  %889 = vmatprep.subr.mxu0 0.0
  %890 = vmatpush1.msra.mxu0 0.0
  %891 = vmatprep.subr.mxu0 0.0
  %892 = vmatpush1.msra.mxu0 0.0
  %893 = vmatprep.subr.mxu0 0.0
  %894 = vmatpush1.msra.mxu0 0.0
  %895 = vmatprep.subr.mxu0 0.0
  %896 = vmatpush1.msra.mxu0 0.0
  %897 = vmatprep.subr.mxu0 0.0
  %898 = vmatpush1.msra.mxu0 %v859
  %899 = vmatprep.subr.mxu0 0.0
  %900 = vmatpush1.msra.mxu0 %v858
  %901 = vmatprep.subr.mxu0 0.0
  %902 = vmatpush1.msra.mxu0 %v857
  %903 = vmatprep.subr.mxu0 0.0
  %904 = vmatpush1.msra.mxu0 %v856
  %905 = vmatprep.subr.mxu0 0.0
  %906 = vmatpush2.msra.mxu0 0.0
  %907 = vmatprep.subr.mxu0 0.0
  %908 = vmatpush2.msra.mxu0 0.0
  %909 = vmatprep.subr.mxu0 0.0
  %910 = vmatpush2.msra.mxu0 0.0
  %911 = vmatprep.subr.mxu0 0.0
  %912 = vmatpush2.msra.mxu0 0.0
  %913 = vmatprep.subr.mxu0 0.0
  %914 = vmatpush2.msra.mxu0 0.0
  %915 = vmatprep.subr.mxu0 0.0
  %916 = vmatpush2.msra.mxu0 0.0
  %917 = vmatprep.subr.mxu0 0.0
  %918 = vmatpush2.msra.mxu0 0.0
  %919 = vmatprep.subr.mxu0 0.0
  %920 = vmatpush2.msra.mxu0 0.0
  %921 = vmatprep.subr.mxu0 0.0
  %922 = vmatpush2.msra.mxu0 0.0
  %923 = vmatprep.subr.mxu0 0.0
  %924 = vmatpush2.msra.mxu0 0.0
  %925 = vmatprep.subr.mxu0 0.0
  %926 = vmatpush2.msra.mxu0 0.0
  %927 = vmatprep.subr.mxu0 0.0
  %928 = vmatpush2.msra.mxu0 0.0
  %929 = vmatprep.subr.mxu0 0.0
  %930 = vmatpush2.msra.mxu0 0.0
  %931 = vmatprep.subr.mxu0 0.0
  %932 = vmatpush2.msra.mxu0 0.0
  %933 = vmatprep.subr.mxu0 0.0
  %934 = vmatpush2.msra.mxu0 0.0
  %935 = vmatprep.subr.mxu0 0.0
  %936 = vmatpush2.msra.mxu0 0.0
  %937 = vmatprep.mubr.f32.mxu0 0.0
  %938 = vmatmul.mubr.f32.gmra.mxu0 %v868
  %v939 = vpop.f32.mrf.mxu0
  %v940 = vadd.f32 %v865, %v939
  %v941 = vpop.f32.mrf.mxu0
  %942 = vmatprep.mubr.f32.mxu0 0.0
  %943 = vmatmul.mubr.f32.gmra.mxu0 %v871
  %v944 = vpop.f32.mrf.mxu0
  %v945 = vadd.f32 %v865, %v944
  %v946 = vpop.f32.mrf.mxu0
  %947 = vdwg.mxu0
  %v948 = vadd.f32 %v47, %v940
  %v949 = vadd.f32 %v48, %v945
  %v950 = vld [vmem:[%s6] sm:$0x1]
  %v951 = vld [vmem:[%s7] sm:$0x1]
  %v952 = vsel %vm60, %v948, 0.0
  %953 = vadd.xlane.f32.xlu0 %v952
  %v954 = vpop.xlane.xlu0 %953
  %v955 = vsel %vm60, %v949, 0.0
  %956 = vadd.xlane.f32.xlu0 %v955
  %v957 = vpop.xlane.xlu0 %956
  %v958 = vrcp.pop 32.0
  %v959 = vmul.f32 %v954, %v958
  %v960 = vmul.f32 %v957, %v958
  %v961 = vsub.f32 %v948, %v959
  %v962 = vsub.f32 %v949, %v960
  %v963 = vmul.f32 %v961, %v961
  %v964 = vmul.f32 %v962, %v962
  %v965 = vsel %vm60, %v963, 0.0
  %966 = vadd.xlane.f32.xlu0 %v965
  %v967 = vpop.xlane.xlu0 %966
  %v968 = vsel %vm60, %v964, 0.0
  %969 = vadd.xlane.f32.xlu0 %v968
  %v970 = vpop.xlane.xlu0 %969
  %v971 = vmul.f32 %v967, %v958
  %v972 = vmul.f32 %v970, %v958
  %v973 = vadd.f32 %v971, 1e-12
  %v974 = vadd.f32 %v972, 1e-12
  %v975 = vrsqrt.pop %v973
  %v976 = vrsqrt.pop %v974
  %v977 = vmul.f32 %v961, %v975
  %v978 = vmul.f32 %v962, %v976
  %v980 = vlaneseq
  %v981 = vshrl.u32 %v980, 7
  %v982 = vsub.s32 0, %v981
  %v983 = vrot.slane %v950, %v982
  %v985 = vmul.f32 %v977, %v983
  %v986 = vmul.f32 %v978, %v983
  %v988 = vlaneseq
  %v989 = vshrl.u32 %v988, 7
  %v990 = vsub.s32 0, %v989
  %v991 = vrot.slane %v951, %v990
  %v993 = vadd.f32 %v985, %v991
  %v994 = vadd.f32 %v986, %v991
  %v995 = vld [vmem:[%s8] sm:$0xff]
  %v996 = vld [vmem:[%s8 + $0x8] sm:$0xff]
  %v997 = vld [vmem:[%s8 + $0x10] sm:$0xff]
  %v998 = vld [vmem:[%s8 + $0x18] sm:$0xff]
  %v999 = vld [vmem:[%s9] sm:$0x1]
  %v1001 = vlaneseq
  %v1002 = vshrl.u32 %v1001, 7
  %v1003 = vsub.s32 0, %v1002
  %v1004 = vrot.slane %v999, %v1003
  %v1007 = vsel %vm60, %v993, 0
  %v1010 = vsel %vm60, %v994, 0
  %1012 = vmatprep.subr.mxu0 0.0
  %1013 = vmatpush1.msra.mxu0 0.0
  %1014 = vmatprep.subr.mxu0 0.0
  %1015 = vmatpush1.msra.mxu0 0.0
  %1016 = vmatprep.subr.mxu0 0.0
  %1017 = vmatpush1.msra.mxu0 0.0
  %1018 = vmatprep.subr.mxu0 0.0
  %1019 = vmatpush1.msra.mxu0 0.0
  %1020 = vmatprep.subr.mxu0 0.0
  %1021 = vmatpush1.msra.mxu0 0.0
  %1022 = vmatprep.subr.mxu0 0.0
  %1023 = vmatpush1.msra.mxu0 0.0
  %1024 = vmatprep.subr.mxu0 0.0
  %1025 = vmatpush1.msra.mxu0 0.0
  %1026 = vmatprep.subr.mxu0 0.0
  %1027 = vmatpush1.msra.mxu0 0.0
  %1028 = vmatprep.subr.mxu0 0.0
  %1029 = vmatpush1.msra.mxu0 0.0
  %1030 = vmatprep.subr.mxu0 0.0
  %1031 = vmatpush1.msra.mxu0 0.0
  %1032 = vmatprep.subr.mxu0 0.0
  %1033 = vmatpush1.msra.mxu0 0.0
  %1034 = vmatprep.subr.mxu0 0.0
  %1035 = vmatpush1.msra.mxu0 0.0
  %1036 = vmatprep.subr.mxu0 0.0
  %1037 = vmatpush1.msra.mxu0 %v998
  %1038 = vmatprep.subr.mxu0 0.0
  %1039 = vmatpush1.msra.mxu0 %v997
  %1040 = vmatprep.subr.mxu0 0.0
  %1041 = vmatpush1.msra.mxu0 %v996
  %1042 = vmatprep.subr.mxu0 0.0
  %1043 = vmatpush1.msra.mxu0 %v995
  %1044 = vmatprep.subr.mxu0 0.0
  %1045 = vmatpush2.msra.mxu0 0.0
  %1046 = vmatprep.subr.mxu0 0.0
  %1047 = vmatpush2.msra.mxu0 0.0
  %1048 = vmatprep.subr.mxu0 0.0
  %1049 = vmatpush2.msra.mxu0 0.0
  %1050 = vmatprep.subr.mxu0 0.0
  %1051 = vmatpush2.msra.mxu0 0.0
  %1052 = vmatprep.subr.mxu0 0.0
  %1053 = vmatpush2.msra.mxu0 0.0
  %1054 = vmatprep.subr.mxu0 0.0
  %1055 = vmatpush2.msra.mxu0 0.0
  %1056 = vmatprep.subr.mxu0 0.0
  %1057 = vmatpush2.msra.mxu0 0.0
  %1058 = vmatprep.subr.mxu0 0.0
  %1059 = vmatpush2.msra.mxu0 0.0
  %1060 = vmatprep.subr.mxu0 0.0
  %1061 = vmatpush2.msra.mxu0 0.0
  %1062 = vmatprep.subr.mxu0 0.0
  %1063 = vmatpush2.msra.mxu0 0.0
  %1064 = vmatprep.subr.mxu0 0.0
  %1065 = vmatpush2.msra.mxu0 0.0
  %1066 = vmatprep.subr.mxu0 0.0
  %1067 = vmatpush2.msra.mxu0 0.0
  %1068 = vmatprep.subr.mxu0 0.0
  %1069 = vmatpush2.msra.mxu0 0.0
  %1070 = vmatprep.subr.mxu0 0.0
  %1071 = vmatpush2.msra.mxu0 0.0
  %1072 = vmatprep.subr.mxu0 0.0
  %1073 = vmatpush2.msra.mxu0 0.0
  %1074 = vmatprep.subr.mxu0 0.0
  %1075 = vmatpush2.msra.mxu0 0.0
  %1076 = vmatprep.mubr.f32.mxu0 0.0
  %1077 = vmatmul.mubr.f32.gmra.mxu0 %v1007
  %v1078 = vpop.f32.mrf.mxu0
  %v1079 = vadd.f32 %v1004, %v1078
  %v1080 = vpop.f32.mrf.mxu0
  %1081 = vmatprep.mubr.f32.mxu0 0.0
  %1082 = vmatmul.mubr.f32.gmra.mxu0 %v1010
  %v1083 = vpop.f32.mrf.mxu0
  %v1084 = vadd.f32 %v1004, %v1083
  %v1085 = vpop.f32.mrf.mxu0
  %1086 = vdwg.mxu0
  %v1087 = vmul.f32 %v1079, 0.5
  %v1088 = vmul.f32 %v1084, 0.5
  %v1089 = vmul.f32 %v1079, 0.044715
  %v1090 = vmul.f32 %v1084, 0.044715
  %v1091 = vmul.f32 %v1089, %v1079
  %v1092 = vmul.f32 %v1090, %v1084
  %v1093 = vmul.f32 %v1091, %v1079
  %v1094 = vmul.f32 %v1092, %v1084
  %v1095 = vadd.f32 %v1079, %v1093
  %v1096 = vadd.f32 %v1084, %v1094
  %v1097 = vmul.f32 %v1095, 0.7978846
  %v1098 = vmul.f32 %v1096, 0.7978846
  %v1099 = vtanh.pop %v1097
  %v1100 = vtanh.pop %v1098
  %v1101 = vadd.f32 %v1099, 1.0
  %v1102 = vadd.f32 %v1100, 1.0
  %v1103 = vmul.f32 %v1087, %v1101
  %v1104 = vmul.f32 %v1088, %v1102
  %v1105 = vld [vmem:[%s10] sm:$0xff]
  %v1106 = vld [vmem:[%s10 + $0x8] sm:$0xff]
  %v1107 = vld [vmem:[%s10 + $0x10] sm:$0xff]
  %v1108 = vld [vmem:[%s10 + $0x18] sm:$0xff]
  %v1109 = vld [vmem:[%s10 + $0x20] sm:$0xff]
  %v1110 = vld [vmem:[%s10 + $0x28] sm:$0xff]
  %v1111 = vld [vmem:[%s10 + $0x30] sm:$0xff]
  %v1112 = vld [vmem:[%s10 + $0x38] sm:$0xff]
  %v1113 = vld [vmem:[%s11] sm:$0x1]
  %v1115 = vlaneseq
  %v1116 = vshrl.u32 %v1115, 7
  %v1117 = vsub.s32 0, %v1116
  %v1118 = vrot.slane %v1113, %v1117
  %vm1120 = vcmask 523264
  %v1122 = vsel %vm1120, %v1103, 0
  %v1125 = vsel %vm1120, %v1104, 0
  %1127 = vmatprep.subr.mxu0 0.0
  %1128 = vmatpush1.msra.mxu0 0.0
  %1129 = vmatprep.subr.mxu0 0.0
  %1130 = vmatpush1.msra.mxu0 0.0
  %1131 = vmatprep.subr.mxu0 0.0
  %1132 = vmatpush1.msra.mxu0 0.0
  %1133 = vmatprep.subr.mxu0 0.0
  %1134 = vmatpush1.msra.mxu0 0.0
  %1135 = vmatprep.subr.mxu0 0.0
  %1136 = vmatpush1.msra.mxu0 0.0
  %1137 = vmatprep.subr.mxu0 0.0
  %1138 = vmatpush1.msra.mxu0 0.0
  %1139 = vmatprep.subr.mxu0 0.0
  %1140 = vmatpush1.msra.mxu0 0.0
  %1141 = vmatprep.subr.mxu0 0.0
  %1142 = vmatpush1.msra.mxu0 0.0
  %1143 = vmatprep.subr.mxu0 0.0
  %1144 = vmatpush1.msra.mxu0 %v1112
  %1145 = vmatprep.subr.mxu0 0.0
  %1146 = vmatpush1.msra.mxu0 %v1111
  %1147 = vmatprep.subr.mxu0 0.0
  %1148 = vmatpush1.msra.mxu0 %v1110
  %1149 = vmatprep.subr.mxu0 0.0
  %1150 = vmatpush1.msra.mxu0 %v1109
  %1151 = vmatprep.subr.mxu0 0.0
  %1152 = vmatpush1.msra.mxu0 %v1108
  %1153 = vmatprep.subr.mxu0 0.0
  %1154 = vmatpush1.msra.mxu0 %v1107
  %1155 = vmatprep.subr.mxu0 0.0
  %1156 = vmatpush1.msra.mxu0 %v1106
  %1157 = vmatprep.subr.mxu0 0.0
  %1158 = vmatpush1.msra.mxu0 %v1105
  %1159 = vmatprep.subr.mxu0 0.0
  %1160 = vmatpush2.msra.mxu0 0.0
  %1161 = vmatprep.subr.mxu0 0.0
  %1162 = vmatpush2.msra.mxu0 0.0
  %1163 = vmatprep.subr.mxu0 0.0
  %1164 = vmatpush2.msra.mxu0 0.0
  %1165 = vmatprep.subr.mxu0 0.0
  %1166 = vmatpush2.msra.mxu0 0.0
  %1167 = vmatprep.subr.mxu0 0.0
  %1168 = vmatpush2.msra.mxu0 0.0
  %1169 = vmatprep.subr.mxu0 0.0
  %1170 = vmatpush2.msra.mxu0 0.0
  %1171 = vmatprep.subr.mxu0 0.0
  %1172 = vmatpush2.msra.mxu0 0.0
  %1173 = vmatprep.subr.mxu0 0.0
  %1174 = vmatpush2.msra.mxu0 0.0
  %1175 = vmatprep.subr.mxu0 0.0
  %1176 = vmatpush2.msra.mxu0 0.0
  %1177 = vmatprep.subr.mxu0 0.0
  %1178 = vmatpush2.msra.mxu0 0.0
  %1179 = vmatprep.subr.mxu0 0.0
  %1180 = vmatpush2.msra.mxu0 0.0
  %1181 = vmatprep.subr.mxu0 0.0
  %1182 = vmatpush2.msra.mxu0 0.0
  %1183 = vmatprep.subr.mxu0 0.0
  %1184 = vmatpush2.msra.mxu0 0.0
  %1185 = vmatprep.subr.mxu0 0.0
  %1186 = vmatpush2.msra.mxu0 0.0
  %1187 = vmatprep.subr.mxu0 0.0
  %1188 = vmatpush2.msra.mxu0 0.0
  %1189 = vmatprep.subr.mxu0 0.0
  %1190 = vmatpush2.msra.mxu0 0.0
  %1191 = vmatprep.mubr.f32.mxu0 0.0
  %1192 = vmatmul.mubr.f32.gmra.mxu0 %v1122
  %v1193 = vpop.f32.mrf.mxu0
  %v1194 = vadd.f32 %v1118, %v1193
  %v1195 = vpop.f32.mrf.mxu0
  %1196 = vmatprep.mubr.f32.mxu0 0.0
  %1197 = vmatmul.mubr.f32.gmra.mxu0 %v1125
  %v1198 = vpop.f32.mrf.mxu0
  %v1199 = vadd.f32 %v1118, %v1198
  %v1200 = vpop.f32.mrf.mxu0
  %1201 = vdwg.mxu0
  %v1202 = vadd.f32 %v993, %v1194
  %v1203 = vadd.f32 %v994, %v1199
  %v1204 = vld [vmem:[%s12] sm:$0x1]
  %v1205 = vld [vmem:[%s13] sm:$0x1]
  %v1206 = vsel %vm60, %v1202, 0.0
  %1207 = vadd.xlane.f32.xlu0 %v1206
  %v1208 = vpop.xlane.xlu0 %1207
  %v1209 = vsel %vm60, %v1203, 0.0
  %1210 = vadd.xlane.f32.xlu0 %v1209
  %v1211 = vpop.xlane.xlu0 %1210
  %v1212 = vmul.f32 %v1208, %v958
  %v1213 = vmul.f32 %v1211, %v958
  %v1214 = vsub.f32 %v1202, %v1212
  %v1215 = vsub.f32 %v1203, %v1213
  %v1216 = vmul.f32 %v1214, %v1214
  %v1217 = vmul.f32 %v1215, %v1215
  %v1218 = vsel %vm60, %v1216, 0.0
  %1219 = vadd.xlane.f32.xlu0 %v1218
  %v1220 = vpop.xlane.xlu0 %1219
  %v1221 = vsel %vm60, %v1217, 0.0
  %1222 = vadd.xlane.f32.xlu0 %v1221
  %v1223 = vpop.xlane.xlu0 %1222
  %v1224 = vmul.f32 %v1220, %v958
  %v1225 = vmul.f32 %v1223, %v958
  %v1226 = vadd.f32 %v1224, 1e-12
  %v1227 = vadd.f32 %v1225, 1e-12
  %v1228 = vrsqrt.pop %v1226
  %v1229 = vrsqrt.pop %v1227
  %v1230 = vmul.f32 %v1214, %v1228
  %v1231 = vmul.f32 %v1215, %v1229
  %v1233 = vlaneseq
  %v1234 = vshrl.u32 %v1233, 7
  %v1235 = vsub.s32 0, %v1234
  %v1236 = vrot.slane %v1204, %v1235
  %v1238 = vmul.f32 %v1230, %v1236
  %v1239 = vmul.f32 %v1231, %v1236
  %v1241 = vlaneseq
  %v1242 = vshrl.u32 %v1241, 7
  %v1243 = vsub.s32 0, %v1242
  %v1244 = vrot.slane %v1205, %v1243
  %v1246 = vadd.f32 %v1238, %v1244
  %v1247 = vadd.f32 %v1239, %v1244
  %1248 = vst.msk [vmem:[%s14] sm:$0xff] %vm60, %v1246
  %1249 = vst.msk [vmem:[%s14 + $0x8] sm:$0xff] %vm60, %v1247
  // Predicated region
  $region58: #{classifier_forward.8} parent=0 // pred_check
    _
  $region59: #{classifier_forward.8} parent=0 // pred_check_branch
    %1251 = sbr.rel (0) target = $region61
  $region60: #{classifier_forward.8} parent=0 // pred_region
    _
  $region61: #{classifier_forward.8} parent=0 // pred_fallthru
    _
  // Predicated region
  $region62: #{classifier_forward.8} parent=0 // pred_check
    _
  $region63: #{classifier_forward.8} parent=0 // pred_check_branch
    %1253 = sbr.rel (0) target = $region65
  $region64: #{classifier_forward.8} parent=0 // pred_region
    _
  $region65: #{classifier_forward.8} parent=0 // pred_fallthru
    _

// kernel: classifier_forward.13
$region0: #{classifier_forward.13}
  #allocation0 [shape = 'u32[]', space=smem, size = 0x4, offset = 0x4, fixed_abs, tag = 'smem constant byte address 0x4 - core index']
  #allocation1 [shape = 'u32[144,128]{1,0:T(1,128)}', space=vmem, size = 0x12000, scoped, tag = 'internal scratch']
  %s0 = inlined_call_operand.vmem [shape: f32[16,32], index: 0, kind: input, shape index: {}]
  %s1 = inlined_call_operand.vmem [shape: f32[32,3], index: 1, kind: input, shape index: {}]
  %s2 = inlined_call_operand.vmem [shape: f32[1,3], index: 2, kind: input, shape index: {}]
  %s3 = inlined_call_operand.vmem [shape: f32[16,3], index: 3, kind: output, shape index: {}]
  %s4 = sld [smem:[#allocation0]]
  $region22: #{classifier_forward.13} parent=0
    _
  %s6 = ssub.s32 1, %s4
  %s7 = scalar_select 0, %s6, %s4
  // Predicated region
  $region2: #{classifier_forward.13} parent=0 // pred_check
    _
  $region3: #{classifier_forward.13} parent=0 // pred_check_branch
    %9 = sbr.rel (0) target = $region5
  $region4: #{classifier_forward.13} parent=0 // pred_region
    _
  $region5: #{classifier_forward.13} parent=0 // pred_fallthru
    _
  // Predicated region
  $region6: #{classifier_forward.13} parent=0 // pred_check
    _
  $region7: #{classifier_forward.13} parent=0 // pred_check_branch
    %11 = sbr.rel (0) target = $region9
  $region8: #{classifier_forward.13} parent=0 // pred_region
    _
  $region9: #{classifier_forward.13} parent=0 // pred_fallthru
    _
  // Predicated region
  $region10: #{classifier_forward.13} parent=0 // pred_check
    _
  $region11: #{classifier_forward.13} parent=0 // pred_check_branch
    %13 = sbr.rel (0) target = $region13
  $region12: #{classifier_forward.13} parent=0 // pred_region
    _
  $region13: #{classifier_forward.13} parent=0 // pred_fallthru
    _
  %v14 = vld [vmem:[%s0] sm:$0xff]
  %v15 = vld [vmem:[%s0 + $0x8] sm:$0xff]
  %v16 = vld [vmem:[%s1] sm:$0xff]
  %v17 = vld [vmem:[%s1 + $0x8] sm:$0xff]
  %v18 = vld [vmem:[%s1 + $0x10] sm:$0xff]
  %v19 = vld [vmem:[%s1 + $0x18] sm:$0xff]
  %v20 = vld [vmem:[%s2] sm:$0x1]
  %v22 = vlaneseq
  %v23 = vshrl.u32 %v22, 7
  %v24 = vsub.s32 0, %v23
  %v25 = vrot.slane %v20, %v24
  %vm27 = vcmask 261120
  %v29 = vsel %vm27, %v14, 0
  %v32 = vsel %vm27, %v15, 0
  %34 = vmatprep.subr.mxu0 0.0
  %35 = vmatpush1.msra.mxu0 0.0
  %36 = vmatprep.subr.mxu0 0.0
  %37 = vmatpush1.msra.mxu0 0.0
  %38 = vmatprep.subr.mxu0 0.0
  %39 = vmatpush1.msra.mxu0 0.0
  %40 = vmatprep.subr.mxu0 0.0
  %41 = vmatpush1.msra.mxu0 0.0
  %42 = vmatprep.subr.mxu0 0.0
  %43 = vmatpush1.msra.mxu0 0.0
  %44 = vmatprep.subr.mxu0 0.0
  %45 = vmatpush1.msra.mxu0 0.0
  %46 = vmatprep.subr.mxu0 0.0
  %47 = vmatpush1.msra.mxu0 0.0
  %48 = vmatprep.subr.mxu0 0.0
  %49 = vmatpush1.msra.mxu0 0.0
  %50 = vmatprep.subr.mxu0 0.0
  %51 = vmatpush1.msra.mxu0 0.0
  %52 = vmatprep.subr.mxu0 0.0
  %53 = vmatpush1.msra.mxu0 0.0
  %54 = vmatprep.subr.mxu0 0.0
  %55 = vmatpush1.msra.mxu0 0.0
  %56 = vmatprep.subr.mxu0 0.0
  %57 = vmatpush1.msra.mxu0 0.0
  %58 = vmatprep.subr.mxu0 0.0
  %59 = vmatpush1.msra.mxu0 %v19
  %60 = vmatprep.subr.mxu0 0.0
  %61 = vmatpush1.msra.mxu0 %v18
  %62 = vmatprep.subr.mxu0 0.0
  %63 = vmatpush1.msra.mxu0 %v17
  %64 = vmatprep.subr.mxu0 0.0
  %65 = vmatpush1.msra.mxu0 %v16
  %66 = vmatprep.subr.mxu0 0.0
  %67 = vmatpush2.msra.mxu0 0.0
  %68 = vmatprep.subr.mxu0 0.0
  %69 = vmatpush2.msra.mxu0 0.0
  %70 = vmatprep.subr.mxu0 0.0
  %71 = vmatpush2.msra.mxu0 0.0
  %72 = vmatprep.subr.mxu0 0.0
  %73 = vmatpush2.msra.mxu0 0.0
  %74 = vmatprep.subr.mxu0 0.0
  %75 = vmatpush2.msra.mxu0 0.0
  %76 = vmatprep.subr.mxu0 0.0
  %77 = vmatpush2.msra.mxu0 0.0
  %78 = vmatprep.subr.mxu0 0.0
  %79 = vmatpush2.msra.mxu0 0.0
  %80 = vmatprep.subr.mxu0 0.0
  %81 = vmatpush2.msra.mxu0 0.0
  %82 = vmatprep.subr.mxu0 0.0
  %83 = vmatpush2.msra.mxu0 0.0
  %84 = vmatprep.subr.mxu0 0.0
  %85 = vmatpush2.msra.mxu0 0.0
  %86 = vmatprep.subr.mxu0 0.0
  %87 = vmatpush2.msra.mxu0 0.0
  %88 = vmatprep.subr.mxu0 0.0
  %89 = vmatpush2.msra.mxu0 0.0
  %90 = vmatprep.subr.mxu0 0.0
  %91 = vmatpush2.msra.mxu0 0.0
  %92 = vmatprep.subr.mxu0 0.0
  %93 = vmatpush2.msra.mxu0 0.0
  %94 = vmatprep.subr.mxu0 0.0
  %95 = vmatpush2.msra.mxu0 0.0
  %96 = vmatprep.subr.mxu0 0.0
  %97 = vmatpush2.msra.mxu0 0.0
  %98 = vmatprep.mubr.f32.mxu0 0.0
  %99 = vmatmul.mubr.f32.gmra.mxu0 %v29
  %v100 = vpop.f32.mrf.mxu0
  %v101 = vadd.f32 %v25, %v100
  %v102 = vpop.f32.mrf.mxu0
  %103 = vmatprep.mubr.f32.mxu0 0.0
  %104 = vmatmul.mubr.f32.gmra.mxu0 %v32
  %v105 = vpop.f32.mrf.mxu0
  %v106 = vadd.f32 %v25, %v105
  %v107 = vpop.f32.mrf.mxu0
  %108 = vdwg.mxu0
  %vm109 = vcmask 23552
  %110 = vst.msk [vmem:[%s3] sm:$0xff] %vm109, %v101
  %111 = vst.msk [vmem:[%s3 + $0x8] sm:$0xff] %vm109, %v106
  // Predicated region
  $region14: #{classifier_forward.13} parent=0 // pred_check
    _
  $region15: #{classifier_forward.13} parent=0 // pred_check_branch
    %113 = sbr.rel (0) target = $region17
  $region16: #{classifier_forward.13} parent=0 // pred_region
    _
  $region17: #{classifier_forward.13} parent=0 // pred_fallthru
    _
  // Predicated region
  $region18: #{classifier_forward.13} parent=0 // pred_check
    _
  $region19: #{classifier_forward.13} parent=0 // pred_check_branch
    %115 = sbr.rel (0) target = $region21
  $region20: #{classifier_forward.13} parent=0 // pred_region
    _
  $region21: #{classifier_forward.13} parent=0 // pred_fallthru
    _

// kernel: classifier_forward.11
$region0: #{classifier_forward.11}
  #allocation0 [shape = 'u32[]', space=smem, size = 0x4, offset = 0x4, fixed_abs, tag = 'smem constant byte address 0x4 - core index']
  #allocation1 [shape = 'u32[144,128]{1,0:T(1,128)}', space=vmem, size = 0x12000, scoped, tag = 'internal scratch']
  %s0 = inlined_call_operand.vmem [shape: f32[16,32], index: 0, kind: input, shape index: {}]
  %s1 = inlined_call_operand.vmem [shape: f32[2,32], index: 1, kind: input, shape index: {}]
  %s2 = inlined_call_operand.vmem [shape: f32[2,8], index: 2, kind: input, shape index: {}]
  %s3 = inlined_call_operand.vmem [shape: f32[32,96], index: 3, kind: input, shape index: {}]
  %s4 = inlined_call_operand.vmem [shape: f32[1,96], index: 4, kind: input, shape index: {}]
  %s5 = inlined_call_operand.vmem [shape: f32[32,32], index: 5, kind: input, shape index: {}]
  %s6 = inlined_call_operand.vmem [shape: f32[1,32], index: 6, kind: input, shape index: {}]
  %s7 = inlined_call_operand.vmem [shape: f32[1,32], index: 7, kind: input, shape index: {}]
  %s8 = inlined_call_operand.vmem [shape: f32[1,32], index: 8, kind: input, shape index: {}]
  %s9 = inlined_call_operand.vmem [shape: f32[32,32], index: 9, kind: input, shape index: {}]
  %s10 = inlined_call_operand.vmem [shape: f32[1,32], index: 10, kind: input, shape index: {}]
  %s11 = inlined_call_operand.vmem [shape: f32[32,32], index: 11, kind: input, shape index: {}]
  %s12 = inlined_call_operand.vmem [shape: f32[1,32], index: 12, kind: input, shape index: {}]
  %s13 = inlined_call_operand.vmem [shape: f32[1,32], index: 13, kind: input, shape index: {}]
  %s14 = inlined_call_operand.vmem [shape: f32[1,32], index: 14, kind: input, shape index: {}]
  %s15 = inlined_call_operand.vmem [shape: f32[32,64], index: 15, kind: input, shape index: {}]
  %s16 = inlined_call_operand.vmem [shape: f32[1,64], index: 16, kind: input, shape index: {}]
  %s17 = inlined_call_operand.vmem [shape: f32[64,32], index: 17, kind: input, shape index: {}]
  %s18 = inlined_call_operand.vmem [shape: f32[1,32], index: 18, kind: input, shape index: {}]
  %s19 = inlined_call_operand.vmem [shape: f32[1,32], index: 19, kind: input, shape index: {}]
  %s20 = inlined_call_operand.vmem [shape: f32[1,32], index: 20, kind: input, shape index: {}]
  %s21 = inlined_call_operand.vmem [shape: f32[16,32], index: 21, kind: output, shape index: {}]
  %s22 = sld [smem:[#allocation0]]
  $region94: #{classifier_forward.11} parent=0
    _
  %s24 = ssub.s32 1, %s22
  %s25 = scalar_select 0, %s24, %s22
  // Predicated region
  $region2: #{classifier_forward.11} parent=0 // pred_check
    _
  $region3: #{classifier_forward.11} parent=0 // pred_check_branch
    %27 = sbr.rel (0) target = $region5
  $region4: #{classifier_forward.11} parent=0 // pred_region
    _
  $region5: #{classifier_forward.11} parent=0 // pred_fallthru
    _
  // Predicated region
  $region6: #{classifier_forward.11} parent=0 // pred_check
    _
  $region7: #{classifier_forward.11} parent=0 // pred_check_branch
    %29 = sbr.rel (0) target = $region9
  $region8: #{classifier_forward.11} parent=0 // pred_region
    _
  $region9: #{classifier_forward.11} parent=0 // pred_fallthru
    _
  // Predicated region
  $region10: #{classifier_forward.11} parent=0 // pred_check
    _
  $region11: #{classifier_forward.11} parent=0 // pred_check_branch
    %31 = sbr.rel (0) target = $region13
  $region12: #{classifier_forward.11} parent=0 // pred_region
    _
  $region13: #{classifier_forward.11} parent=0 // pred_fallthru
    _
  // Predicated region
  $region14: #{classifier_forward.11} parent=0 // pred_check
    _
  $region15: #{classifier_forward.11} parent=0 // pred_check_branch
    %33 = sbr.rel (0) target = $region17
  $region16: #{classifier_forward.11} parent=0 // pred_region
    _
  $region17: #{classifier_forward.11} parent=0 // pred_fallthru
    _
  // Predicated region
  $region18: #{classifier_forward.11} parent=0 // pred_check
    _
  $region19: #{classifier_forward.11} parent=0 // pred_check_branch
    %35 = sbr.rel (0) target = $region21
  $region20: #{classifier_forward.11} parent=0 // pred_region
    _
  $region21: #{classifier_forward.11} parent=0 // pred_fallthru
    _
  // Predicated region
  $region22: #{classifier_forward.11} parent=0 // pred_check
    _
  $region23: #{classifier_forward.11} parent=0 // pred_check_branch
    %37 = sbr.rel (0) target = $region25
  $region24: #{classifier_forward.11} parent=0 // pred_region
    _
  $region25: #{classifier_forward.11} parent=0 // pred_fallthru
    _
  // Predicated region
  $region26: #{classifier_forward.11} parent=0 // pred_check
    _
  $region27: #{classifier_forward.11} parent=0 // pred_check_branch
    %39 = sbr.rel (0) target = $region29
  $region28: #{classifier_forward.11} parent=0 // pred_region
    _
  $region29: #{classifier_forward.11} parent=0 // pred_fallthru
    _
  // Predicated region
  $region30: #{classifier_forward.11} parent=0 // pred_check
    _
  $region31: #{classifier_forward.11} parent=0 // pred_check_branch
    %41 = sbr.rel (0) target = $region33
  $region32: #{classifier_forward.11} parent=0 // pred_region
    _
  $region33: #{classifier_forward.11} parent=0 // pred_fallthru
    _
  // Predicated region
  $region34: #{classifier_forward.11} parent=0 // pred_check
    _
  $region35: #{classifier_forward.11} parent=0 // pred_check_branch
    %43 = sbr.rel (0) target = $region37
  $region36: #{classifier_forward.11} parent=0 // pred_region
    _
  $region37: #{classifier_forward.11} parent=0 // pred_fallthru
    _
  // Predicated region
  $region38: #{classifier_forward.11} parent=0 // pred_check
    _
  $region39: #{classifier_forward.11} parent=0 // pred_check_branch
    %45 = sbr.rel (0) target = $region41
  $region40: #{classifier_forward.11} parent=0 // pred_region
    _
  $region41: #{classifier_forward.11} parent=0 // pred_fallthru
    _
  // Predicated region
  $region42: #{classifier_forward.11} parent=0 // pred_check
    _
  $region43: #{classifier_forward.11} parent=0 // pred_check_branch
    %47 = sbr.rel (0) target = $region45
  $region44: #{classifier_forward.11} parent=0 // pred_region
    _
  $region45: #{classifier_forward.11} parent=0 // pred_fallthru
    _
  // Predicated region
  $region46: #{classifier_forward.11} parent=0 // pred_check
    _
  $region47: #{classifier_forward.11} parent=0 // pred_check_branch
    %49 = sbr.rel (0) target = $region49
  $region48: #{classifier_forward.11} parent=0 // pred_region
    _
  $region49: #{classifier_forward.11} parent=0 // pred_fallthru
    _
  // Predicated region
  $region50: #{classifier_forward.11} parent=0 // pred_check
    _
  $region51: #{classifier_forward.11} parent=0 // pred_check_branch
    %51 = sbr.rel (0) target = $region53
  $region52: #{classifier_forward.11} parent=0 // pred_region
    _
  $region53: #{classifier_forward.11} parent=0 // pred_fallthru
    _
  // Predicated region
  $region54: #{classifier_forward.11} parent=0 // pred_check
    _
  $region55: #{classifier_forward.11} parent=0 // pred_check_branch
    %53 = sbr.rel (0) target = $region57
  $region56: #{classifier_forward.11} parent=0 // pred_region
    _
  $region57: #{classifier_forward.11} parent=0 // pred_fallthru
    _
  // Predicated region
  $region58: #{classifier_forward.11} parent=0 // pred_check
    _
  $region59: #{classifier_forward.11} parent=0 // pred_check_branch
    %55 = sbr.rel (0) target = $region61
  $region60: #{classifier_forward.11} parent=0 // pred_region
    _
  $region61: #{classifier_forward.11} parent=0 // pred_fallthru
    _
  // Predicated region
  $region62: #{classifier_forward.11} parent=0 // pred_check
    _
  $region63: #{classifier_forward.11} parent=0 // pred_check_branch
    %57 = sbr.rel (0) target = $region65
  $region64: #{classifier_forward.11} parent=0 // pred_region
    _
  $region65: #{classifier_forward.11} parent=0 // pred_fallthru
    _
  // Predicated region
  $region66: #{classifier_forward.11} parent=0 // pred_check
    _
  $region67: #{classifier_forward.11} parent=0 // pred_check_branch
    %59 = sbr.rel (0) target = $region69
  $region68: #{classifier_forward.11} parent=0 // pred_region
    _
  $region69: #{classifier_forward.11} parent=0 // pred_fallthru
    _
  // Predicated region
  $region70: #{classifier_forward.11} parent=0 // pred_check
    _
  $region71: #{classifier_forward.11} parent=0 // pred_check_branch
    %61 = sbr.rel (0) target = $region73
  $region72: #{classifier_forward.11} parent=0 // pred_region
    _
  $region73: #{classifier_forward.11} parent=0 // pred_fallthru
    _
  // Predicated region
  $region74: #{classifier_forward.11} parent=0 // pred_check
    _
  $region75: #{classifier_forward.11} parent=0 // pred_check_branch
    %63 = sbr.rel (0) target = $region77
  $region76: #{classifier_forward.11} parent=0 // pred_region
    _
  $region77: #{classifier_forward.11} parent=0 // pred_fallthru
    _
  // Predicated region
  $region78: #{classifier_forward.11} parent=0 // pred_check
    _
  $region79: #{classifier_forward.11} parent=0 // pred_check_branch
    %65 = sbr.rel (0) target = $region81
  $region80: #{classifier_forward.11} parent=0 // pred_region
    _
  $region81: #{classifier_forward.11} parent=0 // pred_fallthru
    _
  // Predicated region
  $region82: #{classifier_forward.11} parent=0 // pred_check
    _
  $region83: #{classifier_forward.11} parent=0 // pred_check_branch
    %67 = sbr.rel (0) target = $region85
  $region84: #{classifier_forward.11} parent=0 // pred_region
    _
  $region85: #{classifier_forward.11} parent=0 // pred_fallthru
    _
  %v68 = vld [vmem:[%s0] sm:$0xff]
  %v69 = vld [vmem:[%s0 + $0x8] sm:$0xff]
  %v70 = vlaneseq
  %v71 = vshrl.u32 %v70, 7
  %v72 = vlaneseq
  %v73 = vand.u32 %v72, 127
  %vm74 = vcmp.ge.s32.totalorder %v71, %v73
  %v75 = vsel %vm74, 0.0, -1e+09
  %v76 = vld [vmem:[%s2] sm:$0x3]
  %v77 = vsub.f32 1.0, %v76
  %v78 = vmul.f32 %v77, -1e+09
  %v81 = vunpack.c.l.s4 1966171168
  %v82 = vunpack.c.0.s8 %v81
  %v83 = vlaneseq
  %v84 = vshrl.u32 %v83, 7
  %v85 = vsub.s32 %v82, %v84
  %v86 = vrot.slane %v78, %v85
  %v87 = vcombine.high %v86, %v86
  %v89 = vunpack.c.l.s4 1966171168
  %v90 = vunpack.c.0.s8 %v89
  %v91 = vlaneseq
  %v92 = vshrl.u32 %v91, 7
  %v93 = vsub.s32 %v90, %v92
  %v94 = vrot.slane %v86, %v93
  %v96 = vunpack.c.l.s4 1966171168
  %v97 = vunpack.c.0.s8 %v96
  %v98 = vlaneseq
  %v99 = vshrl.u32 %v98, 7
  %v100 = vsub.s32 %v97, %v99
  %v101 = vrot.slane %v87, %v100
  %v102 = vlaneseq
  %v103 = vshrl.u32 %v102, 7
  %v104 = vsub.s32 0, %v103
  %v105 = vrot.slane %v94, %v104
  %v106 = vlaneseq
  %v107 = vshrl.u32 %v106, 7
  %v108 = vsub.s32 0, %v107
  %v109 = vrot.slane %v101, %v108
  %v112 = vadd.f32 %v75, %v105
  %v113 = vadd.f32 %v75, %v109
  %v114 = vld [vmem:[%s3] sm:$0xff]
  %v115 = vld [vmem:[%s3 + $0x8] sm:$0xff]
  %v116 = vld [vmem:[%s3 + $0x10] sm:$0xff]
  %v117 = vld [vmem:[%s3 + $0x18] sm:$0xff]
  %v118 = vld [vmem:[%s4] sm:$0x1]
  %v120 = vlaneseq
  %v121 = vshrl.u32 %v120, 7
  %v122 = vsub.s32 0, %v121
  %v123 = vrot.slane %v118, %v122
  %vm125 = vcmask 261120
  %v127 = vsel %vm125, %v68, 0
  %v130 = vsel %vm125, %v69, 0
  %132 = vmatprep.subr.mxu0 0.0
  %133 = vmatpush1.msra.mxu0 0.0
  %134 = vmatprep.subr.mxu0 0.0
  %135 = vmatpush1.msra.mxu0 0.0
  %136 = vmatprep.subr.mxu0 0.0
  %137 = vmatpush1.msra.mxu0 0.0
  %138 = vmatprep.subr.mxu0 0.0
  %139 = vmatpush1.msra.mxu0 0.0
  %140 = vmatprep.subr.mxu0 0.0
  %141 = vmatpush1.msra.mxu0 0.0
  %142 = vmatprep.subr.mxu0 0.0
  %143 = vmatpush1.msra.mxu0 0.0
  %144 = vmatprep.subr.mxu0 0.0
  %145 = vmatpush1.msra.mxu0 0.0
  %146 = vmatprep.subr.mxu0 0.0
  %147 = vmatpush1.msra.mxu0 0.0
  %148 = vmatprep.subr.mxu0 0.0
  %149 = vmatpush1.msra.mxu0 0.0
  %150 = vmatprep.subr.mxu0 0.0
  %151 = vmatpush1.msra.mxu0 0.0
  %152 = vmatprep.subr.mxu0 0.0
  %153 = vmatpush1.msra.mxu0 0.0
  %154 = vmatprep.subr.mxu0 0.0
  %155 = vmatpush1.msra.mxu0 0.0
  %156 = vmatprep.subr.mxu0 0.0
  %157 = vmatpush1.msra.mxu0 %v117
  %158 = vmatprep.subr.mxu0 0.0
  %159 = vmatpush1.msra.mxu0 %v116
  %160 = vmatprep.subr.mxu0 0.0
  %161 = vmatpush1.msra.mxu0 %v115
  %162 = vmatprep.subr.mxu0 0.0
  %163 = vmatpush1.msra.mxu0 %v114
  %164 = vmatprep.subr.mxu0 0.0
  %165 = vmatpush2.msra.mxu0 0.0
  %166 = vmatprep.subr.mxu0 0.0
  %167 = vmatpush2.msra.mxu0 0.0
  %168 = vmatprep.subr.mxu0 0.0
  %169 = vmatpush2.msra.mxu0 0.0
  %170 = vmatprep.subr.mxu0 0.0
  %171 = vmatpush2.msra.mxu0 0.0
  %172 = vmatprep.subr.mxu0 0.0
  %173 = vmatpush2.msra.mxu0 0.0
  %174 = vmatprep.subr.mxu0 0.0
  %175 = vmatpush2.msra.mxu0 0.0
  %176 = vmatprep.subr.mxu0 0.0
  %177 = vmatpush2.msra.mxu0 0.0
  %178 = vmatprep.subr.mxu0 0.0
  %179 = vmatpush2.msra.mxu0 0.0
  %180 = vmatprep.subr.mxu0 0.0
  %181 = vmatpush2.msra.mxu0 0.0
  %182 = vmatprep.subr.mxu0 0.0
  %183 = vmatpush2.msra.mxu0 0.0
  %184 = vmatprep.subr.mxu0 0.0
  %185 = vmatpush2.msra.mxu0 0.0
  %186 = vmatprep.subr.mxu0 0.0
  %187 = vmatpush2.msra.mxu0 0.0
  %188 = vmatprep.subr.mxu0 0.0
  %189 = vmatpush2.msra.mxu0 0.0
  %190 = vmatprep.subr.mxu0 0.0
  %191 = vmatpush2.msra.mxu0 0.0
  %192 = vmatprep.subr.mxu0 0.0
  %193 = vmatpush2.msra.mxu0 0.0
  %194 = vmatprep.subr.mxu0 0.0
  %195 = vmatpush2.msra.mxu0 0.0
  %196 = vmatprep.mubr.f32.mxu0 0.0
  %197 = vmatmul.mubr.f32.gmra.mxu0 %v127
  %v198 = vpop.f32.mrf.mxu0
  %v199 = vadd.f32 %v123, %v198
  %v200 = vpop.f32.mrf.mxu0
  %201 = vmatprep.mubr.f32.mxu0 0.0
  %202 = vmatmul.mubr.f32.gmra.mxu0 %v130
  %v203 = vpop.f32.mrf.mxu0
  %v204 = vadd.f32 %v123, %v203
  %v205 = vpop.f32.mrf.mxu0
  %206 = vdwg.mxu0
  %208 = vrot.lane.b32.xlu0 %v199, 96
  %v209 = vpop.permute.xlu0 %208
  %vm210 = vcmask 130048
  %v211 = vsel %vm210, %v199, 0
  %v213 = vsel %vm210, %v209, 0
  %215 = vmatprep.subr.mxu0 0.0
  %216 = vmatpush1.xpose.msra.mxu0 0.0
  %217 = vmatprep.subr.mxu0 0.0
  %218 = vmatpush1.xpose.msra.mxu0 0.0
  %219 = vmatprep.subr.mxu0 0.0
  %220 = vmatpush1.xpose.msra.mxu0 0.0
  %221 = vmatprep.subr.mxu0 0.0
  %222 = vmatpush1.xpose.msra.mxu0 0.0
  %223 = vmatprep.subr.mxu0 0.0
  %224 = vmatpush1.xpose.msra.mxu0 0.0
  %225 = vmatprep.subr.mxu0 0.0
  %226 = vmatpush1.xpose.msra.mxu0 0.0
  %227 = vmatprep.subr.mxu0 0.0
  %228 = vmatpush1.xpose.msra.mxu0 0.0
  %229 = vmatprep.subr.mxu0 0.0
  %230 = vmatpush1.xpose.msra.mxu0 0.0
  %231 = vmatprep.subr.mxu0 0.0
  %232 = vmatpush1.xpose.msra.mxu0 0.0
  %233 = vmatprep.subr.mxu0 0.0
  %234 = vmatpush1.xpose.msra.mxu0 0.0
  %235 = vmatprep.subr.mxu0 0.0
  %236 = vmatpush1.xpose.msra.mxu0 0.0
  %237 = vmatprep.subr.mxu0 0.0
  %238 = vmatpush1.xpose.msra.mxu0 0.0
  %239 = vmatprep.subr.mxu0 0.0
  %240 = vmatpush1.xpose.msra.mxu0 0.0
  %241 = vmatprep.subr.mxu0 0.0
  %242 = vmatpush1.xpose.msra.mxu0 0.0
  %243 = vmatprep.subr.mxu0 0.0
  %244 = vmatpush1.xpose.msra.mxu0 0.0
  %245 = vmatprep.subr.mxu0 0.0
  %246 = vmatpush1.xpose.msra.mxu0 %v213
  %247 = vmatprep.subr.mxu0 0.0
  %248 = vmatpush2.xpose.msra.mxu0 0.0
  %249 = vmatprep.subr.mxu0 0.0
  %250 = vmatpush2.xpose.msra.mxu0 0.0
  %251 = vmatprep.subr.mxu0 0.0
  %252 = vmatpush2.xpose.msra.mxu0 0.0
  %253 = vmatprep.subr.mxu0 0.0
  %254 = vmatpush2.xpose.msra.mxu0 0.0
  %255 = vmatprep.subr.mxu0 0.0
  %256 = vmatpush2.xpose.msra.mxu0 0.0
  %257 = vmatprep.subr.mxu0 0.0
  %258 = vmatpush2.xpose.msra.mxu0 0.0
  %259 = vmatprep.subr.mxu0 0.0
  %260 = vmatpush2.xpose.msra.mxu0 0.0
  %261 = vmatprep.subr.mxu0 0.0
  %262 = vmatpush2.xpose.msra.mxu0 0.0
  %263 = vmatprep.subr.mxu0 0.0
  %264 = vmatpush2.xpose.msra.mxu0 0.0
  %265 = vmatprep.subr.mxu0 0.0
  %266 = vmatpush2.xpose.msra.mxu0 0.0
  %267 = vmatprep.subr.mxu0 0.0
  %268 = vmatpush2.xpose.msra.mxu0 0.0
  %269 = vmatprep.subr.mxu0 0.0
  %270 = vmatpush2.xpose.msra.mxu0 0.0
  %271 = vmatprep.subr.mxu0 0.0
  %272 = vmatpush2.xpose.msra.mxu0 0.0
  %273 = vmatprep.subr.mxu0 0.0
  %274 = vmatpush2.xpose.msra.mxu0 0.0
  %275 = vmatprep.subr.mxu0 0.0
  %276 = vmatpush2.xpose.msra.mxu0 0.0
  %277 = vmatprep.subr.mxu0 0.0
  %278 = vmatpush2.xpose.msra.mxu0 0.0
  %279 = vmatprep.mubr.f32.mxu0 0.0
  %280 = vmatmul.mubr.f32.gmra.mxu0 %v211
  %v281 = vpop.f32.mrf.mxu0
  %v282 = vadd.f32 0.0, %v281
  %v283 = vpop.f32.mrf.mxu0
  %284 = vdwg.mxu0
  %286 = vrot.lane.b32.xlu0 %v204, 96
  %v287 = vpop.permute.xlu0 %286
  %v288 = vsel %vm210, %v204, 0
  %v290 = vsel %vm210, %v287, 0
  %292 = vmatprep.subr.mxu0 0.0
  %293 = vmatpush1.xpose.msra.mxu0 0.0
  %294 = vmatprep.subr.mxu0 0.0
  %295 = vmatpush1.xpose.msra.mxu0 0.0
  %296 = vmatprep.subr.mxu0 0.0
  %297 = vmatpush1.xpose.msra.mxu0 0.0
  %298 = vmatprep.subr.mxu0 0.0
  %299 = vmatpush1.xpose.msra.mxu0 0.0
  %300 = vmatprep.subr.mxu0 0.0
  %301 = vmatpush1.xpose.msra.mxu0 0.0
  %302 = vmatprep.subr.mxu0 0.0
  %303 = vmatpush1.xpose.msra.mxu0 0.0
  %304 = vmatprep.subr.mxu0 0.0
  %305 = vmatpush1.xpose.msra.mxu0 0.0
  %306 = vmatprep.subr.mxu0 0.0
  %307 = vmatpush1.xpose.msra.mxu0 0.0
  %308 = vmatprep.subr.mxu0 0.0
  %309 = vmatpush1.xpose.msra.mxu0 0.0
  %310 = vmatprep.subr.mxu0 0.0
  %311 = vmatpush1.xpose.msra.mxu0 0.0
  %312 = vmatprep.subr.mxu0 0.0
  %313 = vmatpush1.xpose.msra.mxu0 0.0
  %314 = vmatprep.subr.mxu0 0.0
  %315 = vmatpush1.xpose.msra.mxu0 0.0
  %316 = vmatprep.subr.mxu0 0.0
  %317 = vmatpush1.xpose.msra.mxu0 0.0
  %318 = vmatprep.subr.mxu0 0.0
  %319 = vmatpush1.xpose.msra.mxu0 0.0
  %320 = vmatprep.subr.mxu0 0.0
  %321 = vmatpush1.xpose.msra.mxu0 0.0
  %322 = vmatprep.subr.mxu0 0.0
  %323 = vmatpush1.xpose.msra.mxu0 %v290
  %324 = vmatprep.subr.mxu0 0.0
  %325 = vmatpush2.xpose.msra.mxu0 0.0
  %326 = vmatprep.subr.mxu0 0.0
  %327 = vmatpush2.xpose.msra.mxu0 0.0
  %328 = vmatprep.subr.mxu0 0.0
  %329 = vmatpush2.xpose.msra.mxu0 0.0
  %330 = vmatprep.subr.mxu0 0.0
  %331 = vmatpush2.xpose.msra.mxu0 0.0
  %332 = vmatprep.subr.mxu0 0.0
  %333 = vmatpush2.xpose.msra.mxu0 0.0
  %334 = vmatprep.subr.mxu0 0.0
  %335 = vmatpush2.xpose.msra.mxu0 0.0
  %336 = vmatprep.subr.mxu0 0.0
  %337 = vmatpush2.xpose.msra.mxu0 0.0
  %338 = vmatprep.subr.mxu0 0.0
  %339 = vmatpush2.xpose.msra.mxu0 0.0
  %340 = vmatprep.subr.mxu0 0.0
  %341 = vmatpush2.xpose.msra.mxu0 0.0
  %342 = vmatprep.subr.mxu0 0.0
  %343 = vmatpush2.xpose.msra.mxu0 0.0
  %344 = vmatprep.subr.mxu0 0.0
  %345 = vmatpush2.xpose.msra.mxu0 0.0
  %346 = vmatprep.subr.mxu0 0.0
  %347 = vmatpush2.xpose.msra.mxu0 0.0
  %348 = vmatprep.subr.mxu0 0.0
  %349 = vmatpush2.xpose.msra.mxu0 0.0
  %350 = vmatprep.subr.mxu0 0.0
  %351 = vmatpush2.xpose.msra.mxu0 0.0
  %352 = vmatprep.subr.mxu0 0.0
  %353 = vmatpush2.xpose.msra.mxu0 0.0
  %354 = vmatprep.subr.mxu0 0.0
  %355 = vmatpush2.xpose.msra.mxu0 0.0
  %356 = vmatprep.mubr.f32.mxu0 0.0
  %357 = vmatmul.mubr.f32.gmra.mxu0 %v288
  %v358 = vpop.f32.mrf.mxu0
  %v359 = vadd.f32 0.0, %v358
  %v360 = vpop.f32.mrf.mxu0
  %361 = vdwg.mxu0
  %v362 = vmul.f32 %v282, 0.25
  %v363 = vmul.f32 %v359, 0.25
  %v364 = vadd.f32 %v362, %v112
  %v365 = vadd.f32 %v363, %v113
  %vm366 = vcmask 64512
  %v367 = vsel %vm366, %v364, -inf
  %368 = vmax.xlane.f32.xlu0 %v367
  %v369 = vpop.xlane.xlu0 %368
  %v370 = vsel %vm366, %v365, -inf
  %371 = vmax.xlane.f32.xlu0 %v370
  %v372 = vpop.xlane.xlu0 %371
  %v373 = vsub.f32 %v364, %v369
  %v374 = vsub.f32 %v365, %v372
  %v375 = vmul.f32 %v373, 1.442695
  %v376 = vpow.pop %v375
  %v377 = vmul.f32 %v374, 1.442695
  %v378 = vpow.pop %v377
  %v379 = vsel %vm366, %v376, 0.0
  %380 = vadd.xlane.f32.xlu0 %v379
  %v381 = vpop.xlane.xlu0 %380
  %v382 = vsel %vm366, %v378, 0.0
  %383 = vadd.xlane.f32.xlu0 %v382
  %v384 = vpop.xlane.xlu0 %383
  %v385 = vrcp.pop %v381
  %v386 = vrcp.pop %v384
  %v387 = vmul.f32 %v376, %v385
  %v388 = vmul.f32 %v378, %v386
  %389 = vrot.lane.b32.xlu0 %v199, 64
  %v390 = vpop.permute.xlu0 %389
  %v393 = vsel %vm366, %v387, 0
  %395 = vmatprep.subr.mxu0 0.0
  %396 = vmatpush1.msra.mxu0 0.0
  %397 = vmatprep.subr.mxu0 0.0
  %398 = vmatpush1.msra.mxu0 0.0
  %399 = vmatprep.subr.mxu0 0.0
  %400 = vmatpush1.msra.mxu0 0.0
  %401 = vmatprep.subr.mxu0 0.0
  %402 = vmatpush1.msra.mxu0 0.0
  %403 = vmatprep.subr.mxu0 0.0
  %404 = vmatpush1.msra.mxu0 0.0
  %405 = vmatprep.subr.mxu0 0.0
  %406 = vmatpush1.msra.mxu0 0.0
  %407 = vmatprep.subr.mxu0 0.0
  %408 = vmatpush1.msra.mxu0 0.0
  %409 = vmatprep.subr.mxu0 0.0
  %410 = vmatpush1.msra.mxu0 0.0
  %411 = vmatprep.subr.mxu0 0.0
  %412 = vmatpush1.msra.mxu0 0.0
  %413 = vmatprep.subr.mxu0 0.0
  %414 = vmatpush1.msra.mxu0 0.0
  %415 = vmatprep.subr.mxu0 0.0
  %416 = vmatpush1.msra.mxu0 0.0
  %417 = vmatprep.subr.mxu0 0.0
  %418 = vmatpush1.msra.mxu0 0.0
  %419 = vmatprep.subr.mxu0 0.0
  %420 = vmatpush1.msra.mxu0 0.0
  %421 = vmatprep.subr.mxu0 0.0
  %422 = vmatpush1.msra.mxu0 0.0
  %423 = vmatprep.subr.mxu0 0.0
  %424 = vmatpush1.msra.mxu0 0.0
  %425 = vmatprep.subr.mxu0 0.0
  %426 = vmatpush1.msra.mxu0 %v390
  %427 = vmatprep.subr.mxu0 0.0
  %428 = vmatpush2.msra.mxu0 0.0
  %429 = vmatprep.subr.mxu0 0.0
  %430 = vmatpush2.msra.mxu0 0.0
  %431 = vmatprep.subr.mxu0 0.0
  %432 = vmatpush2.msra.mxu0 0.0
  %433 = vmatprep.subr.mxu0 0.0
  %434 = vmatpush2.msra.mxu0 0.0
  %435 = vmatprep.subr.mxu0 0.0
  %436 = vmatpush2.msra.mxu0 0.0
  %437 = vmatprep.subr.mxu0 0.0
  %438 = vmatpush2.msra.mxu0 0.0
  %439 = vmatprep.subr.mxu0 0.0
  %440 = vmatpush2.msra.mxu0 0.0
  %441 = vmatprep.subr.mxu0 0.0
  %442 = vmatpush2.msra.mxu0 0.0
  %443 = vmatprep.subr.mxu0 0.0
  %444 = vmatpush2.msra.mxu0 0.0
  %445 = vmatprep.subr.mxu0 0.0
  %446 = vmatpush2.msra.mxu0 0.0
  %447 = vmatprep.subr.mxu0 0.0
  %448 = vmatpush2.msra.mxu0 0.0
  %449 = vmatprep.subr.mxu0 0.0
  %450 = vmatpush2.msra.mxu0 0.0
  %451 = vmatprep.subr.mxu0 0.0
  %452 = vmatpush2.msra.mxu0 0.0
  %453 = vmatprep.subr.mxu0 0.0
  %454 = vmatpush2.msra.mxu0 0.0
  %455 = vmatprep.subr.mxu0 0.0
  %456 = vmatpush2.msra.mxu0 0.0
  %457 = vmatprep.subr.mxu0 0.0
  %458 = vmatpush2.msra.mxu0 0.0
  %459 = vmatprep.mubr.f32.mxu0 0.0
  %460 = vmatmul.mubr.f32.gmra.mxu0 %v393
  %v461 = vpop.f32.mrf.mxu0
  %v462 = vadd.f32 0.0, %v461
  %v463 = vpop.f32.mrf.mxu0
  %464 = vdwg.mxu0
  %465 = vrot.lane.b32.xlu0 %v204, 64
  %v466 = vpop.permute.xlu0 %465
  %v469 = vsel %vm366, %v388, 0
  %471 = vmatprep.subr.mxu0 0.0
  %472 = vmatpush1.msra.mxu0 0.0
  %473 = vmatprep.subr.mxu0 0.0
  %474 = vmatpush1.msra.mxu0 0.0
  %475 = vmatprep.subr.mxu0 0.0
  %476 = vmatpush1.msra.mxu0 0.0
  %477 = vmatprep.subr.mxu0 0.0
  %478 = vmatpush1.msra.mxu0 0.0
  %479 = vmatprep.subr.mxu0 0.0
  %480 = vmatpush1.msra.mxu0 0.0
  %481 = vmatprep.subr.mxu0 0.0
  %482 = vmatpush1.msra.mxu0 0.0
  %483 = vmatprep.subr.mxu0 0.0
  %484 = vmatpush1.msra.mxu0 0.0
  %485 = vmatprep.subr.mxu0 0.0
  %486 = vmatpush1.msra.mxu0 0.0
  %487 = vmatprep.subr.mxu0 0.0
  %488 = vmatpush1.msra.mxu0 0.0
  %489 = vmatprep.subr.mxu0 0.0
  %490 = vmatpush1.msra.mxu0 0.0
  %491 = vmatprep.subr.mxu0 0.0
  %492 = vmatpush1.msra.mxu0 0.0
  %493 = vmatprep.subr.mxu0 0.0
  %494 = vmatpush1.msra.mxu0 0.0
  %495 = vmatprep.subr.mxu0 0.0
  %496 = vmatpush1.msra.mxu0 0.0
  %497 = vmatprep.subr.mxu0 0.0
  %498 = vmatpush1.msra.mxu0 0.0
  %499 = vmatprep.subr.mxu0 0.0
  %500 = vmatpush1.msra.mxu0 0.0
  %501 = vmatprep.subr.mxu0 0.0
  %502 = vmatpush1.msra.mxu0 %v466
  %503 = vmatprep.subr.mxu0 0.0
  %504 = vmatpush2.msra.mxu0 0.0
  %505 = vmatprep.subr.mxu0 0.0
  %506 = vmatpush2.msra.mxu0 0.0
  %507 = vmatprep.subr.mxu0 0.0
  %508 = vmatpush2.msra.mxu0 0.0
  %509 = vmatprep.subr.mxu0 0.0
  %510 = vmatpush2.msra.mxu0 0.0
  %511 = vmatprep.subr.mxu0 0.0
  %512 = vmatpush2.msra.mxu0 0.0
  %513 = vmatprep.subr.mxu0 0.0
  %514 = vmatpush2.msra.mxu0 0.0
  %515 = vmatprep.subr.mxu0 0.0
  %516 = vmatpush2.msra.mxu0 0.0
  %517 = vmatprep.subr.mxu0 0.0
  %518 = vmatpush2.msra.mxu0 0.0
  %519 = vmatprep.subr.mxu0 0.0
  %520 = vmatpush2.msra.mxu0 0.0
  %521 = vmatprep.subr.mxu0 0.0
  %522 = vmatpush2.msra.mxu0 0.0
  %523 = vmatprep.subr.mxu0 0.0
  %524 = vmatpush2.msra.mxu0 0.0
  %525 = vmatprep.subr.mxu0 0.0
  %526 = vmatpush2.msra.mxu0 0.0
  %527 = vmatprep.subr.mxu0 0.0
  %528 = vmatpush2.msra.mxu0 0.0
  %529 = vmatprep.subr.mxu0 0.0
  %530 = vmatpush2.msra.mxu0 0.0
  %531 = vmatprep.subr.mxu0 0.0
  %532 = vmatpush2.msra.mxu0 0.0
  %533 = vmatprep.subr.mxu0 0.0
  %534 = vmatpush2.msra.mxu0 0.0
  %535 = vmatprep.mubr.f32.mxu0 0.0
  %536 = vmatmul.mubr.f32.gmra.mxu0 %v469
  %v537 = vpop.f32.mrf.mxu0
  %v538 = vadd.f32 0.0, %v537
  %v539 = vpop.f32.mrf.mxu0
  %540 = vdwg.mxu0
  %541 = vrot.lane.b32.xlu0 %v199, 112
  %v542 = vpop.permute.xlu0 %541
  %543 = vrot.lane.b32.xlu0 %v199, 80
  %v544 = vpop.permute.xlu0 %543
  %v545 = vsel %vm210, %v542, 0
  %v547 = vsel %vm210, %v544, 0
  %549 = vmatprep.subr.mxu0 0.0
  %550 = vmatpush1.xpose.msra.mxu0 0.0
  %551 = vmatprep.subr.mxu0 0.0
  %552 = vmatpush1.xpose.msra.mxu0 0.0
  %553 = vmatprep.subr.mxu0 0.0
  %554 = vmatpush1.xpose.msra.mxu0 0.0
  %555 = vmatprep.subr.mxu0 0.0
  %556 = vmatpush1.xpose.msra.mxu0 0.0
  %557 = vmatprep.subr.mxu0 0.0
  %558 = vmatpush1.xpose.msra.mxu0 0.0
  %559 = vmatprep.subr.mxu0 0.0
  %560 = vmatpush1.xpose.msra.mxu0 0.0
  %561 = vmatprep.subr.mxu0 0.0
  %562 = vmatpush1.xpose.msra.mxu0 0.0
  %563 = vmatprep.subr.mxu0 0.0
  %564 = vmatpush1.xpose.msra.mxu0 0.0
  %565 = vmatprep.subr.mxu0 0.0
  %566 = vmatpush1.xpose.msra.mxu0 0.0
  %567 = vmatprep.subr.mxu0 0.0
  %568 = vmatpush1.xpose.msra.mxu0 0.0
  %569 = vmatprep.subr.mxu0 0.0
  %570 = vmatpush1.xpose.msra.mxu0 0.0
  %571 = vmatprep.subr.mxu0 0.0
  %572 = vmatpush1.xpose.msra.mxu0 0.0
  %573 = vmatprep.subr.mxu0 0.0
  %574 = vmatpush1.xpose.msra.mxu0 0.0
  %575 = vmatprep.subr.mxu0 0.0
  %576 = vmatpush1.xpose.msra.mxu0 0.0
  %577 = vmatprep.subr.mxu0 0.0
  %578 = vmatpush1.xpose.msra.mxu0 0.0
  %579 = vmatprep.subr.mxu0 0.0
  %580 = vmatpush1.xpose.msra.mxu0 %v547
  %581 = vmatprep.subr.mxu0 0.0
  %582 = vmatpush2.xpose.msra.mxu0 0.0
  %583 = vmatprep.subr.mxu0 0.0
  %584 = vmatpush2.xpose.msra.mxu0 0.0
  %585 = vmatprep.subr.mxu0 0.0
  %586 = vmatpush2.xpose.msra.mxu0 0.0
  %587 = vmatprep.subr.mxu0 0.0
  %588 = vmatpush2.xpose.msra.mxu0 0.0
  %589 = vmatprep.subr.mxu0 0.0
  %590 = vmatpush2.xpose.msra.mxu0 0.0
  %591 = vmatprep.subr.mxu0 0.0
  %592 = vmatpush2.xpose.msra.mxu0 0.0
  %593 = vmatprep.subr.mxu0 0.0
  %594 = vmatpush2.xpose.msra.mxu0 0.0
  %595 = vmatprep.subr.mxu0 0.0
  %596 = vmatpush2.xpose.msra.mxu0 0.0
  %597 = vmatprep.subr.mxu0 0.0
  %598 = vmatpush2.xpose.msra.mxu0 0.0
  %599 = vmatprep.subr.mxu0 0.0
  %600 = vmatpush2.xpose.msra.mxu0 0.0
  %601 = vmatprep.subr.mxu0 0.0
  %602 = vmatpush2.xpose.msra.mxu0 0.0
  %603 = vmatprep.subr.mxu0 0.0
  %604 = vmatpush2.xpose.msra.mxu0 0.0
  %605 = vmatprep.subr.mxu0 0.0
  %606 = vmatpush2.xpose.msra.mxu0 0.0
  %607 = vmatprep.subr.mxu0 0.0
  %608 = vmatpush2.xpose.msra.mxu0 0.0
  %609 = vmatprep.subr.mxu0 0.0
  %610 = vmatpush2.xpose.msra.mxu0 0.0
  %611 = vmatprep.subr.mxu0 0.0
  %612 = vmatpush2.xpose.msra.mxu0 0.0
  %613 = vmatprep.mubr.f32.mxu0 0.0
  %614 = vmatmul.mubr.f32.gmra.mxu0 %v545
  %v615 = vpop.f32.mrf.mxu0
  %v616 = vadd.f32 0.0, %v615
  %v617 = vpop.f32.mrf.mxu0
  %618 = vdwg.mxu0
  %619 = vrot.lane.b32.xlu0 %v204, 112
  %v620 = vpop.permute.xlu0 %619
  %621 = vrot.lane.b32.xlu0 %v204, 80
  %v622 = vpop.permute.xlu0 %621
  %v623 = vsel %vm210, %v620, 0
  %v625 = vsel %vm210, %v622, 0
  %627 = vmatprep.subr.mxu0 0.0
  %628 = vmatpush1.xpose.msra.mxu0 0.0
  %629 = vmatprep.subr.mxu0 0.0
  %630 = vmatpush1.xpose.msra.mxu0 0.0
  %631 = vmatprep.subr.mxu0 0.0
  %632 = vmatpush1.xpose.msra.mxu0 0.0
  %633 = vmatprep.subr.mxu0 0.0
  %634 = vmatpush1.xpose.msra.mxu0 0.0
  %635 = vmatprep.subr.mxu0 0.0
  %636 = vmatpush1.xpose.msra.mxu0 0.0
  %637 = vmatprep.subr.mxu0 0.0
  %638 = vmatpush1.xpose.msra.mxu0 0.0
  %639 = vmatprep.subr.mxu0 0.0
  %640 = vmatpush1.xpose.msra.mxu0 0.0
  %641 = vmatprep.subr.mxu0 0.0
  %642 = vmatpush1.xpose.msra.mxu0 0.0
  %643 = vmatprep.subr.mxu0 0.0
  %644 = vmatpush1.xpose.msra.mxu0 0.0
  %645 = vmatprep.subr.mxu0 0.0
  %646 = vmatpush1.xpose.msra.mxu0 0.0
  %647 = vmatprep.subr.mxu0 0.0
  %648 = vmatpush1.xpose.msra.mxu0 0.0
  %649 = vmatprep.subr.mxu0 0.0
  %650 = vmatpush1.xpose.msra.mxu0 0.0
  %651 = vmatprep.subr.mxu0 0.0
  %652 = vmatpush1.xpose.msra.mxu0 0.0
  %653 = vmatprep.subr.mxu0 0.0
  %654 = vmatpush1.xpose.msra.mxu0 0.0
  %655 = vmatprep.subr.mxu0 0.0
  %656 = vmatpush1.xpose.msra.mxu0 0.0
  %657 = vmatprep.subr.mxu0 0.0
  %658 = vmatpush1.xpose.msra.mxu0 %v625
  %659 = vmatprep.subr.mxu0 0.0
  %660 = vmatpush2.xpose.msra.mxu0 0.0
  %661 = vmatprep.subr.mxu0 0.0
  %662 = vmatpush2.xpose.msra.mxu0 0.0
  %663 = vmatprep.subr.mxu0 0.0
  %664 = vmatpush2.xpose.msra.mxu0 0.0
  %665 = vmatprep.subr.mxu0 0.0
  %666 = vmatpush2.xpose.msra.mxu0 0.0
  %667 = vmatprep.subr.mxu0 0.0
  %668 = vmatpush2.xpose.msra.mxu0 0.0
  %669 = vmatprep.subr.mxu0 0.0
  %670 = vmatpush2.xpose.msra.mxu0 0.0
  %671 = vmatprep.subr.mxu0 0.0
  %672 = vmatpush2.xpose.msra.mxu0 0.0
  %673 = vmatprep.subr.mxu0 0.0
  %674 = vmatpush2.xpose.msra.mxu0 0.0
  %675 = vmatprep.subr.mxu0 0.0
  %676 = vmatpush2.xpose.msra.mxu0 0.0
  %677 = vmatprep.subr.mxu0 0.0
  %678 = vmatpush2.xpose.msra.mxu0 0.0
  %679 = vmatprep.subr.mxu0 0.0
  %680 = vmatpush2.xpose.msra.mxu0 0.0
  %681 = vmatprep.subr.mxu0 0.0
  %682 = vmatpush2.xpose.msra.mxu0 0.0
  %683 = vmatprep.subr.mxu0 0.0
  %684 = vmatpush2.xpose.msra.mxu0 0.0
  %685 = vmatprep.subr.mxu0 0.0
  %686 = vmatpush2.xpose.msra.mxu0 0.0
  %687 = vmatprep.subr.mxu0 0.0
  %688 = vmatpush2.xpose.msra.mxu0 0.0
  %689 = vmatprep.subr.mxu0 0.0
  %690 = vmatpush2.xpose.msra.mxu0 0.0
  %691 = vmatprep.mubr.f32.mxu0 0.0
  %692 = vmatmul.mubr.f32.gmra.mxu0 %v623
  %v693 = vpop.f32.mrf.mxu0
  %v694 = vadd.f32 0.0, %v693
  %v695 = vpop.f32.mrf.mxu0
  %696 = vdwg.mxu0
  %v697 = vmul.f32 %v616, 0.25
  %v698 = vmul.f32 %v694, 0.25
  %v699 = vadd.f32 %v697, %v112
  %v700 = vadd.f32 %v698, %v113
  %v701 = vsel %vm366, %v699, -inf
  %702 = vmax.xlane.f32.xlu0 %v701
  %v703 = vpop.xlane.xlu0 %702
  %v704 = vsel %vm366, %v700, -inf
  %705 = vmax.xlane.f32.xlu0 %v704
  %v706 = vpop.xlane.xlu0 %705
  %v707 = vsub.f32 %v699, %v703
  %v708 = vsub.f32 %v700, %v706
  %v709 = vmul.f32 %v707, 1.442695
  %v710 = vpow.pop %v709
  %v711 = vmul.f32 %v708, 1.442695
  %v712 = vpow.pop %v711
  %v713 = vsel %vm366, %v710, 0.0
  %714 = vadd.xlane.f32.xlu0 %v713
  %v715 = vpop.xlane.xlu0 %714
  %v716 = vsel %vm366, %v712, 0.0
  %717 = vadd.xlane.f32.xlu0 %v716
  %v718 = vpop.xlane.xlu0 %717
  %v719 = vrcp.pop %v715
  %v720 = vrcp.pop %v718
  %v721 = vmul.f32 %v710, %v719
  %v722 = vmul.f32 %v712, %v720
  %723 = vrot.lane.b32.xlu0 %v199, 48
  %v724 = vpop.permute.xlu0 %723
  %v727 = vsel %vm366, %v721, 0
  %729 = vmatprep.subr.mxu0 0.0
  %730 = vmatpush1.msra.mxu0 0.0
  %731 = vmatprep.subr.mxu0 0.0
  %732 = vmatpush1.msra.mxu0 0.0
  %733 = vmatprep.subr.mxu0 0.0
  %734 = vmatpush1.msra.mxu0 0.0
  %735 = vmatprep.subr.mxu0 0.0
  %736 = vmatpush1.msra.mxu0 0.0
  %737 = vmatprep.subr.mxu0 0.0
  %738 = vmatpush1.msra.mxu0 0.0
  %739 = vmatprep.subr.mxu0 0.0
  %740 = vmatpush1.msra.mxu0 0.0
  %741 = vmatprep.subr.mxu0 0.0
  %742 = vmatpush1.msra.mxu0 0.0
  %743 = vmatprep.subr.mxu0 0.0
  %744 = vmatpush1.msra.mxu0 0.0
  %745 = vmatprep.subr.mxu0 0.0
  %746 = vmatpush1.msra.mxu0 0.0
  %747 = vmatprep.subr.mxu0 0.0
  %748 = vmatpush1.msra.mxu0 0.0
  %749 = vmatprep.subr.mxu0 0.0
  %750 = vmatpush1.msra.mxu0 0.0
  %751 = vmatprep.subr.mxu0 0.0
  %752 = vmatpush1.msra.mxu0 0.0
  %753 = vmatprep.subr.mxu0 0.0
  %754 = vmatpush1.msra.mxu0 0.0
  %755 = vmatprep.subr.mxu0 0.0
  %756 = vmatpush1.msra.mxu0 0.0
  %757 = vmatprep.subr.mxu0 0.0
  %758 = vmatpush1.msra.mxu0 0.0
  %759 = vmatprep.subr.mxu0 0.0
  %760 = vmatpush1.msra.mxu0 %v724
  %761 = vmatprep.subr.mxu0 0.0
  %762 = vmatpush2.msra.mxu0 0.0
  %763 = vmatprep.subr.mxu0 0.0
  %764 = vmatpush2.msra.mxu0 0.0
  %765 = vmatprep.subr.mxu0 0.0
  %766 = vmatpush2.msra.mxu0 0.0
  %767 = vmatprep.subr.mxu0 0.0
  %768 = vmatpush2.msra.mxu0 0.0
  %769 = vmatprep.subr.mxu0 0.0
  %770 = vmatpush2.msra.mxu0 0.0
  %771 = vmatprep.subr.mxu0 0.0
  %772 = vmatpush2.msra.mxu0 0.0
  %773 = vmatprep.subr.mxu0 0.0
  %774 = vmatpush2.msra.mxu0 0.0
  %775 = vmatprep.subr.mxu0 0.0
  %776 = vmatpush2.msra.mxu0 0.0
  %777 = vmatprep.subr.mxu0 0.0
  %778 = vmatpush2.msra.mxu0 0.0
  %779 = vmatprep.subr.mxu0 0.0
  %780 = vmatpush2.msra.mxu0 0.0
  %781 = vmatprep.subr.mxu0 0.0
  %782 = vmatpush2.msra.mxu0 0.0
  %783 = vmatprep.subr.mxu0 0.0
  %784 = vmatpush2.msra.mxu0 0.0
  %785 = vmatprep.subr.mxu0 0.0
  %786 = vmatpush2.msra.mxu0 0.0
  %787 = vmatprep.subr.mxu0 0.0
  %788 = vmatpush2.msra.mxu0 0.0
  %789 = vmatprep.subr.mxu0 0.0
  %790 = vmatpush2.msra.mxu0 0.0
  %791 = vmatprep.subr.mxu0 0.0
  %792 = vmatpush2.msra.mxu0 0.0
  %793 = vmatprep.mubr.f32.mxu0 0.0
  %794 = vmatmul.mubr.f32.gmra.mxu0 %v727
  %v795 = vpop.f32.mrf.mxu0
  %v796 = vadd.f32 0.0, %v795
  %v797 = vpop.f32.mrf.mxu0
  %798 = vdwg.mxu0
  %799 = vrot.lane.b32.xlu0 %v204, 48
  %v800 = vpop.permute.xlu0 %799
  %v803 = vsel %vm366, %v722, 0
  %805 = vmatprep.subr.mxu0 0.0
  %806 = vmatpush1.msra.mxu0 0.0
  %807 = vmatprep.subr.mxu0 0.0
  %808 = vmatpush1.msra.mxu0 0.0
  %809 = vmatprep.subr.mxu0 0.0
  %810 = vmatpush1.msra.mxu0 0.0
  %811 = vmatprep.subr.mxu0 0.0
  %812 = vmatpush1.msra.mxu0 0.0
  %813 = vmatprep.subr.mxu0 0.0
  %814 = vmatpush1.msra.mxu0 0.0
  %815 = vmatprep.subr.mxu0 0.0
  %816 = vmatpush1.msra.mxu0 0.0
  %817 = vmatprep.subr.mxu0 0.0
  %818 = vmatpush1.msra.mxu0 0.0
  %819 = vmatprep.subr.mxu0 0.0
  %820 = vmatpush1.msra.mxu0 0.0
  %821 = vmatprep.subr.mxu0 0.0
  %822 = vmatpush1.msra.mxu0 0.0
  %823 = vmatprep.subr.mxu0 0.0
  %824 = vmatpush1.msra.mxu0 0.0
  %825 = vmatprep.subr.mxu0 0.0
  %826 = vmatpush1.msra.mxu0 0.0
  %827 = vmatprep.subr.mxu0 0.0
  %828 = vmatpush1.msra.mxu0 0.0
  %829 = vmatprep.subr.mxu0 0.0
  %830 = vmatpush1.msra.mxu0 0.0
  %831 = vmatprep.subr.mxu0 0.0
  %832 = vmatpush1.msra.mxu0 0.0
  %833 = vmatprep.subr.mxu0 0.0
  %834 = vmatpush1.msra.mxu0 0.0
  %835 = vmatprep.subr.mxu0 0.0
  %836 = vmatpush1.msra.mxu0 %v800
  %837 = vmatprep.subr.mxu0 0.0
  %838 = vmatpush2.msra.mxu0 0.0
  %839 = vmatprep.subr.mxu0 0.0
  %840 = vmatpush2.msra.mxu0 0.0
  %841 = vmatprep.subr.mxu0 0.0
  %842 = vmatpush2.msra.mxu0 0.0
  %843 = vmatprep.subr.mxu0 0.0
  %844 = vmatpush2.msra.mxu0 0.0
  %845 = vmatprep.subr.mxu0 0.0
  %846 = vmatpush2.msra.mxu0 0.0
  %847 = vmatprep.subr.mxu0 0.0
  %848 = vmatpush2.msra.mxu0 0.0
  %849 = vmatprep.subr.mxu0 0.0
  %850 = vmatpush2.msra.mxu0 0.0
  %851 = vmatprep.subr.mxu0 0.0
  %852 = vmatpush2.msra.mxu0 0.0
  %853 = vmatprep.subr.mxu0 0.0
  %854 = vmatpush2.msra.mxu0 0.0
  %855 = vmatprep.subr.mxu0 0.0
  %856 = vmatpush2.msra.mxu0 0.0
  %857 = vmatprep.subr.mxu0 0.0
  %858 = vmatpush2.msra.mxu0 0.0
  %859 = vmatprep.subr.mxu0 0.0
  %860 = vmatpush2.msra.mxu0 0.0
  %861 = vmatprep.subr.mxu0 0.0
  %862 = vmatpush2.msra.mxu0 0.0
  %863 = vmatprep.subr.mxu0 0.0
  %864 = vmatpush2.msra.mxu0 0.0
  %865 = vmatprep.subr.mxu0 0.0
  %866 = vmatpush2.msra.mxu0 0.0
  %867 = vmatprep.subr.mxu0 0.0
  %868 = vmatpush2.msra.mxu0 0.0
  %869 = vmatprep.mubr.f32.mxu0 0.0
  %870 = vmatmul.mubr.f32.gmra.mxu0 %v803
  %v871 = vpop.f32.mrf.mxu0
  %v872 = vadd.f32 0.0, %v871
  %v873 = vpop.f32.mrf.mxu0
  %874 = vdwg.mxu0
  %877 = vrot.lane.b32.xlu0 %v796, 16
  %v878 = vpop.permute.xlu0 %877
  %879 = vrot.lane.b32.xlu0 %v872, 16
  %v880 = vpop.permute.xlu0 %879
  %v883 = vsel %vm210, %v462, %v878
  %v884 = vsel %vm210, %v538, %v880
  %v885 = vld [vmem:[%s5] sm:$0xff]
  %v886 = vld [vmem:[%s5 + $0x8] sm:$0xff]
  %v887 = vld [vmem:[%s5 + $0x10] sm:$0xff]
  %v888 = vld [vmem:[%s5 + $0x18] sm:$0xff]
  %v889 = vld [vmem:[%s6] sm:$0x1]
  %v891 = vlaneseq
  %v892 = vshrl.u32 %v891, 7
  %v893 = vsub.s32 0, %v892
  %v894 = vrot.slane %v889, %v893
  %v897 = vsel %vm125, %v883, 0
  %v900 = vsel %vm125, %v884, 0
  %902 = vmatprep.subr.mxu0 0.0
  %903 = vmatpush1.msra.mxu0 0.0
  %904 = vmatprep.subr.mxu0 0.0
  %905 = vmatpush1.msra.mxu0 0.0
  %906 = vmatprep.subr.mxu0 0.0
  %907 = vmatpush1.msra.mxu0 0.0
  %908 = vmatprep.subr.mxu0 0.0
  %909 = vmatpush1.msra.mxu0 0.0
  %910 = vmatprep.subr.mxu0 0.0
  %911 = vmatpush1.msra.mxu0 0.0
  %912 = vmatprep.subr.mxu0 0.0
  %913 = vmatpush1.msra.mxu0 0.0
  %914 = vmatprep.subr.mxu0 0.0
  %915 = vmatpush1.msra.mxu0 0.0
  %916 = vmatprep.subr.mxu0 0.0
  %917 = vmatpush1.msra.mxu0 0.0
  %918 = vmatprep.subr.mxu0 0.0
  %919 = vmatpush1.msra.mxu0 0.0
  %920 = vmatprep.subr.mxu0 0.0
  %921 = vmatpush1.msra.mxu0 0.0
  %922 = vmatprep.subr.mxu0 0.0
  %923 = vmatpush1.msra.mxu0 0.0
  %924 = vmatprep.subr.mxu0 0.0
  %925 = vmatpush1.msra.mxu0 0.0
  %926 = vmatprep.subr.mxu0 0.0
  %927 = vmatpush1.msra.mxu0 %v888
  %928 = vmatprep.subr.mxu0 0.0
  %929 = vmatpush1.msra.mxu0 %v887
  %930 = vmatprep.subr.mxu0 0.0
  %931 = vmatpush1.msra.mxu0 %v886
  %932 = vmatprep.subr.mxu0 0.0
  %933 = vmatpush1.msra.mxu0 %v885
  %934 = vmatprep.subr.mxu0 0.0
  %935 = vmatpush2.msra.mxu0 0.0
  %936 = vmatprep.subr.mxu0 0.0
  %937 = vmatpush2.msra.mxu0 0.0
  %938 = vmatprep.subr.mxu0 0.0
  %939 = vmatpush2.msra.mxu0 0.0
  %940 = vmatprep.subr.mxu0 0.0
  %941 = vmatpush2.msra.mxu0 0.0
  %942 = vmatprep.subr.mxu0 0.0
  %943 = vmatpush2.msra.mxu0 0.0
  %944 = vmatprep.subr.mxu0 0.0
  %945 = vmatpush2.msra.mxu0 0.0
  %946 = vmatprep.subr.mxu0 0.0
  %947 = vmatpush2.msra.mxu0 0.0
  %948 = vmatprep.subr.mxu0 0.0
  %949 = vmatpush2.msra.mxu0 0.0
  %950 = vmatprep.subr.mxu0 0.0
  %951 = vmatpush2.msra.mxu0 0.0
  %952 = vmatprep.subr.mxu0 0.0
  %953 = vmatpush2.msra.mxu0 0.0
  %954 = vmatprep.subr.mxu0 0.0
  %955 = vmatpush2.msra.mxu0 0.0
  %956 = vmatprep.subr.mxu0 0.0
  %957 = vmatpush2.msra.mxu0 0.0
  %958 = vmatprep.subr.mxu0 0.0
  %959 = vmatpush2.msra.mxu0 0.0
  %960 = vmatprep.subr.mxu0 0.0
  %961 = vmatpush2.msra.mxu0 0.0
  %962 = vmatprep.subr.mxu0 0.0
  %963 = vmatpush2.msra.mxu0 0.0
  %964 = vmatprep.subr.mxu0 0.0
  %965 = vmatpush2.msra.mxu0 0.0
  %966 = vmatprep.mubr.f32.mxu0 0.0
  %967 = vmatmul.mubr.f32.gmra.mxu0 %v897
  %v968 = vpop.f32.mrf.mxu0
  %v969 = vadd.f32 %v894, %v968
  %v970 = vpop.f32.mrf.mxu0
  %971 = vmatprep.mubr.f32.mxu0 0.0
  %972 = vmatmul.mubr.f32.gmra.mxu0 %v900
  %v973 = vpop.f32.mrf.mxu0
  %v974 = vadd.f32 %v894, %v973
  %v975 = vpop.f32.mrf.mxu0
  %976 = vdwg.mxu0
  %v977 = vadd.f32 %v68, %v969
  %v978 = vadd.f32 %v69, %v974
  %v979 = vld [vmem:[%s7] sm:$0x1]
  %v980 = vld [vmem:[%s8] sm:$0x1]
  %v981 = vsel %vm125, %v977, 0.0
  %982 = vadd.xlane.f32.xlu0 %v981
  %v983 = vpop.xlane.xlu0 %982
  %v984 = vsel %vm125, %v978, 0.0
  %985 = vadd.xlane.f32.xlu0 %v984
  %v986 = vpop.xlane.xlu0 %985
  %v987 = vrcp.pop 32.0
  %v988 = vmul.f32 %v983, %v987
  %v989 = vmul.f32 %v986, %v987
  %v990 = vsub.f32 %v977, %v988
  %v991 = vsub.f32 %v978, %v989
  %v992 = vmul.f32 %v990, %v990
  %v993 = vmul.f32 %v991, %v991
  %v994 = vsel %vm125, %v992, 0.0
  %995 = vadd.xlane.f32.xlu0 %v994
  %v996 = vpop.xlane.xlu0 %995
  %v997 = vsel %vm125, %v993, 0.0
  %998 = vadd.xlane.f32.xlu0 %v997
  %v999 = vpop.xlane.xlu0 %998
  %v1000 = vmul.f32 %v996, %v987
  %v1001 = vmul.f32 %v999, %v987
  %v1002 = vadd.f32 %v1000, 1e-05
  %v1003 = vadd.f32 %v1001, 1e-05
  %v1004 = vrsqrt.pop %v1002
  %v1005 = vrsqrt.pop %v1003
  %v1006 = vmul.f32 %v990, %v1004
  %v1007 = vmul.f32 %v991, %v1005
  %v1009 = vlaneseq
  %v1010 = vshrl.u32 %v1009, 7
  %v1011 = vsub.s32 0, %v1010
  %v1012 = vrot.slane %v979, %v1011
  %v1014 = vmul.f32 %v1006, %v1012
  %v1015 = vmul.f32 %v1007, %v1012
  %v1017 = vlaneseq
  %v1018 = vshrl.u32 %v1017, 7
  %v1019 = vsub.s32 0, %v1018
  %v1020 = vrot.slane %v980, %v1019
  %v1022 = vadd.f32 %v1014, %v1020
  %v1023 = vadd.f32 %v1015, %v1020
  %v1024 = vld [vmem:[%s1] sm:$0x3]
  %v1025 = vld [vmem:[%s9] sm:$0xff]
  %v1026 = vld [vmem:[%s9 + $0x8] sm:$0xff]
  %v1027 = vld [vmem:[%s9 + $0x10] sm:$0xff]
  %v1028 = vld [vmem:[%s9 + $0x18] sm:$0xff]
  %v1029 = vld [vmem:[%s10] sm:$0x1]
  %v1031 = vlaneseq
  %v1032 = vshrl.u32 %v1031, 7
  %v1033 = vsub.s32 0, %v1032
  %v1034 = vrot.slane %v1029, %v1033
  %v1037 = vsel %vm125, %v1024, 0
  %1039 = vmatprep.subr.mxu0 0.0
  %1040 = vmatpush1.msra.mxu0 0.0
  %1041 = vmatprep.subr.mxu0 0.0
  %1042 = vmatpush1.msra.mxu0 0.0
  %1043 = vmatprep.subr.mxu0 0.0
  %1044 = vmatpush1.msra.mxu0 0.0
  %1045 = vmatprep.subr.mxu0 0.0
  %1046 = vmatpush1.msra.mxu0 0.0
  %1047 = vmatprep.subr.mxu0 0.0
  %1048 = vmatpush1.msra.mxu0 0.0
  %1049 = vmatprep.subr.mxu0 0.0
  %1050 = vmatpush1.msra.mxu0 0.0
  %1051 = vmatprep.subr.mxu0 0.0
  %1052 = vmatpush1.msra.mxu0 0.0
  %1053 = vmatprep.subr.mxu0 0.0
  %1054 = vmatpush1.msra.mxu0 0.0
  %1055 = vmatprep.subr.mxu0 0.0
  %1056 = vmatpush1.msra.mxu0 0.0
  %1057 = vmatprep.subr.mxu0 0.0
  %1058 = vmatpush1.msra.mxu0 0.0
  %1059 = vmatprep.subr.mxu0 0.0
  %1060 = vmatpush1.msra.mxu0 0.0
  %1061 = vmatprep.subr.mxu0 0.0
  %1062 = vmatpush1.msra.mxu0 0.0
  %1063 = vmatprep.subr.mxu0 0.0
  %1064 = vmatpush1.msra.mxu0 %v1028
  %1065 = vmatprep.subr.mxu0 0.0
  %1066 = vmatpush1.msra.mxu0 %v1027
  %1067 = vmatprep.subr.mxu0 0.0
  %1068 = vmatpush1.msra.mxu0 %v1026
  %1069 = vmatprep.subr.mxu0 0.0
  %1070 = vmatpush1.msra.mxu0 %v1025
  %1071 = vmatprep.subr.mxu0 0.0
  %1072 = vmatpush2.msra.mxu0 0.0
  %1073 = vmatprep.subr.mxu0 0.0
  %1074 = vmatpush2.msra.mxu0 0.0
  %1075 = vmatprep.subr.mxu0 0.0
  %1076 = vmatpush2.msra.mxu0 0.0
  %1077 = vmatprep.subr.mxu0 0.0
  %1078 = vmatpush2.msra.mxu0 0.0
  %1079 = vmatprep.subr.mxu0 0.0
  %1080 = vmatpush2.msra.mxu0 0.0
  %1081 = vmatprep.subr.mxu0 0.0
  %1082 = vmatpush2.msra.mxu0 0.0
  %1083 = vmatprep.subr.mxu0 0.0
  %1084 = vmatpush2.msra.mxu0 0.0
  %1085 = vmatprep.subr.mxu0 0.0
  %1086 = vmatpush2.msra.mxu0 0.0
  %1087 = vmatprep.subr.mxu0 0.0
  %1088 = vmatpush2.msra.mxu0 0.0
  %1089 = vmatprep.subr.mxu0 0.0
  %1090 = vmatpush2.msra.mxu0 0.0
  %1091 = vmatprep.subr.mxu0 0.0
  %1092 = vmatpush2.msra.mxu0 0.0
  %1093 = vmatprep.subr.mxu0 0.0
  %1094 = vmatpush2.msra.mxu0 0.0
  %1095 = vmatprep.subr.mxu0 0.0
  %1096 = vmatpush2.msra.mxu0 0.0
  %1097 = vmatprep.subr.mxu0 0.0
  %1098 = vmatpush2.msra.mxu0 0.0
  %1099 = vmatprep.subr.mxu0 0.0
  %1100 = vmatpush2.msra.mxu0 0.0
  %1101 = vmatprep.subr.mxu0 0.0
  %1102 = vmatpush2.msra.mxu0 0.0
  %1103 = vmatprep.mubr.f32.mxu0 0.0
  %1104 = vmatmul.mubr.f32.gmra.mxu0 %v1037
  %v1105 = vpop.f32.mrf.mxu0
  %v1106 = vadd.f32 %v1034, %v1105
  %v1107 = vpop.f32.mrf.mxu0
  %1108 = vdwg.mxu0
  %v1109 = vld [vmem:[%s11] sm:$0xff]
  %v1110 = vld [vmem:[%s11 + $0x8] sm:$0xff]
  %v1111 = vld [vmem:[%s11 + $0x10] sm:$0xff]
  %v1112 = vld [vmem:[%s11 + $0x18] sm:$0xff]
  %v1113 = vld [vmem:[%s12] sm:$0x1]
  %v1115 = vlaneseq
  %v1116 = vshrl.u32 %v1115, 7
  %v1117 = vsub.s32 0, %v1116
  %v1118 = vrot.slane %v1113, %v1117
  %v1121 = vsel %vm125, %v1106, 0
  %1123 = vmatprep.subr.mxu0 0.0
  %1124 = vmatpush1.msra.mxu0 0.0
  %1125 = vmatprep.subr.mxu0 0.0
  %1126 = vmatpush1.msra.mxu0 0.0
  %1127 = vmatprep.subr.mxu0 0.0
  %1128 = vmatpush1.msra.mxu0 0.0
  %1129 = vmatprep.subr.mxu0 0.0
  %1130 = vmatpush1.msra.mxu0 0.0
  %1131 = vmatprep.subr.mxu0 0.0
  %1132 = vmatpush1.msra.mxu0 0.0
  %1133 = vmatprep.subr.mxu0 0.0
  %1134 = vmatpush1.msra.mxu0 0.0
  %1135 = vmatprep.subr.mxu0 0.0
  %1136 = vmatpush1.msra.mxu0 0.0
  %1137 = vmatprep.subr.mxu0 0.0
  %1138 = vmatpush1.msra.mxu0 0.0
  %1139 = vmatprep.subr.mxu0 0.0
  %1140 = vmatpush1.msra.mxu0 0.0
  %1141 = vmatprep.subr.mxu0 0.0
  %1142 = vmatpush1.msra.mxu0 0.0
  %1143 = vmatprep.subr.mxu0 0.0
  %1144 = vmatpush1.msra.mxu0 0.0
  %1145 = vmatprep.subr.mxu0 0.0
  %1146 = vmatpush1.msra.mxu0 0.0
  %1147 = vmatprep.subr.mxu0 0.0
  %1148 = vmatpush1.msra.mxu0 %v1112
  %1149 = vmatprep.subr.mxu0 0.0
  %1150 = vmatpush1.msra.mxu0 %v1111
  %1151 = vmatprep.subr.mxu0 0.0
  %1152 = vmatpush1.msra.mxu0 %v1110
  %1153 = vmatprep.subr.mxu0 0.0
  %1154 = vmatpush1.msra.mxu0 %v1109
  %1155 = vmatprep.subr.mxu0 0.0
  %1156 = vmatpush2.msra.mxu0 0.0
  %1157 = vmatprep.subr.mxu0 0.0
  %1158 = vmatpush2.msra.mxu0 0.0
  %1159 = vmatprep.subr.mxu0 0.0
  %1160 = vmatpush2.msra.mxu0 0.0
  %1161 = vmatprep.subr.mxu0 0.0
  %1162 = vmatpush2.msra.mxu0 0.0
  %1163 = vmatprep.subr.mxu0 0.0
  %1164 = vmatpush2.msra.mxu0 0.0
  %1165 = vmatprep.subr.mxu0 0.0
  %1166 = vmatpush2.msra.mxu0 0.0
  %1167 = vmatprep.subr.mxu0 0.0
  %1168 = vmatpush2.msra.mxu0 0.0
  %1169 = vmatprep.subr.mxu0 0.0
  %1170 = vmatpush2.msra.mxu0 0.0
  %1171 = vmatprep.subr.mxu0 0.0
  %1172 = vmatpush2.msra.mxu0 0.0
  %1173 = vmatprep.subr.mxu0 0.0
  %1174 = vmatpush2.msra.mxu0 0.0
  %1175 = vmatprep.subr.mxu0 0.0
  %1176 = vmatpush2.msra.mxu0 0.0
  %1177 = vmatprep.subr.mxu0 0.0
  %1178 = vmatpush2.msra.mxu0 0.0
  %1179 = vmatprep.subr.mxu0 0.0
  %1180 = vmatpush2.msra.mxu0 0.0
  %1181 = vmatprep.subr.mxu0 0.0
  %1182 = vmatpush2.msra.mxu0 0.0
  %1183 = vmatprep.subr.mxu0 0.0
  %1184 = vmatpush2.msra.mxu0 0.0
  %1185 = vmatprep.subr.mxu0 0.0
  %1186 = vmatpush2.msra.mxu0 0.0
  %1187 = vmatprep.mubr.f32.mxu0 0.0
  %1188 = vmatmul.mubr.f32.gmra.mxu0 %v1121
  %v1189 = vpop.f32.mrf.mxu0
  %v1190 = vadd.f32 %v1118, %v1189
  %v1191 = vpop.f32.mrf.mxu0
  %1192 = vdwg.mxu0
  %v1195 = vunpack.c.l.s4 1966171168
  %v1196 = vunpack.c.0.s8 %v1195
  %v1197 = vlaneseq
  %v1198 = vshrl.u32 %v1197, 7
  %v1199 = vsub.s32 %v1196, %v1198
  %v1200 = vrot.slane %v1190, %v1199
  %v1201 = vcombine.high %v1200, %v1200
  %v1203 = vunpack.c.l.s4 1966171168
  %v1204 = vunpack.c.0.s8 %v1203
  %v1205 = vlaneseq
  %v1206 = vshrl.u32 %v1205, 7
  %v1207 = vsub.s32 %v1204, %v1206
  %v1208 = vrot.slane %v1200, %v1207
  %v1210 = vunpack.c.l.s4 1966171168
  %v1211 = vunpack.c.0.s8 %v1210
  %v1212 = vlaneseq
  %v1213 = vshrl.u32 %v1212, 7
  %v1214 = vsub.s32 %v1211, %v1213
  %v1215 = vrot.slane %v1201, %v1214
  %v1216 = vlaneseq
  %v1217 = vshrl.u32 %v1216, 7
  %v1218 = vsub.s32 0, %v1217
  %v1219 = vrot.slane %v1208, %v1218
  %v1220 = vlaneseq
  %v1221 = vshrl.u32 %v1220, 7
  %v1222 = vsub.s32 0, %v1221
  %v1223 = vrot.slane %v1215, %v1222
  %v1226 = vadd.f32 %v1022, %v1219
  %v1227 = vadd.f32 %v1023, %v1223
  %v1228 = vld [vmem:[%s13] sm:$0x1]
  %v1229 = vld [vmem:[%s14] sm:$0x1]
  %v1230 = vsel %vm125, %v1226, 0.0
  %1231 = vadd.xlane.f32.xlu0 %v1230
  %v1232 = vpop.xlane.xlu0 %1231
  %v1233 = vsel %vm125, %v1227, 0.0
  %1234 = vadd.xlane.f32.xlu0 %v1233
  %v1235 = vpop.xlane.xlu0 %1234
  %v1236 = vmul.f32 %v1232, %v987
  %v1237 = vmul.f32 %v1235, %v987
  %v1238 = vsub.f32 %v1226, %v1236
  %v1239 = vsub.f32 %v1227, %v1237
  %v1240 = vmul.f32 %v1238, %v1238
  %v1241 = vmul.f32 %v1239, %v1239
  %v1242 = vsel %vm125, %v1240, 0.0
  %1243 = vadd.xlane.f32.xlu0 %v1242
  %v1244 = vpop.xlane.xlu0 %1243
  %v1245 = vsel %vm125, %v1241, 0.0
  %1246 = vadd.xlane.f32.xlu0 %v1245
  %v1247 = vpop.xlane.xlu0 %1246
  %v1248 = vmul.f32 %v1244, %v987
  %v1249 = vmul.f32 %v1247, %v987
  %v1250 = vadd.f32 %v1248, 1e-05
  %v1251 = vadd.f32 %v1249, 1e-05
  %v1252 = vrsqrt.pop %v1250
  %v1253 = vrsqrt.pop %v1251
  %v1254 = vmul.f32 %v1238, %v1252
  %v1255 = vmul.f32 %v1239, %v1253
  %v1257 = vlaneseq
  %v1258 = vshrl.u32 %v1257, 7
  %v1259 = vsub.s32 0, %v1258
  %v1260 = vrot.slane %v1228, %v1259
  %v1262 = vmul.f32 %v1254, %v1260
  %v1263 = vmul.f32 %v1255, %v1260
  %v1265 = vlaneseq
  %v1266 = vshrl.u32 %v1265, 7
  %v1267 = vsub.s32 0, %v1266
  %v1268 = vrot.slane %v1229, %v1267
  %v1270 = vadd.f32 %v1262, %v1268
  %v1271 = vadd.f32 %v1263, %v1268
  %v1272 = vld [vmem:[%s15] sm:$0xff]
  %v1273 = vld [vmem:[%s15 + $0x8] sm:$0xff]
  %v1274 = vld [vmem:[%s15 + $0x10] sm:$0xff]
  %v1275 = vld [vmem:[%s15 + $0x18] sm:$0xff]
  %v1276 = vld [vmem:[%s16] sm:$0x1]
  %v1278 = vlaneseq
  %v1279 = vshrl.u32 %v1278, 7
  %v1280 = vsub.s32 0, %v1279
  %v1281 = vrot.slane %v1276, %v1280
  %v1284 = vsel %vm125, %v1270, 0
  %v1287 = vsel %vm125, %v1271, 0
  %1289 = vmatprep.subr.mxu0 0.0
  %1290 = vmatpush1.msra.mxu0 0.0
  %1291 = vmatprep.subr.mxu0 0.0
  %1292 = vmatpush1.msra.mxu0 0.0
  %1293 = vmatprep.subr.mxu0 0.0
  %1294 = vmatpush1.msra.mxu0 0.0
  %1295 = vmatprep.subr.mxu0 0.0
  %1296 = vmatpush1.msra.mxu0 0.0
  %1297 = vmatprep.subr.mxu0 0.0
  %1298 = vmatpush1.msra.mxu0 0.0
  %1299 = vmatprep.subr.mxu0 0.0
  %1300 = vmatpush1.msra.mxu0 0.0
  %1301 = vmatprep.subr.mxu0 0.0
  %1302 = vmatpush1.msra.mxu0 0.0
  %1303 = vmatprep.subr.mxu0 0.0
  %1304 = vmatpush1.msra.mxu0 0.0
  %1305 = vmatprep.subr.mxu0 0.0
  %1306 = vmatpush1.msra.mxu0 0.0
  %1307 = vmatprep.subr.mxu0 0.0
  %1308 = vmatpush1.msra.mxu0 0.0
  %1309 = vmatprep.subr.mxu0 0.0
  %1310 = vmatpush1.msra.mxu0 0.0
  %1311 = vmatprep.subr.mxu0 0.0
  %1312 = vmatpush1.msra.mxu0 0.0
  %1313 = vmatprep.subr.mxu0 0.0
  %1314 = vmatpush1.msra.mxu0 %v1275
  %1315 = vmatprep.subr.mxu0 0.0
  %1316 = vmatpush1.msra.mxu0 %v1274
  %1317 = vmatprep.subr.mxu0 0.0
  %1318 = vmatpush1.msra.mxu0 %v1273
  %1319 = vmatprep.subr.mxu0 0.0
  %1320 = vmatpush1.msra.mxu0 %v1272
  %1321 = vmatprep.subr.mxu0 0.0
  %1322 = vmatpush2.msra.mxu0 0.0
  %1323 = vmatprep.subr.mxu0 0.0
  %1324 = vmatpush2.msra.mxu0 0.0
  %1325 = vmatprep.subr.mxu0 0.0
  %1326 = vmatpush2.msra.mxu0 0.0
  %1327 = vmatprep.subr.mxu0 0.0
  %1328 = vmatpush2.msra.mxu0 0.0
  %1329 = vmatprep.subr.mxu0 0.0
  %1330 = vmatpush2.msra.mxu0 0.0
  %1331 = vmatprep.subr.mxu0 0.0
  %1332 = vmatpush2.msra.mxu0 0.0
  %1333 = vmatprep.subr.mxu0 0.0
  %1334 = vmatpush2.msra.mxu0 0.0
  %1335 = vmatprep.subr.mxu0 0.0
  %1336 = vmatpush2.msra.mxu0 0.0
  %1337 = vmatprep.subr.mxu0 0.0
  %1338 = vmatpush2.msra.mxu0 0.0
  %1339 = vmatprep.subr.mxu0 0.0
  %1340 = vmatpush2.msra.mxu0 0.0
  %1341 = vmatprep.subr.mxu0 0.0
  %1342 = vmatpush2.msra.mxu0 0.0
  %1343 = vmatprep.subr.mxu0 0.0
  %1344 = vmatpush2.msra.mxu0 0.0
  %1345 = vmatprep.subr.mxu0 0.0
  %1346 = vmatpush2.msra.mxu0 0.0
  %1347 = vmatprep.subr.mxu0 0.0
  %1348 = vmatpush2.msra.mxu0 0.0
  %1349 = vmatprep.subr.mxu0 0.0
  %1350 = vmatpush2.msra.mxu0 0.0
  %1351 = vmatprep.subr.mxu0 0.0
  %1352 = vmatpush2.msra.mxu0 0.0
  %1353 = vmatprep.mubr.f32.mxu0 0.0
  %1354 = vmatmul.mubr.f32.gmra.mxu0 %v1284
  %v1355 = vpop.f32.mrf.mxu0
  %v1356 = vadd.f32 %v1281, %v1355
  %v1357 = vpop.f32.mrf.mxu0
  %1358 = vmatprep.mubr.f32.mxu0 0.0
  %1359 = vmatmul.mubr.f32.gmra.mxu0 %v1287
  %v1360 = vpop.f32.mrf.mxu0
  %v1361 = vadd.f32 %v1281, %v1360
  %v1362 = vpop.f32.mrf.mxu0
  %1363 = vdwg.mxu0
  %v1364 = vmul.f32 %v1356, 0.5
  %v1365 = vmul.f32 %v1361, 0.5
  %v1366 = vmul.f32 %v1356, 0.044715
  %v1367 = vmul.f32 %v1361, 0.044715
  %v1368 = vmul.f32 %v1366, %v1356
  %v1369 = vmul.f32 %v1367, %v1361
  %v1370 = vmul.f32 %v1368, %v1356
  %v1371 = vmul.f32 %v1369, %v1361
  %v1372 = vadd.f32 %v1356, %v1370
  %v1373 = vadd.f32 %v1361, %v1371
  %v1374 = vmul.f32 %v1372, 0.7978846
  %v1375 = vmul.f32 %v1373, 0.7978846
  %v1376 = vtanh.pop %v1374
  %v1377 = vtanh.pop %v1375
  %v1378 = vadd.f32 %v1376, 1.0
  %v1379 = vadd.f32 %v1377, 1.0
  %v1380 = vmul.f32 %v1364, %v1378
  %v1381 = vmul.f32 %v1365, %v1379
  %v1382 = vld [vmem:[%s17] sm:$0xff]
  %v1383 = vld [vmem:[%s17 + $0x8] sm:$0xff]
  %v1384 = vld [vmem:[%s17 + $0x10] sm:$0xff]
  %v1385 = vld [vmem:[%s17 + $0x18] sm:$0xff]
  %v1386 = vld [vmem:[%s17 + $0x20] sm:$0xff]
  %v1387 = vld [vmem:[%s17 + $0x28] sm:$0xff]
  %v1388 = vld [vmem:[%s17 + $0x30] sm:$0xff]
  %v1389 = vld [vmem:[%s17 + $0x38] sm:$0xff]
  %v1390 = vld [vmem:[%s18] sm:$0x1]
  %v1392 = vlaneseq
  %v1393 = vshrl.u32 %v1392, 7
  %v1394 = vsub.s32 0, %v1393
  %v1395 = vrot.slane %v1390, %v1394
  %vm1397 = vcmask 523264
  %v1399 = vsel %vm1397, %v1380, 0
  %v1402 = vsel %vm1397, %v1381, 0
  %1404 = vmatprep.subr.mxu0 0.0
  %1405 = vmatpush1.msra.mxu0 0.0
  %1406 = vmatprep.subr.mxu0 0.0
  %1407 = vmatpush1.msra.mxu0 0.0
  %1408 = vmatprep.subr.mxu0 0.0
  %1409 = vmatpush1.msra.mxu0 0.0
  %1410 = vmatprep.subr.mxu0 0.0
  %1411 = vmatpush1.msra.mxu0 0.0
  %1412 = vmatprep.subr.mxu0 0.0
  %1413 = vmatpush1.msra.mxu0 0.0
  %1414 = vmatprep.subr.mxu0 0.0
  %1415 = vmatpush1.msra.mxu0 0.0
  %1416 = vmatprep.subr.mxu0 0.0
  %1417 = vmatpush1.msra.mxu0 0.0
  %1418 = vmatprep.subr.mxu0 0.0
  %1419 = vmatpush1.msra.mxu0 0.0
  %1420 = vmatprep.subr.mxu0 0.0
  %1421 = vmatpush1.msra.mxu0 %v1389
  %1422 = vmatprep.subr.mxu0 0.0
  %1423 = vmatpush1.msra.mxu0 %v1388
  %1424 = vmatprep.subr.mxu0 0.0
  %1425 = vmatpush1.msra.mxu0 %v1387
  %1426 = vmatprep.subr.mxu0 0.0
  %1427 = vmatpush1.msra.mxu0 %v1386
  %1428 = vmatprep.subr.mxu0 0.0
  %1429 = vmatpush1.msra.mxu0 %v1385
  %1430 = vmatprep.subr.mxu0 0.0
  %1431 = vmatpush1.msra.mxu0 %v1384
  %1432 = vmatprep.subr.mxu0 0.0
  %1433 = vmatpush1.msra.mxu0 %v1383
  %1434 = vmatprep.subr.mxu0 0.0
  %1435 = vmatpush1.msra.mxu0 %v1382
  %1436 = vmatprep.subr.mxu0 0.0
  %1437 = vmatpush2.msra.mxu0 0.0
  %1438 = vmatprep.subr.mxu0 0.0
  %1439 = vmatpush2.msra.mxu0 0.0
  %1440 = vmatprep.subr.mxu0 0.0
  %1441 = vmatpush2.msra.mxu0 0.0
  %1442 = vmatprep.subr.mxu0 0.0
  %1443 = vmatpush2.msra.mxu0 0.0
  %1444 = vmatprep.subr.mxu0 0.0
  %1445 = vmatpush2.msra.mxu0 0.0
  %1446 = vmatprep.subr.mxu0 0.0
  %1447 = vmatpush2.msra.mxu0 0.0
  %1448 = vmatprep.subr.mxu0 0.0
  %1449 = vmatpush2.msra.mxu0 0.0
  %1450 = vmatprep.subr.mxu0 0.0
  %1451 = vmatpush2.msra.mxu0 0.0
  %1452 = vmatprep.subr.mxu0 0.0
  %1453 = vmatpush2.msra.mxu0 0.0
  %1454 = vmatprep.subr.mxu0 0.0
  %1455 = vmatpush2.msra.mxu0 0.0
  %1456 = vmatprep.subr.mxu0 0.0
  %1457 = vmatpush2.msra.mxu0 0.0
  %1458 = vmatprep.subr.mxu0 0.0
  %1459 = vmatpush2.msra.mxu0 0.0
  %1460 = vmatprep.subr.mxu0 0.0
  %1461 = vmatpush2.msra.mxu0 0.0
  %1462 = vmatprep.subr.mxu0 0.0
  %1463 = vmatpush2.msra.mxu0 0.0
  %1464 = vmatprep.subr.mxu0 0.0
  %1465 = vmatpush2.msra.mxu0 0.0
  %1466 = vmatprep.subr.mxu0 0.0
  %1467 = vmatpush2.msra.mxu0 0.0
  %1468 = vmatprep.mubr.f32.mxu0 0.0
  %1469 = vmatmul.mubr.f32.gmra.mxu0 %v1399
  %v1470 = vpop.f32.mrf.mxu0
  %v1471 = vadd.f32 %v1395, %v1470
  %v1472 = vpop.f32.mrf.mxu0
  %1473 = vmatprep.mubr.f32.mxu0 0.0
  %1474 = vmatmul.mubr.f32.gmra.mxu0 %v1402
  %v1475 = vpop.f32.mrf.mxu0
  %v1476 = vadd.f32 %v1395, %v1475
  %v1477 = vpop.f32.mrf.mxu0
  %1478 = vdwg.mxu0
  %v1479 = vadd.f32 %v1270, %v1471
  %v1480 = vadd.f32 %v1271, %v1476
  %v1481 = vld [vmem:[%s19] sm:$0x1]
  %v1482 = vld [vmem:[%s20] sm:$0x1]
  %v1483 = vsel %vm125, %v1479, 0.0
  %1484 = vadd.xlane.f32.xlu0 %v1483
  %v1485 = vpop.xlane.xlu0 %1484
  %v1486 = vsel %vm125, %v1480, 0.0
  %1487 = vadd.xlane.f32.xlu0 %v1486
  %v1488 = vpop.xlane.xlu0 %1487
  %v1489 = vmul.f32 %v1485, %v987
  %v1490 = vmul.f32 %v1488, %v987
  %v1491 = vsub.f32 %v1479, %v1489
  %v1492 = vsub.f32 %v1480, %v1490
  %v1493 = vmul.f32 %v1491, %v1491
  %v1494 = vmul.f32 %v1492, %v1492
  %v1495 = vsel %vm125, %v1493, 0.0
  %1496 = vadd.xlane.f32.xlu0 %v1495
  %v1497 = vpop.xlane.xlu0 %1496
  %v1498 = vsel %vm125, %v1494, 0.0
  %1499 = vadd.xlane.f32.xlu0 %v1498
  %v1500 = vpop.xlane.xlu0 %1499
  %v1501 = vmul.f32 %v1497, %v987
  %v1502 = vmul.f32 %v1500, %v987
  %v1503 = vadd.f32 %v1501, 1e-05
  %v1504 = vadd.f32 %v1502, 1e-05
  %v1505 = vrsqrt.pop %v1503
  %v1506 = vrsqrt.pop %v1504
  %v1507 = vmul.f32 %v1491, %v1505
  %v1508 = vmul.f32 %v1492, %v1506
  %v1510 = vlaneseq
  %v1511 = vshrl.u32 %v1510, 7
  %v1512 = vsub.s32 0, %v1511
  %v1513 = vrot.slane %v1481, %v1512
  %v1515 = vmul.f32 %v1507, %v1513
  %v1516 = vmul.f32 %v1508, %v1513
  %v1518 = vlaneseq
  %v1519 = vshrl.u32 %v1518, 7
  %v1520 = vsub.s32 0, %v1519
  %v1521 = vrot.slane %v1482, %v1520
  %v1523 = vadd.f32 %v1515, %v1521
  %v1524 = vadd.f32 %v1516, %v1521
  %1525 = vst.msk [vmem:[%s21] sm:$0xff] %vm125, %v1523
  %1526 = vst.msk [vmem:[%s21 + $0x8] sm:$0xff] %vm125, %v1524
  // Predicated region
  $region86: #{classifier_forward.11} parent=0 // pred_check
    _
  $region87: #{classifier_forward.11} parent=0 // pred_check_branch
    %1528 = sbr.rel (0) target = $region89
  $region88: #{classifier_forward.11} parent=0 // pred_region
    _
  $region89: #{classifier_forward.11} parent=0 // pred_fallthru
    _
  // Predicated region
  $region90: #{classifier_forward.11} parent=0 // pred_check
    _
  $region91: #{classifier_forward.11} parent=0 // pred_check_branch
    %1530 = sbr.rel (0) target = $region93
  $region92: #{classifier_forward.11} parent=0 // pred_region
    _
  $region93: #{classifier_forward.11} parent=0 // pred_fallthru
    _

</llo_original>
